<compile_context>
chip_gen: v7x
topology: tpu7x:2x2x1
jax: 0.10.0
libtpu: 0.0.40
codegen_flags: <defaults>
</compile_context>

<pallas_src>
import functools

import jax
import jax.numpy as jnp
from jax.experimental import pallas as pl
from jax.experimental.pallas import tpu as pltpu

# ------------------------- model hyper-parameters ---------------------------
C_IN = 4
C_OUT = 32
KSIZE = 3
PAD = 1
HIDDEN = 64
NUM_CLASSES = 10
LN_EPS = 1e-5


# ------------------------------ fused kernel --------------------------------
def fused_classifier_kernel(xp_ref, wconv_ref, bconv_ref, ln_g_ref, ln_b_ref,
                            w1_ref, b1_ref, w2_ref, b2_ref, o_ref, *, h, w):
    """Per-image fused forward pass.

    xp_ref:    [1, h+2, w+2, C_IN]        zero-padded NHWC image (bf16)
    wconv_ref: [KSIZE*KSIZE, C_IN, C_OUT] per-tap conv weights (bf16)
    bconv_ref: [1, C_OUT]                 conv bias (f32)
    ln_g_ref / ln_b_ref: [1, C_OUT]       LayerNorm gamma / beta
    w1_ref: [C_OUT, HIDDEN]   b1_ref: [1, HIDDEN]
    w2_ref: [HIDDEN, NUM_CLASSES]  b2_ref: [1, NUM_CLASSES]
    o_ref:  [1, 1, NUM_CLASSES]           logits for this image
    """
    hw = h * w

    # --- conv3x3 as 9 shifted tap matmuls (in-kernel im2col, VMEM-only) ---
    # Each tap: [hw, C_IN](bf16) x [C_IN, C_OUT](bf16) -> f32 accumulator.
    acc = jnp.zeros((hw, C_OUT), jnp.float32)
    for di in range(KSIZE):
        for dj in range(KSIZE):
            t = di * KSIZE + dj
            tap = xp_ref[0, di:di + h, dj:dj + w, :].reshape(hw, C_IN)
            acc = acc + jnp.dot(tap, wconv_ref[t],
                                preferred_element_type=jnp.float32)
    acc = jnp.maximum(acc + bconv_ref[...], 0.0)          # bias + ReLU (f32)

    # --- global average pool over spatial positions (stays in VMEM) ---
    pooled = jnp.sum(acc, axis=0, keepdims=True) * (1.0 / hw)   # [1, C_OUT]

    # --- LayerNorm over channels (biased variance, matching nn.LayerNorm) ---
    mu = jnp.mean(pooled, axis=-1, keepdims=True)
    var = jnp.mean((pooled - mu) ** 2, axis=-1, keepdims=True)
    xn = (pooled - mu) * jax.lax.rsqrt(var + LN_EPS)
    xn = xn * ln_g_ref[...] + ln_b_ref[...]

    # --- MLP head (tiny, f32) ---
    h1 = jnp.dot(xn, w1_ref[...], preferred_element_type=jnp.float32) + b1_ref[...]
    h1 = jnp.maximum(h1, 0.0)
    logits = (jnp.dot(h1, w2_ref[...], preferred_element_type=jnp.float32)
              + b2_ref[...])                               # [1, NUM_CLASSES]

    o_ref[0] = logits


def _resident_spec(arr):
    """Whole (tiny) weight array as one VMEM-resident block (constant index map)."""
    return pl.BlockSpec(arr.shape, lambda i, nd=arr.ndim: (0,) * nd)


# ------------------------------ glue / wrapper ------------------------------
def init_params(key):
    """Deterministic init mirroring ImageClassifier._init_weights()."""
    k_conv, k_fc1 = jax.random.split(key, 2)

    def xavier(k, shape, fan_in, fan_out):
        bound = jnp.sqrt(6.0 / (fan_in + fan_out))
        return jax.random.uniform(k, shape, jnp.float32, -bound, bound)

    rf = KSIZE * KSIZE
    # Conv2d: xavier_uniform weight, zero bias. PyTorch layout [Cout, Cin, kh, kw].
    w_conv_pt = xavier(k_conv, (C_OUT, C_IN, KSIZE, KSIZE),
                       fan_in=C_IN * rf, fan_out=C_OUT * rf)
    # -> per-tap layout [kh*kw, Cin, Cout], bf16 (MXU-native input dtype).
    w_conv = jnp.transpose(w_conv_pt, (2, 3, 1, 0)).reshape(rf, C_IN, C_OUT)
    w_conv = w_conv.astype(jnp.bfloat16)
    b_conv = jnp.zeros((1, C_OUT), jnp.float32)

    # LayerNorm: ones / zeros
    ln_g = jnp.ones((1, C_OUT), jnp.float32)
    ln_b = jnp.zeros((1, C_OUT), jnp.float32)

    # Linear (non-head): xavier_uniform weight, zero bias
    w1 = xavier(k_fc1, (C_OUT, HIDDEN), fan_in=C_OUT, fan_out=HIDDEN)
    b1 = jnp.zeros((1, HIDDEN), jnp.float32)

    # head Linear: zero weight, zero bias
    w2 = jnp.zeros((HIDDEN, NUM_CLASSES), jnp.float32)
    b2 = jnp.zeros((1, NUM_CLASSES), jnp.float32)

    return dict(w_conv=w_conv, b_conv=b_conv, ln_g=ln_g, ln_b=ln_b,
                w1=w1, b1=b1, w2=w2, b2=b2)


@jax.jit
def image_classifier_forward(image_nchw, params):
    """Equivalent of ImageClassifier.forward(image, targets=None)."""
    n, c, h, w = image_nchw.shape

    # Only host-side prep: NCHW -> NHWC, zero-pad H/W by 1, cast to bf16.
    # (No im2col expansion; patch taps are built inside the kernel.)
    x_nhwc = jnp.transpose(image_nchw, (0, 2, 3, 1))
    xp = jnp.pad(x_nhwc, ((0, 0), (PAD, PAD), (PAD, PAD), (0, 0)))
    xp = xp.astype(jnp.bfloat16)

    weights = (params["w_conv"], params["b_conv"], params["ln_g"], params["ln_b"],
               params["w1"], params["b1"], params["w2"], params["b2"])

    kernel = functools.partial(fused_classifier_kernel, h=h, w=w)

    logits3 = pl.pallas_call(
        kernel,
        out_shape=jax.ShapeDtypeStruct((n, 1, NUM_CLASSES), jnp.float32),
        grid=(n,),
        in_specs=[pl.BlockSpec((1, h + 2 * PAD, w + 2 * PAD, c),
                               lambda i: (i, 0, 0, 0))]
                 + [_resident_spec(wt) for wt in weights],
        out_specs=pl.BlockSpec((1, 1, NUM_CLASSES), lambda i: (i, 0, 0)),
        compiler_params=pltpu.CompilerParams(
            dimension_semantics=("parallel",)),   # shard batch across v7x's 2 TCs
    )(xp, *weights)

    # targets is None path of ImageClassifier.forward
    return logits3.reshape(n, NUM_CLASSES), 0, {}


# ----------------------------------- main ------------------------------------
if __name__ == "__main__":
    key = jax.random.PRNGKey(0)
    k_img, k_params = jax.random.split(key)

    # Small input consistent with an image classifier: NCHW [2, 4, 16, 16]
    image = jax.random.normal(k_img, (2, C_IN, 16, 16), jnp.float32)
    params = init_params(k_params)

    outputs, loss, metrics_dict = image_classifier_forward(image, params)
    outputs = jax.block_until_ready(outputs)

    assert outputs.shape == (2, NUM_CLASSES)
    assert outputs.dtype == jnp.float32
    # head Linear is zero-initialized per _init_weights -> logits are all zero
    assert bool(jnp.all(outputs == 0.0))
    assert loss == 0 and metrics_dict == {}

    print("KERNEL_OK")
</pallas_src>

<mosaic_0001>
module attributes {stable_mosaic.version = 11 : i64} {
  func.func @fused_classifier_kernel(%arg0: i32, %arg1: memref<1x18x18x4xbf16, #tpu.memory_space<vmem>>, %arg2: memref<9x4x32xbf16, #tpu.memory_space<vmem>>, %arg3: memref<1x32xf32, #tpu.memory_space<vmem>>, %arg4: memref<1x32xf32, #tpu.memory_space<vmem>>, %arg5: memref<1x32xf32, #tpu.memory_space<vmem>>, %arg6: memref<32x64xf32, #tpu.memory_space<vmem>>, %arg7: memref<1x64xf32, #tpu.memory_space<vmem>>, %arg8: memref<64x10xf32, #tpu.memory_space<vmem>>, %arg9: memref<1x10xf32, #tpu.memory_space<vmem>>, %arg10: memref<1x1x10xf32, #tpu.memory_space<vmem>>) attributes {dimension_semantics = [#tpu.dimension_semantics<parallel>], iteration_bounds = array<i64: 2>, scalar_prefetch = 0 : i64, scratch_operands = 0 : i64, tpu.core_type = #tpu.core_type<tc>, window_params = [{transform_indices = @transform_0, window_bounds = array<i64: 1, 18, 18, 4>}, {pipeline_mode = #tpu.pipeline_mode<synchronous>, transform_indices = @transform_1, window_bounds = array<i64: 9, 4, 32>}, {pipeline_mode = #tpu.pipeline_mode<synchronous>, transform_indices = @transform_2, window_bounds = array<i64: 1, 32>}, {pipeline_mode = #tpu.pipeline_mode<synchronous>, transform_indices = @transform_3, window_bounds = array<i64: 1, 32>}, {pipeline_mode = #tpu.pipeline_mode<synchronous>, transform_indices = @transform_4, window_bounds = array<i64: 1, 32>}, {pipeline_mode = #tpu.pipeline_mode<synchronous>, transform_indices = @transform_5, window_bounds = array<i64: 32, 64>}, {pipeline_mode = #tpu.pipeline_mode<synchronous>, transform_indices = @transform_6, window_bounds = array<i64: 1, 64>}, {pipeline_mode = #tpu.pipeline_mode<synchronous>, transform_indices = @transform_7, window_bounds = array<i64: 64, 10>}, {pipeline_mode = #tpu.pipeline_mode<synchronous>, transform_indices = @transform_8, window_bounds = array<i64: 1, 10>}, {transform_indices = @transform_9, window_bounds = array<i64: 1, 1, 10>}]} {
    %cst = arith.constant 0.000000e+00 : f32
    %0 = vector.broadcast %cst : f32 to vector<256x32xf32>
    %c0 = arith.constant 0 : index
    %c0_0 = arith.constant 0 : index
    %c0_1 = arith.constant 0 : index
    %c0_2 = arith.constant 0 : index
    %1 = vector.load %arg1[%c0, %c0_0, %c0_1, %c0_2] : memref<1x18x18x4xbf16, #tpu.memory_space<vmem>>, vector<1x16x16x4xbf16>
    %2 = vector.shape_cast %1 : vector<1x16x16x4xbf16> to vector<16x16x4xbf16>
    %3 = vector.shape_cast %2 : vector<16x16x4xbf16> to vector<256x4xbf16>
    %c0_3 = arith.constant 0 : index
    %c0_4 = arith.constant 0 : index
    %c0_5 = arith.constant 0 : index
    %4 = vector.load %arg2[%c0_3, %c0_4, %c0_5] : memref<9x4x32xbf16, #tpu.memory_space<vmem>>, vector<1x4x32xbf16>
    %5 = vector.shape_cast %4 : vector<1x4x32xbf16> to vector<4x32xbf16>
    %cst_6 = arith.constant dense<0.000000e+00> : vector<256x32xf32>
    %6 = tpu.matmul %3, %5, %cst_6 {dimension_numbers = #tpu.dot_dimension_numbers<[1], [0], [0], [1], [0, 0, 1, 1], [], []>} : vector<256x4xbf16>, vector<4x32xbf16>, vector<256x32xf32> -> vector<256x32xf32>
    %7 = arith.addf %0, %6 : vector<256x32xf32>
    %c0_7 = arith.constant 0 : index
    %c0_8 = arith.constant 0 : index
    %c1 = arith.constant 1 : index
    %c0_9 = arith.constant 0 : index
    %8 = vector.load %arg1[%c0_7, %c0_8, %c1, %c0_9] : memref<1x18x18x4xbf16, #tpu.memory_space<vmem>>, vector<1x16x16x4xbf16>
    %9 = vector.shape_cast %8 : vector<1x16x16x4xbf16> to vector<16x16x4xbf16>
    %10 = vector.shape_cast %9 : vector<16x16x4xbf16> to vector<256x4xbf16>
    %c1_10 = arith.constant 1 : index
    %c0_11 = arith.constant 0 : index
    %c0_12 = arith.constant 0 : index
    %11 = vector.load %arg2[%c1_10, %c0_11, %c0_12] : memref<9x4x32xbf16, #tpu.memory_space<vmem>>, vector<1x4x32xbf16>
    %12 = vector.shape_cast %11 : vector<1x4x32xbf16> to vector<4x32xbf16>
    %cst_13 = arith.constant dense<0.000000e+00> : vector<256x32xf32>
    %13 = tpu.matmul %10, %12, %cst_13 {dimension_numbers = #tpu.dot_dimension_numbers<[1], [0], [0], [1], [0, 0, 1, 1], [], []>} : vector<256x4xbf16>, vector<4x32xbf16>, vector<256x32xf32> -> vector<256x32xf32>
    %14 = arith.addf %7, %13 : vector<256x32xf32>
    %c0_14 = arith.constant 0 : index
    %c0_15 = arith.constant 0 : index
    %c2 = arith.constant 2 : index
    %c0_16 = arith.constant 0 : index
    %15 = vector.load %arg1[%c0_14, %c0_15, %c2, %c0_16] : memref<1x18x18x4xbf16, #tpu.memory_space<vmem>>, vector<1x16x16x4xbf16>
    %16 = vector.shape_cast %15 : vector<1x16x16x4xbf16> to vector<16x16x4xbf16>
    %17 = vector.shape_cast %16 : vector<16x16x4xbf16> to vector<256x4xbf16>
    %c2_17 = arith.constant 2 : index
    %c0_18 = arith.constant 0 : index
    %c0_19 = arith.constant 0 : index
    %18 = vector.load %arg2[%c2_17, %c0_18, %c0_19] : memref<9x4x32xbf16, #tpu.memory_space<vmem>>, vector<1x4x32xbf16>
    %19 = vector.shape_cast %18 : vector<1x4x32xbf16> to vector<4x32xbf16>
    %cst_20 = arith.constant dense<0.000000e+00> : vector<256x32xf32>
    %20 = tpu.matmul %17, %19, %cst_20 {dimension_numbers = #tpu.dot_dimension_numbers<[1], [0], [0], [1], [0, 0, 1, 1], [], []>} : vector<256x4xbf16>, vector<4x32xbf16>, vector<256x32xf32> -> vector<256x32xf32>
    %21 = arith.addf %14, %20 : vector<256x32xf32>
    %c0_21 = arith.constant 0 : index
    %c1_22 = arith.constant 1 : index
    %c0_23 = arith.constant 0 : index
    %c0_24 = arith.constant 0 : index
    %22 = vector.load %arg1[%c0_21, %c1_22, %c0_23, %c0_24] : memref<1x18x18x4xbf16, #tpu.memory_space<vmem>>, vector<1x16x16x4xbf16>
    %23 = vector.shape_cast %22 : vector<1x16x16x4xbf16> to vector<16x16x4xbf16>
    %24 = vector.shape_cast %23 : vector<16x16x4xbf16> to vector<256x4xbf16>
    %c3 = arith.constant 3 : index
    %c0_25 = arith.constant 0 : index
    %c0_26 = arith.constant 0 : index
    %25 = vector.load %arg2[%c3, %c0_25, %c0_26] : memref<9x4x32xbf16, #tpu.memory_space<vmem>>, vector<1x4x32xbf16>
    %26 = vector.shape_cast %25 : vector<1x4x32xbf16> to vector<4x32xbf16>
    %cst_27 = arith.constant dense<0.000000e+00> : vector<256x32xf32>
    %27 = tpu.matmul %24, %26, %cst_27 {dimension_numbers = #tpu.dot_dimension_numbers<[1], [0], [0], [1], [0, 0, 1, 1], [], []>} : vector<256x4xbf16>, vector<4x32xbf16>, vector<256x32xf32> -> vector<256x32xf32>
    %28 = arith.addf %21, %27 : vector<256x32xf32>
    %c0_28 = arith.constant 0 : index
    %c1_29 = arith.constant 1 : index
    %c1_30 = arith.constant 1 : index
    %c0_31 = arith.constant 0 : index
    %29 = vector.load %arg1[%c0_28, %c1_29, %c1_30, %c0_31] : memref<1x18x18x4xbf16, #tpu.memory_space<vmem>>, vector<1x16x16x4xbf16>
    %30 = vector.shape_cast %29 : vector<1x16x16x4xbf16> to vector<16x16x4xbf16>
    %31 = vector.shape_cast %30 : vector<16x16x4xbf16> to vector<256x4xbf16>
    %c4 = arith.constant 4 : index
    %c0_32 = arith.constant 0 : index
    %c0_33 = arith.constant 0 : index
    %32 = vector.load %arg2[%c4, %c0_32, %c0_33] : memref<9x4x32xbf16, #tpu.memory_space<vmem>>, vector<1x4x32xbf16>
    %33 = vector.shape_cast %32 : vector<1x4x32xbf16> to vector<4x32xbf16>
    %cst_34 = arith.constant dense<0.000000e+00> : vector<256x32xf32>
    %34 = tpu.matmul %31, %33, %cst_34 {dimension_numbers = #tpu.dot_dimension_numbers<[1], [0], [0], [1], [0, 0, 1, 1], [], []>} : vector<256x4xbf16>, vector<4x32xbf16>, vector<256x32xf32> -> vector<256x32xf32>
    %35 = arith.addf %28, %34 : vector<256x32xf32>
    %c0_35 = arith.constant 0 : index
    %c1_36 = arith.constant 1 : index
    %c2_37 = arith.constant 2 : index
    %c0_38 = arith.constant 0 : index
    %36 = vector.load %arg1[%c0_35, %c1_36, %c2_37, %c0_38] : memref<1x18x18x4xbf16, #tpu.memory_space<vmem>>, vector<1x16x16x4xbf16>
    %37 = vector.shape_cast %36 : vector<1x16x16x4xbf16> to vector<16x16x4xbf16>
    %38 = vector.shape_cast %37 : vector<16x16x4xbf16> to vector<256x4xbf16>
    %c5 = arith.constant 5 : index
    %c0_39 = arith.constant 0 : index
    %c0_40 = arith.constant 0 : index
    %39 = vector.load %arg2[%c5, %c0_39, %c0_40] : memref<9x4x32xbf16, #tpu.memory_space<vmem>>, vector<1x4x32xbf16>
    %40 = vector.shape_cast %39 : vector<1x4x32xbf16> to vector<4x32xbf16>
    %cst_41 = arith.constant dense<0.000000e+00> : vector<256x32xf32>
    %41 = tpu.matmul %38, %40, %cst_41 {dimension_numbers = #tpu.dot_dimension_numbers<[1], [0], [0], [1], [0, 0, 1, 1], [], []>} : vector<256x4xbf16>, vector<4x32xbf16>, vector<256x32xf32> -> vector<256x32xf32>
    %42 = arith.addf %35, %41 : vector<256x32xf32>
    %c0_42 = arith.constant 0 : index
    %c2_43 = arith.constant 2 : index
    %c0_44 = arith.constant 0 : index
    %c0_45 = arith.constant 0 : index
    %43 = vector.load %arg1[%c0_42, %c2_43, %c0_44, %c0_45] : memref<1x18x18x4xbf16, #tpu.memory_space<vmem>>, vector<1x16x16x4xbf16>
    %44 = vector.shape_cast %43 : vector<1x16x16x4xbf16> to vector<16x16x4xbf16>
    %45 = vector.shape_cast %44 : vector<16x16x4xbf16> to vector<256x4xbf16>
    %c6 = arith.constant 6 : index
    %c0_46 = arith.constant 0 : index
    %c0_47 = arith.constant 0 : index
    %46 = vector.load %arg2[%c6, %c0_46, %c0_47] : memref<9x4x32xbf16, #tpu.memory_space<vmem>>, vector<1x4x32xbf16>
    %47 = vector.shape_cast %46 : vector<1x4x32xbf16> to vector<4x32xbf16>
    %cst_48 = arith.constant dense<0.000000e+00> : vector<256x32xf32>
    %48 = tpu.matmul %45, %47, %cst_48 {dimension_numbers = #tpu.dot_dimension_numbers<[1], [0], [0], [1], [0, 0, 1, 1], [], []>} : vector<256x4xbf16>, vector<4x32xbf16>, vector<256x32xf32> -> vector<256x32xf32>
    %49 = arith.addf %42, %48 : vector<256x32xf32>
    %c0_49 = arith.constant 0 : index
    %c2_50 = arith.constant 2 : index
    %c1_51 = arith.constant 1 : index
    %c0_52 = arith.constant 0 : index
    %50 = vector.load %arg1[%c0_49, %c2_50, %c1_51, %c0_52] : memref<1x18x18x4xbf16, #tpu.memory_space<vmem>>, vector<1x16x16x4xbf16>
    %51 = vector.shape_cast %50 : vector<1x16x16x4xbf16> to vector<16x16x4xbf16>
    %52 = vector.shape_cast %51 : vector<16x16x4xbf16> to vector<256x4xbf16>
    %c7 = arith.constant 7 : index
    %c0_53 = arith.constant 0 : index
    %c0_54 = arith.constant 0 : index
    %53 = vector.load %arg2[%c7, %c0_53, %c0_54] : memref<9x4x32xbf16, #tpu.memory_space<vmem>>, vector<1x4x32xbf16>
    %54 = vector.shape_cast %53 : vector<1x4x32xbf16> to vector<4x32xbf16>
    %cst_55 = arith.constant dense<0.000000e+00> : vector<256x32xf32>
    %55 = tpu.matmul %52, %54, %cst_55 {dimension_numbers = #tpu.dot_dimension_numbers<[1], [0], [0], [1], [0, 0, 1, 1], [], []>} : vector<256x4xbf16>, vector<4x32xbf16>, vector<256x32xf32> -> vector<256x32xf32>
    %56 = arith.addf %49, %55 : vector<256x32xf32>
    %c0_56 = arith.constant 0 : index
    %c2_57 = arith.constant 2 : index
    %c2_58 = arith.constant 2 : index
    %c0_59 = arith.constant 0 : index
    %57 = vector.load %arg1[%c0_56, %c2_57, %c2_58, %c0_59] : memref<1x18x18x4xbf16, #tpu.memory_space<vmem>>, vector<1x16x16x4xbf16>
    %58 = vector.shape_cast %57 : vector<1x16x16x4xbf16> to vector<16x16x4xbf16>
    %59 = vector.shape_cast %58 : vector<16x16x4xbf16> to vector<256x4xbf16>
    %c8 = arith.constant 8 : index
    %c0_60 = arith.constant 0 : index
    %c0_61 = arith.constant 0 : index
    %60 = vector.load %arg2[%c8, %c0_60, %c0_61] : memref<9x4x32xbf16, #tpu.memory_space<vmem>>, vector<1x4x32xbf16>
    %61 = vector.shape_cast %60 : vector<1x4x32xbf16> to vector<4x32xbf16>
    %cst_62 = arith.constant dense<0.000000e+00> : vector<256x32xf32>
    %62 = tpu.matmul %59, %61, %cst_62 {dimension_numbers = #tpu.dot_dimension_numbers<[1], [0], [0], [1], [0, 0, 1, 1], [], []>} : vector<256x4xbf16>, vector<4x32xbf16>, vector<256x32xf32> -> vector<256x32xf32>
    %63 = arith.addf %56, %62 : vector<256x32xf32>
    %c0_63 = arith.constant 0 : index
    %c0_64 = arith.constant 0 : index
    %64 = vector.load %arg3[%c0_63, %c0_64] : memref<1x32xf32, #tpu.memory_space<vmem>>, vector<1x32xf32>
    %65 = vector.broadcast %64 : vector<1x32xf32> to vector<256x32xf32>
    %66 = arith.addf %63, %65 : vector<256x32xf32>
    %cst_65 = arith.constant 0.000000e+00 : f32
    %67 = vector.broadcast %cst_65 : f32 to vector<256x32xf32>
    %68 = arith.maximumf %66, %67 : vector<256x32xf32>
    %cst_66 = arith.constant dense<0.000000e+00> : vector<32xf32>
    %69 = vector.multi_reduction <add>, %68, %cst_66 [0] : vector<256x32xf32> to vector<32xf32>
    %70 = vector.shape_cast %69 : vector<32xf32> to vector<1x32xf32>
    %cst_67 = arith.constant 3.906250e-03 : f32
    %71 = vector.broadcast %cst_67 : f32 to vector<1x32xf32>
    %72 = arith.mulf %70, %71 : vector<1x32xf32>
    %cst_68 = arith.constant dense<0.000000e+00> : vector<1xf32>
    %73 = vector.multi_reduction <add>, %72, %cst_68 [1] : vector<1x32xf32> to vector<1xf32>
    %74 = vector.shape_cast %73 : vector<1xf32> to vector<1x1xf32>
    %cst_69 = arith.constant 3.200000e+01 : f32
    %75 = vector.broadcast %cst_69 : f32 to vector<1x1xf32>
    %76 = arith.divf %74, %75 : vector<1x1xf32>
    %77 = vector.broadcast %76 : vector<1x1xf32> to vector<1x32xf32>
    %78 = arith.subf %72, %77 : vector<1x32xf32>
    %79 = arith.mulf %78, %78 : vector<1x32xf32>
    %cst_70 = arith.constant dense<0.000000e+00> : vector<1xf32>
    %80 = vector.multi_reduction <add>, %79, %cst_70 [1] : vector<1x32xf32> to vector<1xf32>
    %81 = vector.shape_cast %80 : vector<1xf32> to vector<1x1xf32>
    %cst_71 = arith.constant 3.200000e+01 : f32
    %82 = vector.broadcast %cst_71 : f32 to vector<1x1xf32>
    %83 = arith.divf %81, %82 : vector<1x1xf32>
    %84 = vector.broadcast %76 : vector<1x1xf32> to vector<1x32xf32>
    %85 = arith.subf %72, %84 : vector<1x32xf32>
    %cst_72 = arith.constant 9.99999974E-6 : f32
    %86 = vector.broadcast %cst_72 : f32 to vector<1x1xf32>
    %87 = arith.addf %83, %86 : vector<1x1xf32>
    %88 = math.rsqrt %87 : vector<1x1xf32>
    %89 = vector.broadcast %88 : vector<1x1xf32> to vector<1x32xf32>
    %90 = arith.mulf %85, %89 : vector<1x32xf32>
    %c0_73 = arith.constant 0 : index
    %c0_74 = arith.constant 0 : index
    %91 = vector.load %arg4[%c0_73, %c0_74] : memref<1x32xf32, #tpu.memory_space<vmem>>, vector<1x32xf32>
    %92 = arith.mulf %90, %91 : vector<1x32xf32>
    %c0_75 = arith.constant 0 : index
    %c0_76 = arith.constant 0 : index
    %93 = vector.load %arg5[%c0_75, %c0_76] : memref<1x32xf32, #tpu.memory_space<vmem>>, vector<1x32xf32>
    %94 = arith.addf %92, %93 : vector<1x32xf32>
    %c0_77 = arith.constant 0 : index
    %c0_78 = arith.constant 0 : index
    %95 = vector.load %arg6[%c0_77, %c0_78] : memref<32x64xf32, #tpu.memory_space<vmem>>, vector<32x64xf32>
    %cst_79 = arith.constant dense<0.000000e+00> : vector<1x64xf32>
    %96 = tpu.matmul %94, %95, %cst_79 {dimension_numbers = #tpu.dot_dimension_numbers<[1], [0], [0], [1], [0, 0, 1, 1], [], []>} : vector<1x32xf32>, vector<32x64xf32>, vector<1x64xf32> -> vector<1x64xf32>
    %c0_80 = arith.constant 0 : index
    %c0_81 = arith.constant 0 : index
    %97 = vector.load %arg7[%c0_80, %c0_81] : memref<1x64xf32, #tpu.memory_space<vmem>>, vector<1x64xf32>
    %98 = arith.addf %96, %97 : vector<1x64xf32>
    %cst_82 = arith.constant 0.000000e+00 : f32
    %99 = vector.broadcast %cst_82 : f32 to vector<1x64xf32>
    %100 = arith.maximumf %98, %99 : vector<1x64xf32>
    %c0_83 = arith.constant 0 : index
    %c0_84 = arith.constant 0 : index
    %101 = vector.load %arg8[%c0_83, %c0_84] : memref<64x10xf32, #tpu.memory_space<vmem>>, vector<64x10xf32>
    %cst_85 = arith.constant dense<0.000000e+00> : vector<1x10xf32>
    %102 = tpu.matmul %100, %101, %cst_85 {dimension_numbers = #tpu.dot_dimension_numbers<[1], [0], [0], [1], [0, 0, 1, 1], [], []>} : vector<1x64xf32>, vector<64x10xf32>, vector<1x10xf32> -> vector<1x10xf32>
    %c0_86 = arith.constant 0 : index
    %c0_87 = arith.constant 0 : index
    %103 = vector.load %arg9[%c0_86, %c0_87] : memref<1x10xf32, #tpu.memory_space<vmem>>, vector<1x10xf32>
    %104 = arith.addf %102, %103 : vector<1x10xf32>
    %c0_88 = arith.constant 0 : index
    %c0_89 = arith.constant 0 : index
    %c0_90 = arith.constant 0 : index
    %105 = vector.load %arg10[%c0_88, %c0_89, %c0_90] : memref<1x1x10xf32, #tpu.memory_space<vmem>>, vector<1x1x10xf32>
    %106 = vector.shape_cast %105 : vector<1x1x10xf32> to vector<1x10xf32>
    %107 = vector.shape_cast %104 : vector<1x10xf32> to vector<1x1x10xf32>
    tpu.vector_store %arg10[%c0_88, %c0_89, %c0_90], %107 {strides = array<i32>} : memref<1x1x10xf32, #tpu.memory_space<vmem>>, vector<1x1x10xf32>,
    return
  }
  func.func @transform_0(%arg0: i32) -> (i32, i32, i32, i32) {
    %c0_i32 = arith.constant 0 : i32
    %c0_i32_0 = arith.constant 0 : i32
    %c0_i32_1 = arith.constant 0 : i32
    %c0_i32_2 = arith.constant 0 : i32
    return %arg0, %c0_i32, %c0_i32_0, %c0_i32_1 : i32, i32, i32, i32
  }
  func.func @transform_1(%arg0: i32) -> (i32, i32, i32) {
    %c0_i32 = arith.constant 0 : i32
    %c0_i32_0 = arith.constant 0 : i32
    %c0_i32_1 = arith.constant 0 : i32
    %c0_i32_2 = arith.constant 0 : i32
    return %c0_i32, %c0_i32_0, %c0_i32_1 : i32, i32, i32
  }
  func.func @transform_2(%arg0: i32) -> (i32, i32) {
    %c0_i32 = arith.constant 0 : i32
    %c0_i32_0 = arith.constant 0 : i32
    %c0_i32_1 = arith.constant 0 : i32
    return %c0_i32, %c0_i32_0 : i32, i32
  }
  func.func @transform_3(%arg0: i32) -> (i32, i32) {
    %c0_i32 = arith.constant 0 : i32
    %c0_i32_0 = arith.constant 0 : i32
    %c0_i32_1 = arith.constant 0 : i32
    return %c0_i32, %c0_i32_0 : i32, i32
  }
  func.func @transform_4(%arg0: i32) -> (i32, i32) {
    %c0_i32 = arith.constant 0 : i32
    %c0_i32_0 = arith.constant 0 : i32
    %c0_i32_1 = arith.constant 0 : i32
    return %c0_i32, %c0_i32_0 : i32, i32
  }
  func.func @transform_5(%arg0: i32) -> (i32, i32) {
    %c0_i32 = arith.constant 0 : i32
    %c0_i32_0 = arith.constant 0 : i32
    %c0_i32_1 = arith.constant 0 : i32
    return %c0_i32, %c0_i32_0 : i32, i32
  }
  func.func @transform_6(%arg0: i32) -> (i32, i32) {
    %c0_i32 = arith.constant 0 : i32
    %c0_i32_0 = arith.constant 0 : i32
    %c0_i32_1 = arith.constant 0 : i32
    return %c0_i32, %c0_i32_0 : i32, i32
  }
  func.func @transform_7(%arg0: i32) -> (i32, i32) {
    %c0_i32 = arith.constant 0 : i32
    %c0_i32_0 = arith.constant 0 : i32
    %c0_i32_1 = arith.constant 0 : i32
    return %c0_i32, %c0_i32_0 : i32, i32
  }
  func.func @transform_8(%arg0: i32) -> (i32, i32) {
    %c0_i32 = arith.constant 0 : i32
    %c0_i32_0 = arith.constant 0 : i32
    %c0_i32_1 = arith.constant 0 : i32
    return %c0_i32, %c0_i32_0 : i32, i32
  }
  func.func @transform_9(%arg0: i32) -> (i32, i32, i32) {
    %c0_i32 = arith.constant 0 : i32
    %c0_i32_0 = arith.constant 0 : i32
    %c0_i32_1 = arith.constant 0 : i32
    return %arg0, %c0_i32, %c0_i32_0 : i32, i32, i32
  }
}

</mosaic_0001>

<llo_original>
// kernel: image_classifier_forward.1
$region0: #{image_classifier_forward.1}
  #allocation0 [shape = 'u32[]', space=smem, size = 0x4, offset = 0x4, fixed_abs, tag = 'smem constant byte address 0x4 - core index']
  #allocation1 [shape = 'u32[144,128]{1,0:T(1,128)}', space=vmem, size = 0x12000, scoped, tag = 'internal scratch']
  %s0 = inlined_call_operand.vmem [shape: bf16[2,18,18,4], index: 0, kind: input, shape index: {}]
  %s1 = inlined_call_operand.vmem [shape: bf16[9,4,32], index: 1, kind: input, shape index: {}]
  %s2 = inlined_call_operand.vmem [shape: f32[1,32], index: 2, kind: input, shape index: {}]
  %s3 = inlined_call_operand.vmem [shape: f32[1,32], index: 3, kind: input, shape index: {}]
  %s4 = inlined_call_operand.vmem [shape: f32[1,32], index: 4, kind: input, shape index: {}]
  %s5 = inlined_call_operand.vmem [shape: f32[32,64], index: 5, kind: input, shape index: {}]
  %s6 = inlined_call_operand.vmem [shape: f32[1,64], index: 6, kind: input, shape index: {}]
  %s7 = inlined_call_operand.vmem [shape: f32[64,10], index: 7, kind: input, shape index: {}]
  %s8 = inlined_call_operand.vmem [shape: f32[1,10], index: 8, kind: input, shape index: {}]
  %s9 = inlined_call_operand.hbm [shape: f32[2,1,10], index: 9, kind: output, shape index: {}]
  %s10 = sld [smem:[#allocation0]]
  $region69: #{image_classifier_forward.1} parent=0
    _
  %s12 = ssub.s32 1, %s10
  %s13 = scalar_select 0, %s12, %s10
  $region1: #{image_classifier_forward.1} parent=0
    #allocation2 [shape = 'u8[1024]{0}', space=vmem, size = 0x400, scoped, tag = 'output window, operand 0']
    #allocation3 [shape = 's32[2]{0}', space=sflag, size = 0x8, scoped, tag = 'scoped memory for image_classifier_forward.1']
    %14 = vsyncpa [#allocation3], 0
    %s15 = scalar_lea.sflag [#allocation3], 1
    %16 = vsyncpa %s15, 0
    loop: start=0, step=1, limit=4
    $region2: #{image_classifier_forward.1} parent=1 // loop_pre_header
      _
    $region3: #{image_classifier_forward.1} parent=1 // loop_header
      %s18 = sphi 0, %s22
      %p19 = scmp.ge.s32.totalorder %s18, 4
      %s28 = sphi 0, %s30
      %s31 = sphi 0, %s28
      %s32 = sphi 0, %s31
      %s48 = sphi 0, %s32
      %s52 = sphi 0, %s52
      %s54 = sphi 0, %s52
      %s55 = sphi 0, %s54
      %s69 = sphi 0, %s55
      %s73 = sphi 0, %s73
      %s75 = sphi 0, %s73
      %s76 = sphi 0, %s75
      %s90 = sphi 0, %s76
      %s94 = sphi 0, %s94
      %s96 = sphi 0, %s94
      %s97 = sphi 0, %s96
      %s111 = sphi 0, %s97
      %s115 = sphi 0, %s115
      %s117 = sphi 0, %s115
      %s118 = sphi 0, %s117
      %s132 = sphi 0, %s118
      %s136 = sphi 0, %s136
      %s138 = sphi 0, %s136
      %s139 = sphi 0, %s138
      %s153 = sphi 0, %s139
      %s157 = sphi 0, %s157
      %s159 = sphi 0, %s157
      %s160 = sphi 0, %s159
      %s174 = sphi 0, %s160
      %s178 = sphi 0, %s178
      %s180 = sphi 0, %s178
      %s181 = sphi 0, %s180
      %s195 = sphi 0, %s181
      %s199 = sphi 0, %s199
      %s201 = sphi 0, %s199
      %s202 = sphi 0, %s201
      %s216 = sphi 0, %s202
      %s222 = sphi 0, %s224
      %s225 = sphi 0, %s222
      %s226 = sphi 0, %s225
      %s242 = sphi 0, %s226
    $region4: #{image_classifier_forward.1} parent=1 // loop_header_branch
      %21 = sbr.rel (%p19) target = $region8
    $region5: #{image_classifier_forward.1} parent=1 // loop_body
      %s23 = ssub.s32 %s18, 1
      %s24 = ssub.s32 %s18, 2
      %s25 = sadd.s32 %s18, 1
      %s26 = ssub.s32 %s18, %s25
      %p27 = scmp.eq.s32.totalorder %s26, 0
      %s29 = sadd.s32 %s28, 1
      %s30 = scalar_select %p27, %s28, %s29
      %p33 = pneg %p27
      %p34 = scmp.eq.s32.totalorder %s18, 1
      %p35 = por %p33, %p34
      %p36 = scmp.ne.s32.totalorder %s28, %s31
      %p37 = scmp.eq.s32.totalorder %s18, 0
      %p38 = por %p36, %p37
      %p39 = scmp.ne.s32.totalorder %s28, %s31
      %p40 = scmp.eq.s32.totalorder %s23, 1
      %p41 = por %p39, %p40
      %p42 = scmp.ne.s32.totalorder %s31, %s32
      %p43 = scmp.eq.s32.totalorder %s23, 0
      %p44 = por %p42, %p43
      %p45 = scmp.ne.s32.totalorder %s31, %s32
      %p46 = scmp.eq.s32.totalorder %s24, 1
      %p47 = por %p45, %p46
      %p49 = scmp.ne.s32.totalorder %s32, %s48
      %p50 = scmp.eq.s32.totalorder %s24, 0
      %p51 = por %p49, %p50
      %s53 = sadd.s32 %s52, 1
      %p56 = scmp.eq.s32.totalorder %s18, 1
      %p57 = scmp.ne.s32.totalorder %s52, %s54
      %p58 = scmp.eq.s32.totalorder %s18, 0
      %p59 = por %p57, %p58
      %p60 = scmp.ne.s32.totalorder %s52, %s54
      %p61 = scmp.eq.s32.totalorder %s23, 1
      %p62 = por %p60, %p61
      %p63 = scmp.ne.s32.totalorder %s54, %s55
      %p64 = scmp.eq.s32.totalorder %s23, 0
      %p65 = por %p63, %p64
      %p66 = scmp.ne.s32.totalorder %s54, %s55
      %p67 = scmp.eq.s32.totalorder %s24, 1
      %p68 = por %p66, %p67
      %p70 = scmp.ne.s32.totalorder %s55, %s69
      %p71 = scmp.eq.s32.totalorder %s24, 0
      %p72 = por %p70, %p71
      %s74 = sadd.s32 %s73, 1
      %p77 = scmp.eq.s32.totalorder %s18, 1
      %p78 = scmp.ne.s32.totalorder %s73, %s75
      %p79 = scmp.eq.s32.totalorder %s18, 0
      %p80 = por %p78, %p79
      %p81 = scmp.ne.s32.totalorder %s73, %s75
      %p82 = scmp.eq.s32.totalorder %s23, 1
      %p83 = por %p81, %p82
      %p84 = scmp.ne.s32.totalorder %s75, %s76
      %p85 = scmp.eq.s32.totalorder %s23, 0
      %p86 = por %p84, %p85
      %p87 = scmp.ne.s32.totalorder %s75, %s76
      %p88 = scmp.eq.s32.totalorder %s24, 1
      %p89 = por %p87, %p88
      %p91 = scmp.ne.s32.totalorder %s76, %s90
      %p92 = scmp.eq.s32.totalorder %s24, 0
      %p93 = por %p91, %p92
      %s95 = sadd.s32 %s94, 1
      %p98 = scmp.eq.s32.totalorder %s18, 1
      %p99 = scmp.ne.s32.totalorder %s94, %s96
      %p100 = scmp.eq.s32.totalorder %s18, 0
      %p101 = por %p99, %p100
      %p102 = scmp.ne.s32.totalorder %s94, %s96
      %p103 = scmp.eq.s32.totalorder %s23, 1
      %p104 = por %p102, %p103
      %p105 = scmp.ne.s32.totalorder %s96, %s97
      %p106 = scmp.eq.s32.totalorder %s23, 0
      %p107 = por %p105, %p106
      %p108 = scmp.ne.s32.totalorder %s96, %s97
      %p109 = scmp.eq.s32.totalorder %s24, 1
      %p110 = por %p108, %p109
      %p112 = scmp.ne.s32.totalorder %s97, %s111
      %p113 = scmp.eq.s32.totalorder %s24, 0
      %p114 = por %p112, %p113
      %s116 = sadd.s32 %s115, 1
      %p119 = scmp.eq.s32.totalorder %s18, 1
      %p120 = scmp.ne.s32.totalorder %s115, %s117
      %p121 = scmp.eq.s32.totalorder %s18, 0
      %p122 = por %p120, %p121
      %p123 = scmp.ne.s32.totalorder %s115, %s117
      %p124 = scmp.eq.s32.totalorder %s23, 1
      %p125 = por %p123, %p124
      %p126 = scmp.ne.s32.totalorder %s117, %s118
      %p127 = scmp.eq.s32.totalorder %s23, 0
      %p128 = por %p126, %p127
      %p129 = scmp.ne.s32.totalorder %s117, %s118
      %p130 = scmp.eq.s32.totalorder %s24, 1
      %p131 = por %p129, %p130
      %p133 = scmp.ne.s32.totalorder %s118, %s132
      %p134 = scmp.eq.s32.totalorder %s24, 0
      %p135 = por %p133, %p134
      %s137 = sadd.s32 %s136, 1
      %p140 = scmp.eq.s32.totalorder %s18, 1
      %p141 = scmp.ne.s32.totalorder %s136, %s138
      %p142 = scmp.eq.s32.totalorder %s18, 0
      %p143 = por %p141, %p142
      %p144 = scmp.ne.s32.totalorder %s136, %s138
      %p145 = scmp.eq.s32.totalorder %s23, 1
      %p146 = por %p144, %p145
      %p147 = scmp.ne.s32.totalorder %s138, %s139
      %p148 = scmp.eq.s32.totalorder %s23, 0
      %p149 = por %p147, %p148
      %p150 = scmp.ne.s32.totalorder %s138, %s139
      %p151 = scmp.eq.s32.totalorder %s24, 1
      %p152 = por %p150, %p151
      %p154 = scmp.ne.s32.totalorder %s139, %s153
      %p155 = scmp.eq.s32.totalorder %s24, 0
      %p156 = por %p154, %p155
      %s158 = sadd.s32 %s157, 1
      %p161 = scmp.eq.s32.totalorder %s18, 1
      %p162 = scmp.ne.s32.totalorder %s157, %s159
      %p163 = scmp.eq.s32.totalorder %s18, 0
      %p164 = por %p162, %p163
      %p165 = scmp.ne.s32.totalorder %s157, %s159
      %p166 = scmp.eq.s32.totalorder %s23, 1
      %p167 = por %p165, %p166
      %p168 = scmp.ne.s32.totalorder %s159, %s160
      %p169 = scmp.eq.s32.totalorder %s23, 0
      %p170 = por %p168, %p169
      %p171 = scmp.ne.s32.totalorder %s159, %s160
      %p172 = scmp.eq.s32.totalorder %s24, 1
      %p173 = por %p171, %p172
      %p175 = scmp.ne.s32.totalorder %s160, %s174
      %p176 = scmp.eq.s32.totalorder %s24, 0
      %p177 = por %p175, %p176
      %s179 = sadd.s32 %s178, 1
      %p182 = scmp.eq.s32.totalorder %s18, 1
      %p183 = scmp.ne.s32.totalorder %s178, %s180
      %p184 = scmp.eq.s32.totalorder %s18, 0
      %p185 = por %p183, %p184
      %p186 = scmp.ne.s32.totalorder %s178, %s180
      %p187 = scmp.eq.s32.totalorder %s23, 1
      %p188 = por %p186, %p187
      %p189 = scmp.ne.s32.totalorder %s180, %s181
      %p190 = scmp.eq.s32.totalorder %s23, 0
      %p191 = por %p189, %p190
      %p192 = scmp.ne.s32.totalorder %s180, %s181
      %p193 = scmp.eq.s32.totalorder %s24, 1
      %p194 = por %p192, %p193
      %p196 = scmp.ne.s32.totalorder %s181, %s195
      %p197 = scmp.eq.s32.totalorder %s24, 0
      %p198 = por %p196, %p197
      %s200 = sadd.s32 %s199, 1
      %p203 = scmp.eq.s32.totalorder %s18, 1
      %p204 = scmp.ne.s32.totalorder %s199, %s201
      %p205 = scmp.eq.s32.totalorder %s18, 0
      %p206 = por %p204, %p205
      %p207 = scmp.ne.s32.totalorder %s199, %s201
      %p208 = scmp.eq.s32.totalorder %s23, 1
      %p209 = por %p207, %p208
      %p210 = scmp.ne.s32.totalorder %s201, %s202
      %p211 = scmp.eq.s32.totalorder %s23, 0
      %p212 = por %p210, %p211
      %p213 = scmp.ne.s32.totalorder %s201, %s202
      %p214 = scmp.eq.s32.totalorder %s24, 1
      %p215 = por %p213, %p214
      %p217 = scmp.ne.s32.totalorder %s202, %s216
      %p218 = scmp.eq.s32.totalorder %s24, 0
      %p219 = por %p217, %p218
      %s220 = ssub.s32 %s18, %s25
      %p221 = scmp.eq.s32.totalorder %s220, 0
      %s223 = sadd.s32 %s222, 1
      %s224 = scalar_select %p221, %s222, %s223
      %p227 = pneg %p221
      %p228 = scmp.eq.s32.totalorder %s18, 1
      %p229 = por %p227, %p228
      %p230 = scmp.ne.s32.totalorder %s222, %s225
      %p231 = scmp.eq.s32.totalorder %s18, 0
      %p232 = por %p230, %p231
      %p233 = scmp.ne.s32.totalorder %s222, %s225
      %p234 = scmp.eq.s32.totalorder %s23, 1
      %p235 = por %p233, %p234
      %p236 = scmp.ne.s32.totalorder %s225, %s226
      %p237 = scmp.eq.s32.totalorder %s23, 0
      %p238 = por %p236, %p237
      %p239 = scmp.ne.s32.totalorder %s225, %s226
      %p240 = scmp.eq.s32.totalorder %s24, 1
      %p241 = por %p239, %p240
      %p243 = scmp.ne.s32.totalorder %s226, %s242
      %p244 = scmp.eq.s32.totalorder %s24, 0
      %p245 = por %p243, %p244
      %p246 = scmp.le.s32.totalorder 1, %s18
      %p247 = scmp.lt.s32.totalorder %s18, 3
      %p248 = pnand %p246, %p247
      %p249 = pneg %p248
      // Predicated region
      $region9: #{image_classifier_forward.1} parent=5 // pred_check
        _
      $region10: #{image_classifier_forward.1} parent=5 // pred_check_branch
        %251 = sbr.rel (%p248) target = $region12
      $region11: #{image_classifier_forward.1} parent=5 // pred_region
        %s252 = ssub.s32 %s18, 1
        // Predicated region
        $region13: #{image_classifier_forward.1} parent=11 // pred_check
          %p253 = pneg %p65
        $region14: #{image_classifier_forward.1} parent=11 // pred_check_branch
          %255 = sbr.rel (%p253) target = $region16
        $region15: #{image_classifier_forward.1} parent=11 // pred_region
          _
        $region16: #{image_classifier_forward.1} parent=11 // pred_fallthru
          _
        // Predicated region
        $region17: #{image_classifier_forward.1} parent=11 // pred_check
          %p256 = pneg %p86
        $region18: #{image_classifier_forward.1} parent=11 // pred_check_branch
          %258 = sbr.rel (%p256) target = $region20
        $region19: #{image_classifier_forward.1} parent=11 // pred_region
          _
        $region20: #{image_classifier_forward.1} parent=11 // pred_fallthru
          _
        // Predicated region
        $region21: #{image_classifier_forward.1} parent=11 // pred_check
          %p259 = pneg %p107
        $region22: #{image_classifier_forward.1} parent=11 // pred_check_branch
          %261 = sbr.rel (%p259) target = $region24
        $region23: #{image_classifier_forward.1} parent=11 // pred_region
          _
        $region24: #{image_classifier_forward.1} parent=11 // pred_fallthru
          _
        // Predicated region
        $region25: #{image_classifier_forward.1} parent=11 // pred_check
          %p262 = pneg %p128
        $region26: #{image_classifier_forward.1} parent=11 // pred_check_branch
          %264 = sbr.rel (%p262) target = $region28
        $region27: #{image_classifier_forward.1} parent=11 // pred_region
          _
        $region28: #{image_classifier_forward.1} parent=11 // pred_fallthru
          _
        // Predicated region
        $region29: #{image_classifier_forward.1} parent=11 // pred_check
          %p265 = pneg %p149
        $region30: #{image_classifier_forward.1} parent=11 // pred_check_branch
          %267 = sbr.rel (%p265) target = $region32
        $region31: #{image_classifier_forward.1} parent=11 // pred_region
          _
        $region32: #{image_classifier_forward.1} parent=11 // pred_fallthru
          _
        // Predicated region
        $region33: #{image_classifier_forward.1} parent=11 // pred_check
          %p268 = pneg %p170
        $region34: #{image_classifier_forward.1} parent=11 // pred_check_branch
          %270 = sbr.rel (%p268) target = $region36
        $region35: #{image_classifier_forward.1} parent=11 // pred_region
          _
        $region36: #{image_classifier_forward.1} parent=11 // pred_fallthru
          _
        // Predicated region
        $region37: #{image_classifier_forward.1} parent=11 // pred_check
          %p271 = pneg %p191
        $region38: #{image_classifier_forward.1} parent=11 // pred_check_branch
          %273 = sbr.rel (%p271) target = $region40
        $region39: #{image_classifier_forward.1} parent=11 // pred_region
          _
        $region40: #{image_classifier_forward.1} parent=11 // pred_fallthru
          _
        // Predicated region
        $region41: #{image_classifier_forward.1} parent=11 // pred_check
          %p274 = pneg %p212
        $region42: #{image_classifier_forward.1} parent=11 // pred_check_branch
          %276 = sbr.rel (%p274) target = $region44
        $region43: #{image_classifier_forward.1} parent=11 // pred_region
          _
        $region44: #{image_classifier_forward.1} parent=11 // pred_fallthru
          _
      $region12: #{image_classifier_forward.1} parent=5 // pred_fallthru
        _
      %p277 = scmp.lt.s32.totalorder %s18, 2
      // Predicated region
      $region45: #{image_classifier_forward.1} parent=5 // pred_check
        %p278 = pneg %p277
      $region46: #{image_classifier_forward.1} parent=5 // pred_check_branch
        %280 = sbr.rel (%p278) target = $region48
      $region47: #{image_classifier_forward.1} parent=5 // pred_region
        // Predicated region
        $region49: #{image_classifier_forward.1} parent=47 // pred_check
          %p281 = pneg %p38
        $region50: #{image_classifier_forward.1} parent=47 // pred_check_branch
          %283 = sbr.rel (%p281) target = $region52
        $region51: #{image_classifier_forward.1} parent=47 // pred_region
          %p284 = scmp.lt.s32.totalorder %s18, 1
          %s285 = scalar_select %p284, %s18, 1
          %s286 = smul.addr %s285, 54
          %s287 = smul.addr %s286, 4
          %s288 = scalar_lea.vmem %s0, %s287
        $region52: #{image_classifier_forward.1} parent=47 // pred_fallthru
          _
      $region48: #{image_classifier_forward.1} parent=5 // pred_fallthru
        _
      %p289 = scmp.le.s32.totalorder 1, %s18
      %p290 = scmp.lt.s32.totalorder %s18, 3
      %p291 = pnand %p289, %p290
      %p292 = pneg %p291
      // Predicated region
      $region53: #{image_classifier_forward.1} parent=5 // pred_check
        _
      $region54: #{image_classifier_forward.1} parent=5 // pred_check_branch
        %294 = sbr.rel (%p291) target = $region56
      $region55: #{image_classifier_forward.1} parent=5 // pred_region
        %s295 = ssub.s32 %s18, 1
        %p296 = scmp.lt.s32.totalorder %s23, 1
        %s297 = scalar_select %p296, %s23, 1
        %s298 = smul.addr %s297, 54
        %s299 = smul.addr %s298, 4
        %s300 = scalar_lea.vmem %s0, %s299
        %p301 = pneg %p44
        %p302 = pneg %p41
        %p303 = pneg %p65
        %p304 = pneg %p62
        %p305 = pneg %p86
        %p306 = pneg %p83
        %p307 = pneg %p107
        %p308 = pneg %p104
        %p309 = pneg %p128
        %p310 = pneg %p125
        %p311 = pneg %p149
        %p312 = pneg %p146
        %p313 = pneg %p170
        %p314 = pneg %p167
        %p315 = pneg %p191
        %p316 = pneg %p188
        %p317 = pneg %p212
        %p318 = pneg %p209
        %p319 = pneg %p238
        %p320 = pneg %p235
        %s321 = sand.u32 %s225, 1
        %s322 = scalar_lea.sflag [#allocation3], %s321
        %s323 = sand.u32 %s225, 1
        %s324 = scalar_lea.vmem [#allocation2], %s323
        %p325 = scmp.lt.s32.totalorder %s23, 1
        %s326 = scalar_select %p325, %s23, 1
        %s327 = smul.addr %s326, 54
        %s328 = smul.addr %s327, 4
        %s329 = scalar_lea.vmem %s0, %s328
        %v331 = vld [vmem:[%s329] sm:$0xf]
        %v332 = vld [vmem:[%s329 + $0x4] sm:$0xf]
        %v333 = vld [vmem:[%s329 + $0xc] sm:$0xf]
        %v334 = vld [vmem:[%s329 + $0x10] sm:$0xf]
        %v335 = vld [vmem:[%s329 + $0x18] sm:$0xf]
        %v336 = vld [vmem:[%s329 + $0x1c] sm:$0xf]
        %v337 = vld [vmem:[%s329 + $0x24] sm:$0xf]
        %v338 = vld [vmem:[%s329 + $0x28] sm:$0xf]
        %v339 = vld [vmem:[%s329 + $0x30] sm:$0xf]
        %v340 = vld [vmem:[%s329 + $0x34] sm:$0xf]
        %v341 = vld [vmem:[%s329 + $0x3c] sm:$0xf]
        %v342 = vld [vmem:[%s329 + $0x40] sm:$0xf]
        %v343 = vld [vmem:[%s329 + $0x48] sm:$0xf]
        %v344 = vld [vmem:[%s329 + $0x4c] sm:$0xf]
        %v345 = vld [vmem:[%s329 + $0x54] sm:$0xf]
        %v346 = vld [vmem:[%s329 + $0x58] sm:$0xf]
        %v347 = vld [vmem:[%s329 + $0x60] sm:$0xf]
        %v348 = vld [vmem:[%s329 + $0x64] sm:$0xf]
        %v349 = vld [vmem:[%s329 + $0x6c] sm:$0xf]
        %v350 = vld [vmem:[%s329 + $0x70] sm:$0xf]
        %v351 = vld [vmem:[%s329 + $0x78] sm:$0xf]
        %v352 = vld [vmem:[%s329 + $0x7c] sm:$0xf]
        %v353 = vld [vmem:[%s329 + $0x84] sm:$0xf]
        %v354 = vld [vmem:[%s329 + $0x88] sm:$0xf]
        %v355 = vld [vmem:[%s329 + $0x90] sm:$0xf]
        %v356 = vld [vmem:[%s329 + $0x94] sm:$0xf]
        %v357 = vld [vmem:[%s329 + $0x9c] sm:$0xf]
        %v358 = vld [vmem:[%s329 + $0xa0] sm:$0xf]
        %v359 = vld [vmem:[%s329 + $0xa8] sm:$0xf]
        %v360 = vld [vmem:[%s329 + $0xac] sm:$0xf]
        %v361 = vld [vmem:[%s329 + $0xb4] sm:$0xf]
        %v362 = vld [vmem:[%s329 + $0xb8] sm:$0xf]
        %v363 = vld [vmem:[%s1] sm:$0x3]
        %v364 = vld [vmem:[%s329 + $0x8] sm:$0x1]
        %v365 = vld [vmem:[%s329 + $0x14] sm:$0x1]
        %v366 = vld [vmem:[%s329 + $0x20] sm:$0x1]
        %v367 = vld [vmem:[%s329 + $0x2c] sm:$0x1]
        %v368 = vld [vmem:[%s329 + $0x38] sm:$0x1]
        %v369 = vld [vmem:[%s329 + $0x44] sm:$0x1]
        %v370 = vld [vmem:[%s329 + $0x50] sm:$0x1]
        %v371 = vld [vmem:[%s329 + $0x5c] sm:$0x1]
        %v372 = vld [vmem:[%s329 + $0x68] sm:$0x1]
        %v373 = vld [vmem:[%s329 + $0x74] sm:$0x1]
        %v374 = vld [vmem:[%s329 + $0x80] sm:$0x1]
        %v375 = vld [vmem:[%s329 + $0x8c] sm:$0x1]
        %v376 = vld [vmem:[%s329 + $0x98] sm:$0x1]
        %v377 = vld [vmem:[%s329 + $0xa4] sm:$0x1]
        %v378 = vld [vmem:[%s329 + $0xb0] sm:$0x1]
        %v379 = vld [vmem:[%s329 + $0xbc] sm:$0x1]
        %vm380 = vsmask.f32 3328
        %vm381 = vsmask.f32 7440
        %vm382 = vmor %vm380, %vm381
        %v384 = vshrl.u32 %v331, 16
        %v386 = vrot.slane %v384, 4
        %v387 = vshll.u32 %v331, 16
        %v389 = vrot.slane %v387, 5
        %v390 = vor.u32 %v386, %v389
        %v391 = vrot.slane %v390, 4
        %v393 = vshll.u32 %v332, 16
        %v395 = vrot.slane %v393, 5
        %v396 = vsel %vm382, %v391, %v395
        %v397 = vshrl.u32 %v332, 16
        %v399 = vrot.slane %v397, 4
        %v400 = vor.u32 %v399, %v395
        %v401 = vrot.slane %v400, 4
        %v403 = vshll.u32 %v364, 16
        %v405 = vrot.slane %v403, 5
        %v406 = vsel %vm382, %v401, %v405
        %v408 = vshrl.u32 %v333, 16
        %v410 = vrot.slane %v408, 4
        %v411 = vshll.u32 %v333, 16
        %v413 = vrot.slane %v411, 5
        %v414 = vor.u32 %v410, %v413
        %v415 = vrot.slane %v414, 4
        %v417 = vshll.u32 %v334, 16
        %v419 = vrot.slane %v417, 5
        %v420 = vsel %vm382, %v415, %v419
        %v421 = vshrl.u32 %v334, 16
        %v423 = vrot.slane %v421, 4
        %v424 = vor.u32 %v423, %v419
        %v425 = vrot.slane %v424, 4
        %v427 = vshll.u32 %v365, 16
        %v429 = vrot.slane %v427, 5
        %v430 = vsel %vm382, %v425, %v429
        %v432 = vshrl.u32 %v335, 16
        %v434 = vrot.slane %v432, 4
        %v435 = vshll.u32 %v335, 16
        %v437 = vrot.slane %v435, 5
        %v438 = vor.u32 %v434, %v437
        %v439 = vrot.slane %v438, 4
        %v441 = vshll.u32 %v336, 16
        %v443 = vrot.slane %v441, 5
        %v444 = vsel %vm382, %v439, %v443
        %v445 = vshrl.u32 %v336, 16
        %v447 = vrot.slane %v445, 4
        %v448 = vor.u32 %v447, %v443
        %v449 = vrot.slane %v448, 4
        %v451 = vshll.u32 %v366, 16
        %v453 = vrot.slane %v451, 5
        %v454 = vsel %vm382, %v449, %v453
        %v456 = vshrl.u32 %v337, 16
        %v458 = vrot.slane %v456, 4
        %v459 = vshll.u32 %v337, 16
        %v461 = vrot.slane %v459, 5
        %v462 = vor.u32 %v458, %v461
        %v463 = vrot.slane %v462, 4
        %v465 = vshll.u32 %v338, 16
        %v467 = vrot.slane %v465, 5
        %v468 = vsel %vm382, %v463, %v467
        %v469 = vshrl.u32 %v338, 16
        %v471 = vrot.slane %v469, 4
        %v472 = vor.u32 %v471, %v467
        %v473 = vrot.slane %v472, 4
        %v475 = vshll.u32 %v367, 16
        %v477 = vrot.slane %v475, 5
        %v478 = vsel %vm382, %v473, %v477
        %v480 = vshrl.u32 %v339, 16
        %v482 = vrot.slane %v480, 4
        %v483 = vshll.u32 %v339, 16
        %v485 = vrot.slane %v483, 5
        %v486 = vor.u32 %v482, %v485
        %v487 = vrot.slane %v486, 4
        %v489 = vshll.u32 %v340, 16
        %v491 = vrot.slane %v489, 5
        %v492 = vsel %vm382, %v487, %v491
        %v493 = vshrl.u32 %v340, 16
        %v495 = vrot.slane %v493, 4
        %v496 = vor.u32 %v495, %v491
        %v497 = vrot.slane %v496, 4
        %v499 = vshll.u32 %v368, 16
        %v501 = vrot.slane %v499, 5
        %v502 = vsel %vm382, %v497, %v501
        %v504 = vshrl.u32 %v341, 16
        %v506 = vrot.slane %v504, 4
        %v507 = vshll.u32 %v341, 16
        %v509 = vrot.slane %v507, 5
        %v510 = vor.u32 %v506, %v509
        %v511 = vrot.slane %v510, 4
        %v513 = vshll.u32 %v342, 16
        %v515 = vrot.slane %v513, 5
        %v516 = vsel %vm382, %v511, %v515
        %v517 = vshrl.u32 %v342, 16
        %v519 = vrot.slane %v517, 4
        %v520 = vor.u32 %v519, %v515
        %v521 = vrot.slane %v520, 4
        %v523 = vshll.u32 %v369, 16
        %v525 = vrot.slane %v523, 5
        %v526 = vsel %vm382, %v521, %v525
        %v528 = vshrl.u32 %v343, 16
        %v530 = vrot.slane %v528, 4
        %v531 = vshll.u32 %v343, 16
        %v533 = vrot.slane %v531, 5
        %v534 = vor.u32 %v530, %v533
        %v535 = vrot.slane %v534, 4
        %v537 = vshll.u32 %v344, 16
        %v539 = vrot.slane %v537, 5
        %v540 = vsel %vm382, %v535, %v539
        %v541 = vshrl.u32 %v344, 16
        %v543 = vrot.slane %v541, 4
        %v544 = vor.u32 %v543, %v539
        %v545 = vrot.slane %v544, 4
        %v547 = vshll.u32 %v370, 16
        %v549 = vrot.slane %v547, 5
        %v550 = vsel %vm382, %v545, %v549
        %v552 = vshrl.u32 %v345, 16
        %v554 = vrot.slane %v552, 4
        %v555 = vshll.u32 %v345, 16
        %v557 = vrot.slane %v555, 5
        %v558 = vor.u32 %v554, %v557
        %v559 = vrot.slane %v558, 4
        %v561 = vshll.u32 %v346, 16
        %v563 = vrot.slane %v561, 5
        %v564 = vsel %vm382, %v559, %v563
        %v565 = vshrl.u32 %v346, 16
        %v567 = vrot.slane %v565, 4
        %v568 = vor.u32 %v567, %v563
        %v569 = vrot.slane %v568, 4
        %v571 = vshll.u32 %v371, 16
        %v573 = vrot.slane %v571, 5
        %v574 = vsel %vm382, %v569, %v573
        %v576 = vshrl.u32 %v347, 16
        %v578 = vrot.slane %v576, 4
        %v579 = vshll.u32 %v347, 16
        %v581 = vrot.slane %v579, 5
        %v582 = vor.u32 %v578, %v581
        %v583 = vrot.slane %v582, 4
        %v585 = vshll.u32 %v348, 16
        %v587 = vrot.slane %v585, 5
        %v588 = vsel %vm382, %v583, %v587
        %v589 = vshrl.u32 %v348, 16
        %v591 = vrot.slane %v589, 4
        %v592 = vor.u32 %v591, %v587
        %v593 = vrot.slane %v592, 4
        %v595 = vshll.u32 %v372, 16
        %v597 = vrot.slane %v595, 5
        %v598 = vsel %vm382, %v593, %v597
        %v600 = vshrl.u32 %v349, 16
        %v602 = vrot.slane %v600, 4
        %v603 = vshll.u32 %v349, 16
        %v605 = vrot.slane %v603, 5
        %v606 = vor.u32 %v602, %v605
        %v607 = vrot.slane %v606, 4
        %v609 = vshll.u32 %v350, 16
        %v611 = vrot.slane %v609, 5
        %v612 = vsel %vm382, %v607, %v611
        %v613 = vshrl.u32 %v350, 16
        %v615 = vrot.slane %v613, 4
        %v616 = vor.u32 %v615, %v611
        %v617 = vrot.slane %v616, 4
        %v619 = vshll.u32 %v373, 16
        %v621 = vrot.slane %v619, 5
        %v622 = vsel %vm382, %v617, %v621
        %v624 = vshrl.u32 %v351, 16
        %v626 = vrot.slane %v624, 4
        %v627 = vshll.u32 %v351, 16
        %v629 = vrot.slane %v627, 5
        %v630 = vor.u32 %v626, %v629
        %v631 = vrot.slane %v630, 4
        %v633 = vshll.u32 %v352, 16
        %v635 = vrot.slane %v633, 5
        %v636 = vsel %vm382, %v631, %v635
        %v637 = vshrl.u32 %v352, 16
        %v639 = vrot.slane %v637, 4
        %v640 = vor.u32 %v639, %v635
        %v641 = vrot.slane %v640, 4
        %v643 = vshll.u32 %v374, 16
        %v645 = vrot.slane %v643, 5
        %v646 = vsel %vm382, %v641, %v645
        %v648 = vshrl.u32 %v353, 16
        %v650 = vrot.slane %v648, 4
        %v651 = vshll.u32 %v353, 16
        %v653 = vrot.slane %v651, 5
        %v654 = vor.u32 %v650, %v653
        %v655 = vrot.slane %v654, 4
        %v657 = vshll.u32 %v354, 16
        %v659 = vrot.slane %v657, 5
        %v660 = vsel %vm382, %v655, %v659
        %v661 = vshrl.u32 %v354, 16
        %v663 = vrot.slane %v661, 4
        %v664 = vor.u32 %v663, %v659
        %v665 = vrot.slane %v664, 4
        %v667 = vshll.u32 %v375, 16
        %v669 = vrot.slane %v667, 5
        %v670 = vsel %vm382, %v665, %v669
        %v672 = vshrl.u32 %v355, 16
        %v674 = vrot.slane %v672, 4
        %v675 = vshll.u32 %v355, 16
        %v677 = vrot.slane %v675, 5
        %v678 = vor.u32 %v674, %v677
        %v679 = vrot.slane %v678, 4
        %v681 = vshll.u32 %v356, 16
        %v683 = vrot.slane %v681, 5
        %v684 = vsel %vm382, %v679, %v683
        %v685 = vshrl.u32 %v356, 16
        %v687 = vrot.slane %v685, 4
        %v688 = vor.u32 %v687, %v683
        %v689 = vrot.slane %v688, 4
        %v691 = vshll.u32 %v376, 16
        %v693 = vrot.slane %v691, 5
        %v694 = vsel %vm382, %v689, %v693
        %v696 = vshrl.u32 %v357, 16
        %v698 = vrot.slane %v696, 4
        %v699 = vshll.u32 %v357, 16
        %v701 = vrot.slane %v699, 5
        %v702 = vor.u32 %v698, %v701
        %v703 = vrot.slane %v702, 4
        %v705 = vshll.u32 %v358, 16
        %v707 = vrot.slane %v705, 5
        %v708 = vsel %vm382, %v703, %v707
        %v709 = vshrl.u32 %v358, 16
        %v711 = vrot.slane %v709, 4
        %v712 = vor.u32 %v711, %v707
        %v713 = vrot.slane %v712, 4
        %v715 = vshll.u32 %v377, 16
        %v717 = vrot.slane %v715, 5
        %v718 = vsel %vm382, %v713, %v717
        %v720 = vshrl.u32 %v359, 16
        %v722 = vrot.slane %v720, 4
        %v723 = vshll.u32 %v359, 16
        %v725 = vrot.slane %v723, 5
        %v726 = vor.u32 %v722, %v725
        %v727 = vrot.slane %v726, 4
        %v729 = vshll.u32 %v360, 16
        %v731 = vrot.slane %v729, 5
        %v732 = vsel %vm382, %v727, %v731
        %v733 = vshrl.u32 %v360, 16
        %v735 = vrot.slane %v733, 4
        %v736 = vor.u32 %v735, %v731
        %v737 = vrot.slane %v736, 4
        %v739 = vshll.u32 %v378, 16
        %v741 = vrot.slane %v739, 5
        %v742 = vsel %vm382, %v737, %v741
        %v744 = vshrl.u32 %v361, 16
        %v746 = vrot.slane %v744, 4
        %v747 = vshll.u32 %v361, 16
        %v749 = vrot.slane %v747, 5
        %v750 = vor.u32 %v746, %v749
        %v751 = vrot.slane %v750, 4
        %v753 = vshll.u32 %v362, 16
        %v755 = vrot.slane %v753, 5
        %v756 = vsel %vm382, %v751, %v755
        %v757 = vshrl.u32 %v362, 16
        %v759 = vrot.slane %v757, 4
        %v760 = vor.u32 %v759, %v755
        %v761 = vrot.slane %v760, 4
        %v763 = vshll.u32 %v379, 16
        %v765 = vrot.slane %v763, 5
        %v766 = vsel %vm382, %v761, %v765
        %s767 = scalar_lea.vmem %s1, 2
        %v768 = vld [vmem:[%s767] sm:$0x3]
        %v769 = vunpack.c.l.b16 %v396
        %v770 = vunpack.c.l.b16 %v406
        %v771 = vunpack.c.l.b16 %v420
        %v772 = vunpack.c.l.b16 %v430
        %v773 = vunpack.c.l.b16 %v444
        %v774 = vunpack.c.l.b16 %v454
        %v775 = vunpack.c.l.b16 %v468
        %v776 = vunpack.c.l.b16 %v478
        %v777 = vunpack.c.l.b16 %v492
        %v778 = vunpack.c.l.b16 %v502
        %v779 = vunpack.c.l.b16 %v516
        %v780 = vunpack.c.l.b16 %v526
        %v781 = vunpack.c.l.b16 %v540
        %v782 = vunpack.c.l.b16 %v550
        %v783 = vunpack.c.l.b16 %v564
        %v784 = vunpack.c.l.b16 %v574
        %v785 = vunpack.c.l.b16 %v588
        %v786 = vunpack.c.l.b16 %v598
        %v787 = vunpack.c.l.b16 %v612
        %v788 = vunpack.c.l.b16 %v622
        %v789 = vunpack.c.l.b16 %v636
        %v790 = vunpack.c.l.b16 %v646
        %v791 = vunpack.c.l.b16 %v660
        %v792 = vunpack.c.l.b16 %v670
        %v793 = vunpack.c.l.b16 %v684
        %v794 = vunpack.c.l.b16 %v694
        %v795 = vunpack.c.l.b16 %v708
        %v796 = vunpack.c.l.b16 %v718
        %v797 = vunpack.c.l.b16 %v732
        %v798 = vunpack.c.l.b16 %v742
        %v799 = vunpack.c.l.b16 %v756
        %v800 = vunpack.c.l.b16 %v766
        %v801 = vpack.c.b16 %v770, %v769
        %v802 = vpack.c.b16 %v772, %v771
        %v803 = vpack.c.b16 %v774, %v773
        %v804 = vpack.c.b16 %v776, %v775
        %v805 = vpack.c.b16 %v778, %v777
        %v806 = vpack.c.b16 %v780, %v779
        %v807 = vpack.c.b16 %v782, %v781
        %v808 = vpack.c.b16 %v784, %v783
        %v809 = vpack.c.b16 %v786, %v785
        %v810 = vpack.c.b16 %v788, %v787
        %v811 = vpack.c.b16 %v790, %v789
        %v812 = vpack.c.b16 %v792, %v791
        %v813 = vpack.c.b16 %v794, %v793
        %v814 = vpack.c.b16 %v796, %v795
        %v815 = vpack.c.b16 %v798, %v797
        %v816 = vpack.c.b16 %v800, %v799
        %vm817 = vcmask 31744
        %v819 = vsel %vm817, %v801, 0
        %v822 = vsel %vm817, %v802, 0
        %v825 = vsel %vm817, %v803, 0
        %v828 = vsel %vm817, %v804, 0
        %v831 = vsel %vm817, %v805, 0
        %v834 = vsel %vm817, %v806, 0
        %v837 = vsel %vm817, %v807, 0
        %v840 = vsel %vm817, %v808, 0
        %v843 = vsel %vm817, %v809, 0
        %v846 = vsel %vm817, %v810, 0
        %v849 = vsel %vm817, %v811, 0
        %v852 = vsel %vm817, %v812, 0
        %v855 = vsel %vm817, %v813, 0
        %v858 = vsel %vm817, %v814, 0
        %v861 = vsel %vm817, %v815, 0
        %v864 = vsel %vm817, %v816, 0
        %vm866 = vcmask 1041408
        %v868 = vsel %vm866, %v768, 0
        %870 = vmatprep.subr.bf16.mxu0 0
        %871 = vmatpush1.bf16.msra.mxu0 %v868
        %872 = vmatprep.subr.bf16.mxu0 0
        %873 = vmatpush1.bf16.msra.mxu0 0
        %874 = vmatprep.subr.bf16.mxu0 0
        %875 = vmatpush1.bf16.msra.mxu0 0
        %876 = vmatprep.subr.bf16.mxu0 0
        %877 = vmatpush1.bf16.msra.mxu0 0
        %878 = vmatprep.subr.bf16.mxu0 0
        %879 = vmatpush1.bf16.msra.mxu0 0
        %880 = vmatprep.subr.bf16.mxu0 0
        %881 = vmatpush1.bf16.msra.mxu0 0
        %882 = vmatprep.subr.bf16.mxu0 0
        %883 = vmatpush1.bf16.msra.mxu0 0
        %884 = vmatprep.subr.bf16.mxu0 0
        %885 = vmatpush1.bf16.msra.mxu0 0
        %886 = vmatprep.subr.bf16.mxu0 0
        %887 = vmatpush1.bf16.msra.mxu0 0
        %888 = vmatprep.subr.bf16.mxu0 0
        %889 = vmatpush1.bf16.msra.mxu0 0
        %890 = vmatprep.subr.bf16.mxu0 0
        %891 = vmatpush1.bf16.msra.mxu0 0
        %892 = vmatprep.subr.bf16.mxu0 0
        %893 = vmatpush1.bf16.msra.mxu0 0
        %894 = vmatprep.subr.bf16.mxu0 0
        %895 = vmatpush1.bf16.msra.mxu0 0
        %896 = vmatprep.subr.bf16.mxu0 0
        %897 = vmatpush1.bf16.msra.mxu0 0
        %898 = vmatprep.subr.bf16.mxu0 0
        %899 = vmatpush1.bf16.msra.mxu0 0
        %900 = vmatprep.subr.bf16.mxu0 0
        %901 = vmatpush1.bf16.msra.mxu0 0
        %902 = vmatprep.mubr.bf16.mxu0 0
        %903 = vmatmul.mubr.bf16.gmra.mrb[0].mxu0 %v819
        %v904 = vpop.f32.mrb[0].mxu0
        %v905 = vadd.f32 0.0, %v904
        %v906 = vpop.f32.mrb[0].mxu0
        %v907 = vpop.f32.mrb[0].mxu0
        %v908 = vadd.f32 0.0, %v907
        %v909 = vpop.f32.mrb[0].mxu0
        %910 = vmatprep.mubr.bf16.mxu0 0
        %911 = vmatmul.mubr.bf16.gmra.mrb[0].mxu0 %v822
        %v912 = vpop.f32.mrb[0].mxu0
        %v913 = vadd.f32 0.0, %v912
        %v914 = vpop.f32.mrb[0].mxu0
        %v915 = vpop.f32.mrb[0].mxu0
        %v916 = vadd.f32 0.0, %v915
        %v917 = vpop.f32.mrb[0].mxu0
        %918 = vmatprep.mubr.bf16.mxu0 0
        %919 = vmatmul.mubr.bf16.gmra.mrb[0].mxu0 %v825
        %v920 = vpop.f32.mrb[0].mxu0
        %v921 = vadd.f32 0.0, %v920
        %v922 = vpop.f32.mrb[0].mxu0
        %v923 = vpop.f32.mrb[0].mxu0
        %v924 = vadd.f32 0.0, %v923
        %v925 = vpop.f32.mrb[0].mxu0
        %926 = vmatprep.mubr.bf16.mxu0 0
        %927 = vmatmul.mubr.bf16.gmra.mrb[0].mxu0 %v828
        %v928 = vpop.f32.mrb[0].mxu0
        %v929 = vadd.f32 0.0, %v928
        %v930 = vpop.f32.mrb[0].mxu0
        %v931 = vpop.f32.mrb[0].mxu0
        %v932 = vadd.f32 0.0, %v931
        %v933 = vpop.f32.mrb[0].mxu0
        %934 = vmatprep.mubr.bf16.mxu0 0
        %935 = vmatmul.mubr.bf16.gmra.mrb[0].mxu0 %v831
        %v936 = vpop.f32.mrb[0].mxu0
        %v937 = vadd.f32 0.0, %v936
        %v938 = vpop.f32.mrb[0].mxu0
        %v939 = vpop.f32.mrb[0].mxu0
        %v940 = vadd.f32 0.0, %v939
        %v941 = vpop.f32.mrb[0].mxu0
        %942 = vmatprep.mubr.bf16.mxu0 0
        %943 = vmatmul.mubr.bf16.gmra.mrb[0].mxu0 %v834
        %v944 = vpop.f32.mrb[0].mxu0
        %v945 = vadd.f32 0.0, %v944
        %v946 = vpop.f32.mrb[0].mxu0
        %v947 = vpop.f32.mrb[0].mxu0
        %v948 = vadd.f32 0.0, %v947
        %v949 = vpop.f32.mrb[0].mxu0
        %950 = vmatprep.mubr.bf16.mxu0 0
        %951 = vmatmul.mubr.bf16.gmra.mrb[0].mxu0 %v837
        %v952 = vpop.f32.mrb[0].mxu0
        %v953 = vadd.f32 0.0, %v952
        %v954 = vpop.f32.mrb[0].mxu0
        %v955 = vpop.f32.mrb[0].mxu0
        %v956 = vadd.f32 0.0, %v955
        %v957 = vpop.f32.mrb[0].mxu0
        %958 = vmatprep.mubr.bf16.mxu0 0
        %959 = vmatmul.mubr.bf16.gmra.mrb[0].mxu0 %v840
        %v960 = vpop.f32.mrb[0].mxu0
        %v961 = vadd.f32 0.0, %v960
        %v962 = vpop.f32.mrb[0].mxu0
        %v963 = vpop.f32.mrb[0].mxu0
        %v964 = vadd.f32 0.0, %v963
        %v965 = vpop.f32.mrb[0].mxu0
        %966 = vmatprep.mubr.bf16.mxu0 0
        %967 = vmatmul.mubr.bf16.gmra.mrb[0].mxu0 %v843
        %v968 = vpop.f32.mrb[0].mxu0
        %v969 = vadd.f32 0.0, %v968
        %v970 = vpop.f32.mrb[0].mxu0
        %v971 = vpop.f32.mrb[0].mxu0
        %v972 = vadd.f32 0.0, %v971
        %v973 = vpop.f32.mrb[0].mxu0
        %974 = vmatprep.mubr.bf16.mxu0 0
        %975 = vmatmul.mubr.bf16.gmra.mrb[0].mxu0 %v846
        %v976 = vpop.f32.mrb[0].mxu0
        %v977 = vadd.f32 0.0, %v976
        %v978 = vpop.f32.mrb[0].mxu0
        %v979 = vpop.f32.mrb[0].mxu0
        %v980 = vadd.f32 0.0, %v979
        %v981 = vpop.f32.mrb[0].mxu0
        %982 = vmatprep.mubr.bf16.mxu0 0
        %983 = vmatmul.mubr.bf16.gmra.mrb[0].mxu0 %v849
        %v984 = vpop.f32.mrb[0].mxu0
        %v985 = vadd.f32 0.0, %v984
        %v986 = vpop.f32.mrb[0].mxu0
        %v987 = vpop.f32.mrb[0].mxu0
        %v988 = vadd.f32 0.0, %v987
        %v989 = vpop.f32.mrb[0].mxu0
        %990 = vmatprep.mubr.bf16.mxu0 0
        %991 = vmatmul.mubr.bf16.gmra.mrb[0].mxu0 %v852
        %v992 = vpop.f32.mrb[0].mxu0
        %v993 = vadd.f32 0.0, %v992
        %v994 = vpop.f32.mrb[0].mxu0
        %v995 = vpop.f32.mrb[0].mxu0
        %v996 = vadd.f32 0.0, %v995
        %v997 = vpop.f32.mrb[0].mxu0
        %998 = vmatprep.mubr.bf16.mxu0 0
        %999 = vmatmul.mubr.bf16.gmra.mrb[0].mxu0 %v855
        %v1000 = vpop.f32.mrb[0].mxu0
        %v1001 = vadd.f32 0.0, %v1000
        %v1002 = vpop.f32.mrb[0].mxu0
        %v1003 = vpop.f32.mrb[0].mxu0
        %v1004 = vadd.f32 0.0, %v1003
        %v1005 = vpop.f32.mrb[0].mxu0
        %1006 = vmatprep.mubr.bf16.mxu0 0
        %1007 = vmatmul.mubr.bf16.gmra.mrb[0].mxu0 %v858
        %v1008 = vpop.f32.mrb[0].mxu0
        %v1009 = vadd.f32 0.0, %v1008
        %v1010 = vpop.f32.mrb[0].mxu0
        %v1011 = vpop.f32.mrb[0].mxu0
        %v1012 = vadd.f32 0.0, %v1011
        %v1013 = vpop.f32.mrb[0].mxu0
        %1014 = vmatprep.mubr.bf16.mxu0 0
        %1015 = vmatmul.mubr.bf16.gmra.mrb[0].mxu0 %v861
        %v1016 = vpop.f32.mrb[0].mxu0
        %v1017 = vadd.f32 0.0, %v1016
        %v1018 = vpop.f32.mrb[0].mxu0
        %v1019 = vpop.f32.mrb[0].mxu0
        %v1020 = vadd.f32 0.0, %v1019
        %v1021 = vpop.f32.mrb[0].mxu0
        %1022 = vmatprep.mubr.bf16.mxu0 0
        %1023 = vmatmul.mubr.bf16.gmra.mrb[0].mxu0 %v864
        %v1024 = vpop.f32.mrb[0].mxu0
        %v1025 = vadd.f32 0.0, %v1024
        %v1026 = vpop.f32.mrb[0].mxu0
        %v1027 = vpop.f32.mrb[0].mxu0
        %v1028 = vadd.f32 0.0, %v1027
        %v1029 = vpop.f32.mrb[0].mxu0
        %1030 = vdwg.mxu0
        %v1063 = vunpack.c.l.b16 %v331
        %v1064 = vunpack.c.l.b16 %v332
        %v1065 = vunpack.c.l.b16 %v333
        %v1066 = vunpack.c.l.b16 %v334
        %v1067 = vunpack.c.l.b16 %v335
        %v1068 = vunpack.c.l.b16 %v336
        %v1069 = vunpack.c.l.b16 %v337
        %v1070 = vunpack.c.l.b16 %v338
        %v1071 = vunpack.c.l.b16 %v339
        %v1072 = vunpack.c.l.b16 %v340
        %v1073 = vunpack.c.l.b16 %v341
        %v1074 = vunpack.c.l.b16 %v342
        %v1075 = vunpack.c.l.b16 %v343
        %v1076 = vunpack.c.l.b16 %v344
        %v1077 = vunpack.c.l.b16 %v345
        %v1078 = vunpack.c.l.b16 %v346
        %v1079 = vunpack.c.l.b16 %v347
        %v1080 = vunpack.c.l.b16 %v348
        %v1081 = vunpack.c.l.b16 %v349
        %v1082 = vunpack.c.l.b16 %v350
        %v1083 = vunpack.c.l.b16 %v351
        %v1084 = vunpack.c.l.b16 %v352
        %v1085 = vunpack.c.l.b16 %v353
        %v1086 = vunpack.c.l.b16 %v354
        %v1087 = vunpack.c.l.b16 %v355
        %v1088 = vunpack.c.l.b16 %v356
        %v1089 = vunpack.c.l.b16 %v357
        %v1090 = vunpack.c.l.b16 %v358
        %v1091 = vunpack.c.l.b16 %v359
        %v1092 = vunpack.c.l.b16 %v360
        %v1093 = vunpack.c.l.b16 %v361
        %v1094 = vunpack.c.l.b16 %v362
        %v1095 = vpack.c.b16 %v1064, %v1063
        %v1096 = vpack.c.b16 %v1066, %v1065
        %v1097 = vpack.c.b16 %v1068, %v1067
        %v1098 = vpack.c.b16 %v1070, %v1069
        %v1099 = vpack.c.b16 %v1072, %v1071
        %v1100 = vpack.c.b16 %v1074, %v1073
        %v1101 = vpack.c.b16 %v1076, %v1075
        %v1102 = vpack.c.b16 %v1078, %v1077
        %v1103 = vpack.c.b16 %v1080, %v1079
        %v1104 = vpack.c.b16 %v1082, %v1081
        %v1105 = vpack.c.b16 %v1084, %v1083
        %v1106 = vpack.c.b16 %v1086, %v1085
        %v1107 = vpack.c.b16 %v1088, %v1087
        %v1108 = vpack.c.b16 %v1090, %v1089
        %v1109 = vpack.c.b16 %v1092, %v1091
        %v1110 = vpack.c.b16 %v1094, %v1093
        %v1112 = vsel %vm817, %v1095, 0
        %v1115 = vsel %vm817, %v1096, 0
        %v1118 = vsel %vm817, %v1097, 0
        %v1121 = vsel %vm817, %v1098, 0
        %v1124 = vsel %vm817, %v1099, 0
        %v1127 = vsel %vm817, %v1100, 0
        %v1130 = vsel %vm817, %v1101, 0
        %v1133 = vsel %vm817, %v1102, 0
        %v1136 = vsel %vm817, %v1103, 0
        %v1139 = vsel %vm817, %v1104, 0
        %v1142 = vsel %vm817, %v1105, 0
        %v1145 = vsel %vm817, %v1106, 0
        %v1148 = vsel %vm817, %v1107, 0
        %v1151 = vsel %vm817, %v1108, 0
        %v1154 = vsel %vm817, %v1109, 0
        %v1157 = vsel %vm817, %v1110, 0
        %v1160 = vsel %vm866, %v363, 0
        %1162 = vmatprep.subr.bf16.mxu0 0
        %1163 = vmatpush1.bf16.msra.mxu0 %v1160
        %1164 = vmatprep.subr.bf16.mxu0 0
        %1165 = vmatpush1.bf16.msra.mxu0 0
        %1166 = vmatprep.subr.bf16.mxu0 0
        %1167 = vmatpush1.bf16.msra.mxu0 0
        %1168 = vmatprep.subr.bf16.mxu0 0
        %1169 = vmatpush1.bf16.msra.mxu0 0
        %1170 = vmatprep.subr.bf16.mxu0 0
        %1171 = vmatpush1.bf16.msra.mxu0 0
        %1172 = vmatprep.subr.bf16.mxu0 0
        %1173 = vmatpush1.bf16.msra.mxu0 0
        %1174 = vmatprep.subr.bf16.mxu0 0
        %1175 = vmatpush1.bf16.msra.mxu0 0
        %1176 = vmatprep.subr.bf16.mxu0 0
        %1177 = vmatpush1.bf16.msra.mxu0 0
        %1178 = vmatprep.subr.bf16.mxu0 0
        %1179 = vmatpush1.bf16.msra.mxu0 0
        %1180 = vmatprep.subr.bf16.mxu0 0
        %1181 = vmatpush1.bf16.msra.mxu0 0
        %1182 = vmatprep.subr.bf16.mxu0 0
        %1183 = vmatpush1.bf16.msra.mxu0 0
        %1184 = vmatprep.subr.bf16.mxu0 0
        %1185 = vmatpush1.bf16.msra.mxu0 0
        %1186 = vmatprep.subr.bf16.mxu0 0
        %1187 = vmatpush1.bf16.msra.mxu0 0
        %1188 = vmatprep.subr.bf16.mxu0 0
        %1189 = vmatpush1.bf16.msra.mxu0 0
        %1190 = vmatprep.subr.bf16.mxu0 0
        %1191 = vmatpush1.bf16.msra.mxu0 0
        %1192 = vmatprep.subr.bf16.mxu0 0
        %1193 = vmatpush1.bf16.msra.mxu0 0
        %1194 = vmatprep.mubr.bf16.mxu0 0
        %1195 = vmatmul.mubr.bf16.gmra.mrb[0].mxu0 %v1112
        %v1196 = vpop.f32.mrb[0].mxu0
        %v1197 = vadd.f32 %v905, %v1196
        %v1198 = vpop.f32.mrb[0].mxu0
        %v1199 = vpop.f32.mrb[0].mxu0
        %v1200 = vadd.f32 %v908, %v1199
        %v1201 = vpop.f32.mrb[0].mxu0
        %1202 = vmatprep.mubr.bf16.mxu0 0
        %1203 = vmatmul.mubr.bf16.gmra.mrb[0].mxu0 %v1115
        %v1204 = vpop.f32.mrb[0].mxu0
        %v1205 = vadd.f32 %v913, %v1204
        %v1206 = vpop.f32.mrb[0].mxu0
        %v1207 = vpop.f32.mrb[0].mxu0
        %v1208 = vadd.f32 %v916, %v1207
        %v1209 = vpop.f32.mrb[0].mxu0
        %1210 = vmatprep.mubr.bf16.mxu0 0
        %1211 = vmatmul.mubr.bf16.gmra.mrb[0].mxu0 %v1118
        %v1212 = vpop.f32.mrb[0].mxu0
        %v1213 = vadd.f32 %v921, %v1212
        %v1214 = vpop.f32.mrb[0].mxu0
        %v1215 = vpop.f32.mrb[0].mxu0
        %v1216 = vadd.f32 %v924, %v1215
        %v1217 = vpop.f32.mrb[0].mxu0
        %1218 = vmatprep.mubr.bf16.mxu0 0
        %1219 = vmatmul.mubr.bf16.gmra.mrb[0].mxu0 %v1121
        %v1220 = vpop.f32.mrb[0].mxu0
        %v1221 = vadd.f32 %v929, %v1220
        %v1222 = vpop.f32.mrb[0].mxu0
        %v1223 = vpop.f32.mrb[0].mxu0
        %v1224 = vadd.f32 %v932, %v1223
        %v1225 = vpop.f32.mrb[0].mxu0
        %1226 = vmatprep.mubr.bf16.mxu0 0
        %1227 = vmatmul.mubr.bf16.gmra.mrb[0].mxu0 %v1124
        %v1228 = vpop.f32.mrb[0].mxu0
        %v1229 = vadd.f32 %v937, %v1228
        %v1230 = vpop.f32.mrb[0].mxu0
        %v1231 = vpop.f32.mrb[0].mxu0
        %v1232 = vadd.f32 %v940, %v1231
        %v1233 = vpop.f32.mrb[0].mxu0
        %1234 = vmatprep.mubr.bf16.mxu0 0
        %1235 = vmatmul.mubr.bf16.gmra.mrb[0].mxu0 %v1127
        %v1236 = vpop.f32.mrb[0].mxu0
        %v1237 = vadd.f32 %v945, %v1236
        %v1238 = vpop.f32.mrb[0].mxu0
        %v1239 = vpop.f32.mrb[0].mxu0
        %v1240 = vadd.f32 %v948, %v1239
        %v1241 = vpop.f32.mrb[0].mxu0
        %1242 = vmatprep.mubr.bf16.mxu0 0
        %1243 = vmatmul.mubr.bf16.gmra.mrb[0].mxu0 %v1130
        %v1244 = vpop.f32.mrb[0].mxu0
        %v1245 = vadd.f32 %v953, %v1244
        %v1246 = vpop.f32.mrb[0].mxu0
        %v1247 = vpop.f32.mrb[0].mxu0
        %v1248 = vadd.f32 %v956, %v1247
        %v1249 = vpop.f32.mrb[0].mxu0
        %1250 = vmatprep.mubr.bf16.mxu0 0
        %1251 = vmatmul.mubr.bf16.gmra.mrb[0].mxu0 %v1133
        %v1252 = vpop.f32.mrb[0].mxu0
        %v1253 = vadd.f32 %v961, %v1252
        %v1254 = vpop.f32.mrb[0].mxu0
        %v1255 = vpop.f32.mrb[0].mxu0
        %v1256 = vadd.f32 %v964, %v1255
        %v1257 = vpop.f32.mrb[0].mxu0
        %1258 = vmatprep.mubr.bf16.mxu0 0
        %1259 = vmatmul.mubr.bf16.gmra.mrb[0].mxu0 %v1136
        %v1260 = vpop.f32.mrb[0].mxu0
        %v1261 = vadd.f32 %v969, %v1260
        %v1262 = vpop.f32.mrb[0].mxu0
        %v1263 = vpop.f32.mrb[0].mxu0
        %v1264 = vadd.f32 %v972, %v1263
        %v1265 = vpop.f32.mrb[0].mxu0
        %1266 = vmatprep.mubr.bf16.mxu0 0
        %1267 = vmatmul.mubr.bf16.gmra.mrb[0].mxu0 %v1139
        %v1268 = vpop.f32.mrb[0].mxu0
        %v1269 = vadd.f32 %v977, %v1268
        %v1270 = vpop.f32.mrb[0].mxu0
        %v1271 = vpop.f32.mrb[0].mxu0
        %v1272 = vadd.f32 %v980, %v1271
        %v1273 = vpop.f32.mrb[0].mxu0
        %1274 = vmatprep.mubr.bf16.mxu0 0
        %1275 = vmatmul.mubr.bf16.gmra.mrb[0].mxu0 %v1142
        %v1276 = vpop.f32.mrb[0].mxu0
        %v1277 = vadd.f32 %v985, %v1276
        %v1278 = vpop.f32.mrb[0].mxu0
        %v1279 = vpop.f32.mrb[0].mxu0
        %v1280 = vadd.f32 %v988, %v1279
        %v1281 = vpop.f32.mrb[0].mxu0
        %1282 = vmatprep.mubr.bf16.mxu0 0
        %1283 = vmatmul.mubr.bf16.gmra.mrb[0].mxu0 %v1145
        %v1284 = vpop.f32.mrb[0].mxu0
        %v1285 = vadd.f32 %v993, %v1284
        %v1286 = vpop.f32.mrb[0].mxu0
        %v1287 = vpop.f32.mrb[0].mxu0
        %v1288 = vadd.f32 %v996, %v1287
        %v1289 = vpop.f32.mrb[0].mxu0
        %1290 = vmatprep.mubr.bf16.mxu0 0
        %1291 = vmatmul.mubr.bf16.gmra.mrb[0].mxu0 %v1148
        %v1292 = vpop.f32.mrb[0].mxu0
        %v1293 = vadd.f32 %v1001, %v1292
        %v1294 = vpop.f32.mrb[0].mxu0
        %v1295 = vpop.f32.mrb[0].mxu0
        %v1296 = vadd.f32 %v1004, %v1295
        %v1297 = vpop.f32.mrb[0].mxu0
        %1298 = vmatprep.mubr.bf16.mxu0 0
        %1299 = vmatmul.mubr.bf16.gmra.mrb[0].mxu0 %v1151
        %v1300 = vpop.f32.mrb[0].mxu0
        %v1301 = vadd.f32 %v1009, %v1300
        %v1302 = vpop.f32.mrb[0].mxu0
        %v1303 = vpop.f32.mrb[0].mxu0
        %v1304 = vadd.f32 %v1012, %v1303
        %v1305 = vpop.f32.mrb[0].mxu0
        %1306 = vmatprep.mubr.bf16.mxu0 0
        %1307 = vmatmul.mubr.bf16.gmra.mrb[0].mxu0 %v1154
        %v1308 = vpop.f32.mrb[0].mxu0
        %v1309 = vadd.f32 %v1017, %v1308
        %v1310 = vpop.f32.mrb[0].mxu0
        %v1311 = vpop.f32.mrb[0].mxu0
        %v1312 = vadd.f32 %v1020, %v1311
        %v1313 = vpop.f32.mrb[0].mxu0
        %1314 = vmatprep.mubr.bf16.mxu0 0
        %1315 = vmatmul.mubr.bf16.gmra.mrb[0].mxu0 %v1157
        %v1316 = vpop.f32.mrb[0].mxu0
        %v1317 = vadd.f32 %v1025, %v1316
        %v1318 = vpop.f32.mrb[0].mxu0
        %v1319 = vpop.f32.mrb[0].mxu0
        %v1320 = vadd.f32 %v1028, %v1319
        %v1321 = vpop.f32.mrb[0].mxu0
        %1322 = vdwg.mxu0
        %v1323 = vld [vmem:[%s329] sm:$0xe]
        %v1324 = vld [vmem:[%s329 + $0xc] sm:$0xe]
        %v1325 = vld [vmem:[%s329 + $0x18] sm:$0xe]
        %v1326 = vld [vmem:[%s329 + $0x24] sm:$0xe]
        %v1327 = vld [vmem:[%s329 + $0x30] sm:$0xe]
        %v1328 = vld [vmem:[%s329 + $0x3c] sm:$0xe]
        %v1329 = vld [vmem:[%s329 + $0x48] sm:$0xe]
        %v1330 = vld [vmem:[%s329 + $0x54] sm:$0xe]
        %v1331 = vld [vmem:[%s329 + $0x60] sm:$0xe]
        %v1332 = vld [vmem:[%s329 + $0x6c] sm:$0xe]
        %v1333 = vld [vmem:[%s329 + $0x78] sm:$0xe]
        %v1334 = vld [vmem:[%s329 + $0x84] sm:$0xe]
        %v1335 = vld [vmem:[%s329 + $0x90] sm:$0xe]
        %v1336 = vld [vmem:[%s329 + $0x9c] sm:$0xe]
        %v1337 = vld [vmem:[%s329 + $0xa8] sm:$0xe]
        %v1338 = vld [vmem:[%s329 + $0xb4] sm:$0xe]
        %vm1371 = vcmask 1042432
        %vm1372 = vcmask 1046532
        %vm1373 = vmor %vm1371, %vm1372
        %v1374 = vrot.slane %v1323, 5
        %v1375 = vrot.slane %v1374, 4
        %v1376 = vrot.slane %v332, 5
        %v1377 = vsel %vm1373, %v1375, %v1376
        %v1378 = vrot.slane %v1376, 4
        %v1379 = vrot.slane %v364, 5
        %v1380 = vsel %vm1373, %v1378, %v1379
        %v1381 = vrot.slane %v1324, 5
        %v1382 = vrot.slane %v1381, 4
        %v1383 = vrot.slane %v334, 5
        %v1384 = vsel %vm1373, %v1382, %v1383
        %v1385 = vrot.slane %v1383, 4
        %v1386 = vrot.slane %v365, 5
        %v1387 = vsel %vm1373, %v1385, %v1386
        %v1388 = vrot.slane %v1325, 5
        %v1389 = vrot.slane %v1388, 4
        %v1390 = vrot.slane %v336, 5
        %v1391 = vsel %vm1373, %v1389, %v1390
        %v1392 = vrot.slane %v1390, 4
        %v1393 = vrot.slane %v366, 5
        %v1394 = vsel %vm1373, %v1392, %v1393
        %v1395 = vrot.slane %v1326, 5
        %v1396 = vrot.slane %v1395, 4
        %v1397 = vrot.slane %v338, 5
        %v1398 = vsel %vm1373, %v1396, %v1397
        %v1399 = vrot.slane %v1397, 4
        %v1400 = vrot.slane %v367, 5
        %v1401 = vsel %vm1373, %v1399, %v1400
        %v1402 = vrot.slane %v1327, 5
        %v1403 = vrot.slane %v1402, 4
        %v1404 = vrot.slane %v340, 5
        %v1405 = vsel %vm1373, %v1403, %v1404
        %v1406 = vrot.slane %v1404, 4
        %v1407 = vrot.slane %v368, 5
        %v1408 = vsel %vm1373, %v1406, %v1407
        %v1409 = vrot.slane %v1328, 5
        %v1410 = vrot.slane %v1409, 4
        %v1411 = vrot.slane %v342, 5
        %v1412 = vsel %vm1373, %v1410, %v1411
        %v1413 = vrot.slane %v1411, 4
        %v1414 = vrot.slane %v369, 5
        %v1415 = vsel %vm1373, %v1413, %v1414
        %v1416 = vrot.slane %v1329, 5
        %v1417 = vrot.slane %v1416, 4
        %v1418 = vrot.slane %v344, 5
        %v1419 = vsel %vm1373, %v1417, %v1418
        %v1420 = vrot.slane %v1418, 4
        %v1421 = vrot.slane %v370, 5
        %v1422 = vsel %vm1373, %v1420, %v1421
        %v1423 = vrot.slane %v1330, 5
        %v1424 = vrot.slane %v1423, 4
        %v1425 = vrot.slane %v346, 5
        %v1426 = vsel %vm1373, %v1424, %v1425
        %v1427 = vrot.slane %v1425, 4
        %v1428 = vrot.slane %v371, 5
        %v1429 = vsel %vm1373, %v1427, %v1428
        %v1430 = vrot.slane %v1331, 5
        %v1431 = vrot.slane %v1430, 4
        %v1432 = vrot.slane %v348, 5
        %v1433 = vsel %vm1373, %v1431, %v1432
        %v1434 = vrot.slane %v1432, 4
        %v1435 = vrot.slane %v372, 5
        %v1436 = vsel %vm1373, %v1434, %v1435
        %v1437 = vrot.slane %v1332, 5
        %v1438 = vrot.slane %v1437, 4
        %v1439 = vrot.slane %v350, 5
        %v1440 = vsel %vm1373, %v1438, %v1439
        %v1441 = vrot.slane %v1439, 4
        %v1442 = vrot.slane %v373, 5
        %v1443 = vsel %vm1373, %v1441, %v1442
        %v1444 = vrot.slane %v1333, 5
        %v1445 = vrot.slane %v1444, 4
        %v1446 = vrot.slane %v352, 5
        %v1447 = vsel %vm1373, %v1445, %v1446
        %v1448 = vrot.slane %v1446, 4
        %v1449 = vrot.slane %v374, 5
        %v1450 = vsel %vm1373, %v1448, %v1449
        %v1451 = vrot.slane %v1334, 5
        %v1452 = vrot.slane %v1451, 4
        %v1453 = vrot.slane %v354, 5
        %v1454 = vsel %vm1373, %v1452, %v1453
        %v1455 = vrot.slane %v1453, 4
        %v1456 = vrot.slane %v375, 5
        %v1457 = vsel %vm1373, %v1455, %v1456
        %v1458 = vrot.slane %v1335, 5
        %v1459 = vrot.slane %v1458, 4
        %v1460 = vrot.slane %v356, 5
        %v1461 = vsel %vm1373, %v1459, %v1460
        %v1462 = vrot.slane %v1460, 4
        %v1463 = vrot.slane %v376, 5
        %v1464 = vsel %vm1373, %v1462, %v1463
        %v1465 = vrot.slane %v1336, 5
        %v1466 = vrot.slane %v1465, 4
        %v1467 = vrot.slane %v358, 5
        %v1468 = vsel %vm1373, %v1466, %v1467
        %v1469 = vrot.slane %v1467, 4
        %v1470 = vrot.slane %v377, 5
        %v1471 = vsel %vm1373, %v1469, %v1470
        %v1472 = vrot.slane %v1337, 5
        %v1473 = vrot.slane %v1472, 4
        %v1474 = vrot.slane %v360, 5
        %v1475 = vsel %vm1373, %v1473, %v1474
        %v1476 = vrot.slane %v1474, 4
        %v1477 = vrot.slane %v378, 5
        %v1478 = vsel %vm1373, %v1476, %v1477
        %v1479 = vrot.slane %v1338, 5
        %v1480 = vrot.slane %v1479, 4
        %v1481 = vrot.slane %v362, 5
        %v1482 = vsel %vm1373, %v1480, %v1481
        %v1483 = vrot.slane %v1481, 4
        %v1484 = vrot.slane %v379, 5
        %v1485 = vsel %vm1373, %v1483, %v1484
        %s1486 = scalar_lea.vmem %s1, 4
        %v1487 = vld [vmem:[%s1486] sm:$0x3]
        %v1488 = vunpack.c.l.b16 %v1377
        %v1489 = vunpack.c.l.b16 %v1380
        %v1490 = vunpack.c.l.b16 %v1384
        %v1491 = vunpack.c.l.b16 %v1387
        %v1492 = vunpack.c.l.b16 %v1391
        %v1493 = vunpack.c.l.b16 %v1394
        %v1494 = vunpack.c.l.b16 %v1398
        %v1495 = vunpack.c.l.b16 %v1401
        %v1496 = vunpack.c.l.b16 %v1405
        %v1497 = vunpack.c.l.b16 %v1408
        %v1498 = vunpack.c.l.b16 %v1412
        %v1499 = vunpack.c.l.b16 %v1415
        %v1500 = vunpack.c.l.b16 %v1419
        %v1501 = vunpack.c.l.b16 %v1422
        %v1502 = vunpack.c.l.b16 %v1426
        %v1503 = vunpack.c.l.b16 %v1429
        %v1504 = vunpack.c.l.b16 %v1433
        %v1505 = vunpack.c.l.b16 %v1436
        %v1506 = vunpack.c.l.b16 %v1440
        %v1507 = vunpack.c.l.b16 %v1443
        %v1508 = vunpack.c.l.b16 %v1447
        %v1509 = vunpack.c.l.b16 %v1450
        %v1510 = vunpack.c.l.b16 %v1454
        %v1511 = vunpack.c.l.b16 %v1457
        %v1512 = vunpack.c.l.b16 %v1461
        %v1513 = vunpack.c.l.b16 %v1464
        %v1514 = vunpack.c.l.b16 %v1468
        %v1515 = vunpack.c.l.b16 %v1471
        %v1516 = vunpack.c.l.b16 %v1475
        %v1517 = vunpack.c.l.b16 %v1478
        %v1518 = vunpack.c.l.b16 %v1482
        %v1519 = vunpack.c.l.b16 %v1485
        %v1520 = vpack.c.b16 %v1489, %v1488
        %v1521 = vpack.c.b16 %v1491, %v1490
        %v1522 = vpack.c.b16 %v1493, %v1492
        %v1523 = vpack.c.b16 %v1495, %v1494
        %v1524 = vpack.c.b16 %v1497, %v1496
        %v1525 = vpack.c.b16 %v1499, %v1498
        %v1526 = vpack.c.b16 %v1501, %v1500
        %v1527 = vpack.c.b16 %v1503, %v1502
        %v1528 = vpack.c.b16 %v1505, %v1504
        %v1529 = vpack.c.b16 %v1507, %v1506
        %v1530 = vpack.c.b16 %v1509, %v1508
        %v1531 = vpack.c.b16 %v1511, %v1510
        %v1532 = vpack.c.b16 %v1513, %v1512
        %v1533 = vpack.c.b16 %v1515, %v1514
        %v1534 = vpack.c.b16 %v1517, %v1516
        %v1535 = vpack.c.b16 %v1519, %v1518
        %v1537 = vsel %vm817, %v1520, 0
        %v1540 = vsel %vm817, %v1521, 0
        %v1543 = vsel %vm817, %v1522, 0
        %v1546 = vsel %vm817, %v1523, 0
        %v1549 = vsel %vm817, %v1524, 0
        %v1552 = vsel %vm817, %v1525, 0
        %v1555 = vsel %vm817, %v1526, 0
        %v1558 = vsel %vm817, %v1527, 0
        %v1561 = vsel %vm817, %v1528, 0
        %v1564 = vsel %vm817, %v1529, 0
        %v1567 = vsel %vm817, %v1530, 0
        %v1570 = vsel %vm817, %v1531, 0
        %v1573 = vsel %vm817, %v1532, 0
        %v1576 = vsel %vm817, %v1533, 0
        %v1579 = vsel %vm817, %v1534, 0
        %v1582 = vsel %vm817, %v1535, 0
        %v1585 = vsel %vm866, %v1487, 0
        %1587 = vmatprep.subr.bf16.mxu0 0
        %1588 = vmatpush1.bf16.msra.mxu0 %v1585
        %1589 = vmatprep.subr.bf16.mxu0 0
        %1590 = vmatpush1.bf16.msra.mxu0 0
        %1591 = vmatprep.subr.bf16.mxu0 0
        %1592 = vmatpush1.bf16.msra.mxu0 0
        %1593 = vmatprep.subr.bf16.mxu0 0
        %1594 = vmatpush1.bf16.msra.mxu0 0
        %1595 = vmatprep.subr.bf16.mxu0 0
        %1596 = vmatpush1.bf16.msra.mxu0 0
        %1597 = vmatprep.subr.bf16.mxu0 0
        %1598 = vmatpush1.bf16.msra.mxu0 0
        %1599 = vmatprep.subr.bf16.mxu0 0
        %1600 = vmatpush1.bf16.msra.mxu0 0
        %1601 = vmatprep.subr.bf16.mxu0 0
        %1602 = vmatpush1.bf16.msra.mxu0 0
        %1603 = vmatprep.subr.bf16.mxu0 0
        %1604 = vmatpush1.bf16.msra.mxu0 0
        %1605 = vmatprep.subr.bf16.mxu0 0
        %1606 = vmatpush1.bf16.msra.mxu0 0
        %1607 = vmatprep.subr.bf16.mxu0 0
        %1608 = vmatpush1.bf16.msra.mxu0 0
        %1609 = vmatprep.subr.bf16.mxu0 0
        %1610 = vmatpush1.bf16.msra.mxu0 0
        %1611 = vmatprep.subr.bf16.mxu0 0
        %1612 = vmatpush1.bf16.msra.mxu0 0
        %1613 = vmatprep.subr.bf16.mxu0 0
        %1614 = vmatpush1.bf16.msra.mxu0 0
        %1615 = vmatprep.subr.bf16.mxu0 0
        %1616 = vmatpush1.bf16.msra.mxu0 0
        %1617 = vmatprep.subr.bf16.mxu0 0
        %1618 = vmatpush1.bf16.msra.mxu0 0
        %1619 = vmatprep.mubr.bf16.mxu0 0
        %1620 = vmatmul.mubr.bf16.gmra.mrb[0].mxu0 %v1537
        %v1621 = vpop.f32.mrb[0].mxu0
        %v1622 = vadd.f32 0.0, %v1621
        %v1623 = vpop.f32.mrb[0].mxu0
        %v1624 = vpop.f32.mrb[0].mxu0
        %v1625 = vadd.f32 0.0, %v1624
        %v1626 = vpop.f32.mrb[0].mxu0
        %1627 = vmatprep.mubr.bf16.mxu0 0
        %1628 = vmatmul.mubr.bf16.gmra.mrb[0].mxu0 %v1540
        %v1629 = vpop.f32.mrb[0].mxu0
        %v1630 = vadd.f32 0.0, %v1629
        %v1631 = vpop.f32.mrb[0].mxu0
        %v1632 = vpop.f32.mrb[0].mxu0
        %v1633 = vadd.f32 0.0, %v1632
        %v1634 = vpop.f32.mrb[0].mxu0
        %1635 = vmatprep.mubr.bf16.mxu0 0
        %1636 = vmatmul.mubr.bf16.gmra.mrb[0].mxu0 %v1543
        %v1637 = vpop.f32.mrb[0].mxu0
        %v1638 = vadd.f32 0.0, %v1637
        %v1639 = vpop.f32.mrb[0].mxu0
        %v1640 = vpop.f32.mrb[0].mxu0
        %v1641 = vadd.f32 0.0, %v1640
        %v1642 = vpop.f32.mrb[0].mxu0
        %1643 = vmatprep.mubr.bf16.mxu0 0
        %1644 = vmatmul.mubr.bf16.gmra.mrb[0].mxu0 %v1546
        %v1645 = vpop.f32.mrb[0].mxu0
        %v1646 = vadd.f32 0.0, %v1645
        %v1647 = vpop.f32.mrb[0].mxu0
        %v1648 = vpop.f32.mrb[0].mxu0
        %v1649 = vadd.f32 0.0, %v1648
        %v1650 = vpop.f32.mrb[0].mxu0
        %1651 = vmatprep.mubr.bf16.mxu0 0
        %1652 = vmatmul.mubr.bf16.gmra.mrb[0].mxu0 %v1549
        %v1653 = vpop.f32.mrb[0].mxu0
        %v1654 = vadd.f32 0.0, %v1653
        %v1655 = vpop.f32.mrb[0].mxu0
        %v1656 = vpop.f32.mrb[0].mxu0
        %v1657 = vadd.f32 0.0, %v1656
        %v1658 = vpop.f32.mrb[0].mxu0
        %1659 = vmatprep.mubr.bf16.mxu0 0
        %1660 = vmatmul.mubr.bf16.gmra.mrb[0].mxu0 %v1552
        %v1661 = vpop.f32.mrb[0].mxu0
        %v1662 = vadd.f32 0.0, %v1661
        %v1663 = vpop.f32.mrb[0].mxu0
        %v1664 = vpop.f32.mrb[0].mxu0
        %v1665 = vadd.f32 0.0, %v1664
        %v1666 = vpop.f32.mrb[0].mxu0
        %1667 = vmatprep.mubr.bf16.mxu0 0
        %1668 = vmatmul.mubr.bf16.gmra.mrb[0].mxu0 %v1555
        %v1669 = vpop.f32.mrb[0].mxu0
        %v1670 = vadd.f32 0.0, %v1669
        %v1671 = vpop.f32.mrb[0].mxu0
        %v1672 = vpop.f32.mrb[0].mxu0
        %v1673 = vadd.f32 0.0, %v1672
        %v1674 = vpop.f32.mrb[0].mxu0
        %1675 = vmatprep.mubr.bf16.mxu0 0
        %1676 = vmatmul.mubr.bf16.gmra.mrb[0].mxu0 %v1558
        %v1677 = vpop.f32.mrb[0].mxu0
        %v1678 = vadd.f32 0.0, %v1677
        %v1679 = vpop.f32.mrb[0].mxu0
        %v1680 = vpop.f32.mrb[0].mxu0
        %v1681 = vadd.f32 0.0, %v1680
        %v1682 = vpop.f32.mrb[0].mxu0
        %1683 = vmatprep.mubr.bf16.mxu0 0
        %1684 = vmatmul.mubr.bf16.gmra.mrb[0].mxu0 %v1561
        %v1685 = vpop.f32.mrb[0].mxu0
        %v1686 = vadd.f32 0.0, %v1685
        %v1687 = vpop.f32.mrb[0].mxu0
        %v1688 = vpop.f32.mrb[0].mxu0
        %v1689 = vadd.f32 0.0, %v1688
        %v1690 = vpop.f32.mrb[0].mxu0
        %1691 = vmatprep.mubr.bf16.mxu0 0
        %1692 = vmatmul.mubr.bf16.gmra.mrb[0].mxu0 %v1564
        %v1693 = vpop.f32.mrb[0].mxu0
        %v1694 = vadd.f32 0.0, %v1693
        %v1695 = vpop.f32.mrb[0].mxu0
        %v1696 = vpop.f32.mrb[0].mxu0
        %v1697 = vadd.f32 0.0, %v1696
        %v1698 = vpop.f32.mrb[0].mxu0
        %1699 = vmatprep.mubr.bf16.mxu0 0
        %1700 = vmatmul.mubr.bf16.gmra.mrb[0].mxu0 %v1567
        %v1701 = vpop.f32.mrb[0].mxu0
        %v1702 = vadd.f32 0.0, %v1701
        %v1703 = vpop.f32.mrb[0].mxu0
        %v1704 = vpop.f32.mrb[0].mxu0
        %v1705 = vadd.f32 0.0, %v1704
        %v1706 = vpop.f32.mrb[0].mxu0
        %1707 = vmatprep.mubr.bf16.mxu0 0
        %1708 = vmatmul.mubr.bf16.gmra.mrb[0].mxu0 %v1570
        %v1709 = vpop.f32.mrb[0].mxu0
        %v1710 = vadd.f32 0.0, %v1709
        %v1711 = vpop.f32.mrb[0].mxu0
        %v1712 = vpop.f32.mrb[0].mxu0
        %v1713 = vadd.f32 0.0, %v1712
        %v1714 = vpop.f32.mrb[0].mxu0
        %1715 = vmatprep.mubr.bf16.mxu0 0
        %1716 = vmatmul.mubr.bf16.gmra.mrb[0].mxu0 %v1573
        %v1717 = vpop.f32.mrb[0].mxu0
        %v1718 = vadd.f32 0.0, %v1717
        %v1719 = vpop.f32.mrb[0].mxu0
        %v1720 = vpop.f32.mrb[0].mxu0
        %v1721 = vadd.f32 0.0, %v1720
        %v1722 = vpop.f32.mrb[0].mxu0
        %1723 = vmatprep.mubr.bf16.mxu0 0
        %1724 = vmatmul.mubr.bf16.gmra.mrb[0].mxu0 %v1576
        %v1725 = vpop.f32.mrb[0].mxu0
        %v1726 = vadd.f32 0.0, %v1725
        %v1727 = vpop.f32.mrb[0].mxu0
        %v1728 = vpop.f32.mrb[0].mxu0
        %v1729 = vadd.f32 0.0, %v1728
        %v1730 = vpop.f32.mrb[0].mxu0
        %1731 = vmatprep.mubr.bf16.mxu0 0
        %1732 = vmatmul.mubr.bf16.gmra.mrb[0].mxu0 %v1579
        %v1733 = vpop.f32.mrb[0].mxu0
        %v1734 = vadd.f32 0.0, %v1733
        %v1735 = vpop.f32.mrb[0].mxu0
        %v1736 = vpop.f32.mrb[0].mxu0
        %v1737 = vadd.f32 0.0, %v1736
        %v1738 = vpop.f32.mrb[0].mxu0
        %1739 = vmatprep.mubr.bf16.mxu0 0
        %1740 = vmatmul.mubr.bf16.gmra.mrb[0].mxu0 %v1582
        %v1741 = vpop.f32.mrb[0].mxu0
        %v1742 = vadd.f32 0.0, %v1741
        %v1743 = vpop.f32.mrb[0].mxu0
        %v1744 = vpop.f32.mrb[0].mxu0
        %v1745 = vadd.f32 0.0, %v1744
        %v1746 = vpop.f32.mrb[0].mxu0
        %1747 = vdwg.mxu0
        %v1748 = vadd.f32 %v1197, %v1622
        %v1749 = vadd.f32 %v1200, %v1625
        %v1750 = vadd.f32 %v1205, %v1630
        %v1751 = vadd.f32 %v1208, %v1633
        %v1752 = vadd.f32 %v1213, %v1638
        %v1753 = vadd.f32 %v1216, %v1641
        %v1754 = vadd.f32 %v1221, %v1646
        %v1755 = vadd.f32 %v1224, %v1649
        %v1756 = vadd.f32 %v1229, %v1654
        %v1757 = vadd.f32 %v1232, %v1657
        %v1758 = vadd.f32 %v1237, %v1662
        %v1759 = vadd.f32 %v1240, %v1665
        %v1760 = vadd.f32 %v1245, %v1670
        %v1761 = vadd.f32 %v1248, %v1673
        %v1762 = vadd.f32 %v1253, %v1678
        %v1763 = vadd.f32 %v1256, %v1681
        %v1764 = vadd.f32 %v1261, %v1686
        %v1765 = vadd.f32 %v1264, %v1689
        %v1766 = vadd.f32 %v1269, %v1694
        %v1767 = vadd.f32 %v1272, %v1697
        %v1768 = vadd.f32 %v1277, %v1702
        %v1769 = vadd.f32 %v1280, %v1705
        %v1770 = vadd.f32 %v1285, %v1710
        %v1771 = vadd.f32 %v1288, %v1713
        %v1772 = vadd.f32 %v1293, %v1718
        %v1773 = vadd.f32 %v1296, %v1721
        %v1774 = vadd.f32 %v1301, %v1726
        %v1775 = vadd.f32 %v1304, %v1729
        %v1776 = vadd.f32 %v1309, %v1734
        %v1777 = vadd.f32 %v1312, %v1737
        %v1778 = vadd.f32 %v1317, %v1742
        %v1779 = vadd.f32 %v1320, %v1745
        %s1780 = scalar_lea.vmem %s329, 12
        %v1781 = vld [vmem:[%s1780] sm:$0xf]
        %v1782 = vld [vmem:[%s1780 + $0x4] sm:$0xf]
        %v1783 = vld [vmem:[%s1780 + $0xc] sm:$0xf]
        %v1784 = vld [vmem:[%s1780 + $0x10] sm:$0xf]
        %v1785 = vld [vmem:[%s1780 + $0x18] sm:$0xf]
        %v1786 = vld [vmem:[%s1780 + $0x1c] sm:$0xf]
        %v1787 = vld [vmem:[%s1780 + $0x24] sm:$0xf]
        %v1788 = vld [vmem:[%s1780 + $0x28] sm:$0xf]
        %v1789 = vld [vmem:[%s1780 + $0x30] sm:$0xf]
        %v1790 = vld [vmem:[%s1780 + $0x34] sm:$0xf]
        %v1791 = vld [vmem:[%s1780 + $0x3c] sm:$0xf]
        %v1792 = vld [vmem:[%s1780 + $0x40] sm:$0xf]
        %v1793 = vld [vmem:[%s1780 + $0x48] sm:$0xf]
        %v1794 = vld [vmem:[%s1780 + $0x4c] sm:$0xf]
        %v1795 = vld [vmem:[%s1780 + $0x54] sm:$0xf]
        %v1796 = vld [vmem:[%s1780 + $0x58] sm:$0xf]
        %v1797 = vld [vmem:[%s1780 + $0x60] sm:$0xf]
        %v1798 = vld [vmem:[%s1780 + $0x64] sm:$0xf]
        %v1799 = vld [vmem:[%s1780 + $0x6c] sm:$0xf]
        %v1800 = vld [vmem:[%s1780 + $0x70] sm:$0xf]
        %v1801 = vld [vmem:[%s1780 + $0x78] sm:$0xf]
        %v1802 = vld [vmem:[%s1780 + $0x7c] sm:$0xf]
        %v1803 = vld [vmem:[%s1780 + $0x84] sm:$0xf]
        %v1804 = vld [vmem:[%s1780 + $0x88] sm:$0xf]
        %v1805 = vld [vmem:[%s1780 + $0x90] sm:$0xf]
        %v1806 = vld [vmem:[%s1780 + $0x94] sm:$0xf]
        %v1807 = vld [vmem:[%s1780 + $0x9c] sm:$0xf]
        %v1808 = vld [vmem:[%s1780 + $0xa0] sm:$0xf]
        %v1809 = vld [vmem:[%s1780 + $0xa8] sm:$0xf]
        %v1810 = vld [vmem:[%s1780 + $0xac] sm:$0xf]
        %v1811 = vld [vmem:[%s1780 + $0xb4] sm:$0xf]
        %v1812 = vld [vmem:[%s1780 + $0xb8] sm:$0xf]
        %s1813 = scalar_lea.vmem %s1, 6
        %v1814 = vld [vmem:[%s1813] sm:$0x3]
        %v1847 = vunpack.c.l.b16 %v1781
        %v1848 = vunpack.c.l.b16 %v1782
        %v1849 = vunpack.c.l.b16 %v1783
        %v1850 = vunpack.c.l.b16 %v1784
        %v1851 = vunpack.c.l.b16 %v1785
        %v1852 = vunpack.c.l.b16 %v1786
        %v1853 = vunpack.c.l.b16 %v1787
        %v1854 = vunpack.c.l.b16 %v1788
        %v1855 = vunpack.c.l.b16 %v1789
        %v1856 = vunpack.c.l.b16 %v1790
        %v1857 = vunpack.c.l.b16 %v1791
        %v1858 = vunpack.c.l.b16 %v1792
        %v1859 = vunpack.c.l.b16 %v1793
        %v1860 = vunpack.c.l.b16 %v1794
        %v1861 = vunpack.c.l.b16 %v1795
        %v1862 = vunpack.c.l.b16 %v1796
        %v1863 = vunpack.c.l.b16 %v1797
        %v1864 = vunpack.c.l.b16 %v1798
        %v1865 = vunpack.c.l.b16 %v1799
        %v1866 = vunpack.c.l.b16 %v1800
        %v1867 = vunpack.c.l.b16 %v1801
        %v1868 = vunpack.c.l.b16 %v1802
        %v1869 = vunpack.c.l.b16 %v1803
        %v1870 = vunpack.c.l.b16 %v1804
        %v1871 = vunpack.c.l.b16 %v1805
        %v1872 = vunpack.c.l.b16 %v1806
        %v1873 = vunpack.c.l.b16 %v1807
        %v1874 = vunpack.c.l.b16 %v1808
        %v1875 = vunpack.c.l.b16 %v1809
        %v1876 = vunpack.c.l.b16 %v1810
        %v1877 = vunpack.c.l.b16 %v1811
        %v1878 = vunpack.c.l.b16 %v1812
        %v1879 = vpack.c.b16 %v1848, %v1847
        %v1880 = vpack.c.b16 %v1850, %v1849
        %v1881 = vpack.c.b16 %v1852, %v1851
        %v1882 = vpack.c.b16 %v1854, %v1853
        %v1883 = vpack.c.b16 %v1856, %v1855
        %v1884 = vpack.c.b16 %v1858, %v1857
        %v1885 = vpack.c.b16 %v1860, %v1859
        %v1886 = vpack.c.b16 %v1862, %v1861
        %v1887 = vpack.c.b16 %v1864, %v1863
        %v1888 = vpack.c.b16 %v1866, %v1865
        %v1889 = vpack.c.b16 %v1868, %v1867
        %v1890 = vpack.c.b16 %v1870, %v1869
        %v1891 = vpack.c.b16 %v1872, %v1871
        %v1892 = vpack.c.b16 %v1874, %v1873
        %v1893 = vpack.c.b16 %v1876, %v1875
        %v1894 = vpack.c.b16 %v1878, %v1877
        %v1896 = vsel %vm817, %v1879, 0
        %v1899 = vsel %vm817, %v1880, 0
        %v1902 = vsel %vm817, %v1881, 0
        %v1905 = vsel %vm817, %v1882, 0
        %v1908 = vsel %vm817, %v1883, 0
        %v1911 = vsel %vm817, %v1884, 0
        %v1914 = vsel %vm817, %v1885, 0
        %v1917 = vsel %vm817, %v1886, 0
        %v1920 = vsel %vm817, %v1887, 0
        %v1923 = vsel %vm817, %v1888, 0
        %v1926 = vsel %vm817, %v1889, 0
        %v1929 = vsel %vm817, %v1890, 0
        %v1932 = vsel %vm817, %v1891, 0
        %v1935 = vsel %vm817, %v1892, 0
        %v1938 = vsel %vm817, %v1893, 0
        %v1941 = vsel %vm817, %v1894, 0
        %v1944 = vsel %vm866, %v1814, 0
        %1946 = vmatprep.subr.bf16.mxu0 0
        %1947 = vmatpush1.bf16.msra.mxu0 %v1944
        %1948 = vmatprep.subr.bf16.mxu0 0
        %1949 = vmatpush1.bf16.msra.mxu0 0
        %1950 = vmatprep.subr.bf16.mxu0 0
        %1951 = vmatpush1.bf16.msra.mxu0 0
        %1952 = vmatprep.subr.bf16.mxu0 0
        %1953 = vmatpush1.bf16.msra.mxu0 0
        %1954 = vmatprep.subr.bf16.mxu0 0
        %1955 = vmatpush1.bf16.msra.mxu0 0
        %1956 = vmatprep.subr.bf16.mxu0 0
        %1957 = vmatpush1.bf16.msra.mxu0 0
        %1958 = vmatprep.subr.bf16.mxu0 0
        %1959 = vmatpush1.bf16.msra.mxu0 0
        %1960 = vmatprep.subr.bf16.mxu0 0
        %1961 = vmatpush1.bf16.msra.mxu0 0
        %1962 = vmatprep.subr.bf16.mxu0 0
        %1963 = vmatpush1.bf16.msra.mxu0 0
        %1964 = vmatprep.subr.bf16.mxu0 0
        %1965 = vmatpush1.bf16.msra.mxu0 0
        %1966 = vmatprep.subr.bf16.mxu0 0
        %1967 = vmatpush1.bf16.msra.mxu0 0
        %1968 = vmatprep.subr.bf16.mxu0 0
        %1969 = vmatpush1.bf16.msra.mxu0 0
        %1970 = vmatprep.subr.bf16.mxu0 0
        %1971 = vmatpush1.bf16.msra.mxu0 0
        %1972 = vmatprep.subr.bf16.mxu0 0
        %1973 = vmatpush1.bf16.msra.mxu0 0
        %1974 = vmatprep.subr.bf16.mxu0 0
        %1975 = vmatpush1.bf16.msra.mxu0 0
        %1976 = vmatprep.subr.bf16.mxu0 0
        %1977 = vmatpush1.bf16.msra.mxu0 0
        %1978 = vmatprep.mubr.bf16.mxu0 0
        %1979 = vmatmul.mubr.bf16.gmra.mrb[0].mxu0 %v1896
        %v1980 = vpop.f32.mrb[0].mxu0
        %v1981 = vadd.f32 0.0, %v1980
        %v1982 = vpop.f32.mrb[0].mxu0
        %v1983 = vpop.f32.mrb[0].mxu0
        %v1984 = vadd.f32 0.0, %v1983
        %v1985 = vpop.f32.mrb[0].mxu0
        %1986 = vmatprep.mubr.bf16.mxu0 0
        %1987 = vmatmul.mubr.bf16.gmra.mrb[0].mxu0 %v1899
        %v1988 = vpop.f32.mrb[0].mxu0
        %v1989 = vadd.f32 0.0, %v1988
        %v1990 = vpop.f32.mrb[0].mxu0
        %v1991 = vpop.f32.mrb[0].mxu0
        %v1992 = vadd.f32 0.0, %v1991
        %v1993 = vpop.f32.mrb[0].mxu0
        %1994 = vmatprep.mubr.bf16.mxu0 0
        %1995 = vmatmul.mubr.bf16.gmra.mrb[0].mxu0 %v1902
        %v1996 = vpop.f32.mrb[0].mxu0
        %v1997 = vadd.f32 0.0, %v1996
        %v1998 = vpop.f32.mrb[0].mxu0
        %v1999 = vpop.f32.mrb[0].mxu0
        %v2000 = vadd.f32 0.0, %v1999
        %v2001 = vpop.f32.mrb[0].mxu0
        %2002 = vmatprep.mubr.bf16.mxu0 0
        %2003 = vmatmul.mubr.bf16.gmra.mrb[0].mxu0 %v1905
        %v2004 = vpop.f32.mrb[0].mxu0
        %v2005 = vadd.f32 0.0, %v2004
        %v2006 = vpop.f32.mrb[0].mxu0
        %v2007 = vpop.f32.mrb[0].mxu0
        %v2008 = vadd.f32 0.0, %v2007
        %v2009 = vpop.f32.mrb[0].mxu0
        %2010 = vmatprep.mubr.bf16.mxu0 0
        %2011 = vmatmul.mubr.bf16.gmra.mrb[0].mxu0 %v1908
        %v2012 = vpop.f32.mrb[0].mxu0
        %v2013 = vadd.f32 0.0, %v2012
        %v2014 = vpop.f32.mrb[0].mxu0
        %v2015 = vpop.f32.mrb[0].mxu0
        %v2016 = vadd.f32 0.0, %v2015
        %v2017 = vpop.f32.mrb[0].mxu0
        %2018 = vmatprep.mubr.bf16.mxu0 0
        %2019 = vmatmul.mubr.bf16.gmra.mrb[0].mxu0 %v1911
        %v2020 = vpop.f32.mrb[0].mxu0
        %v2021 = vadd.f32 0.0, %v2020
        %v2022 = vpop.f32.mrb[0].mxu0
        %v2023 = vpop.f32.mrb[0].mxu0
        %v2024 = vadd.f32 0.0, %v2023
        %v2025 = vpop.f32.mrb[0].mxu0
        %2026 = vmatprep.mubr.bf16.mxu0 0
        %2027 = vmatmul.mubr.bf16.gmra.mrb[0].mxu0 %v1914
        %v2028 = vpop.f32.mrb[0].mxu0
        %v2029 = vadd.f32 0.0, %v2028
        %v2030 = vpop.f32.mrb[0].mxu0
        %v2031 = vpop.f32.mrb[0].mxu0
        %v2032 = vadd.f32 0.0, %v2031
        %v2033 = vpop.f32.mrb[0].mxu0
        %2034 = vmatprep.mubr.bf16.mxu0 0
        %2035 = vmatmul.mubr.bf16.gmra.mrb[0].mxu0 %v1917
        %v2036 = vpop.f32.mrb[0].mxu0
        %v2037 = vadd.f32 0.0, %v2036
        %v2038 = vpop.f32.mrb[0].mxu0
        %v2039 = vpop.f32.mrb[0].mxu0
        %v2040 = vadd.f32 0.0, %v2039
        %v2041 = vpop.f32.mrb[0].mxu0
        %2042 = vmatprep.mubr.bf16.mxu0 0
        %2043 = vmatmul.mubr.bf16.gmra.mrb[0].mxu0 %v1920
        %v2044 = vpop.f32.mrb[0].mxu0
        %v2045 = vadd.f32 0.0, %v2044
        %v2046 = vpop.f32.mrb[0].mxu0
        %v2047 = vpop.f32.mrb[0].mxu0
        %v2048 = vadd.f32 0.0, %v2047
        %v2049 = vpop.f32.mrb[0].mxu0
        %2050 = vmatprep.mubr.bf16.mxu0 0
        %2051 = vmatmul.mubr.bf16.gmra.mrb[0].mxu0 %v1923
        %v2052 = vpop.f32.mrb[0].mxu0
        %v2053 = vadd.f32 0.0, %v2052
        %v2054 = vpop.f32.mrb[0].mxu0
        %v2055 = vpop.f32.mrb[0].mxu0
        %v2056 = vadd.f32 0.0, %v2055
        %v2057 = vpop.f32.mrb[0].mxu0
        %2058 = vmatprep.mubr.bf16.mxu0 0
        %2059 = vmatmul.mubr.bf16.gmra.mrb[0].mxu0 %v1926
        %v2060 = vpop.f32.mrb[0].mxu0
        %v2061 = vadd.f32 0.0, %v2060
        %v2062 = vpop.f32.mrb[0].mxu0
        %v2063 = vpop.f32.mrb[0].mxu0
        %v2064 = vadd.f32 0.0, %v2063
        %v2065 = vpop.f32.mrb[0].mxu0
        %2066 = vmatprep.mubr.bf16.mxu0 0
        %2067 = vmatmul.mubr.bf16.gmra.mrb[0].mxu0 %v1929
        %v2068 = vpop.f32.mrb[0].mxu0
        %v2069 = vadd.f32 0.0, %v2068
        %v2070 = vpop.f32.mrb[0].mxu0
        %v2071 = vpop.f32.mrb[0].mxu0
        %v2072 = vadd.f32 0.0, %v2071
        %v2073 = vpop.f32.mrb[0].mxu0
        %2074 = vmatprep.mubr.bf16.mxu0 0
        %2075 = vmatmul.mubr.bf16.gmra.mrb[0].mxu0 %v1932
        %v2076 = vpop.f32.mrb[0].mxu0
        %v2077 = vadd.f32 0.0, %v2076
        %v2078 = vpop.f32.mrb[0].mxu0
        %v2079 = vpop.f32.mrb[0].mxu0
        %v2080 = vadd.f32 0.0, %v2079
        %v2081 = vpop.f32.mrb[0].mxu0
        %2082 = vmatprep.mubr.bf16.mxu0 0
        %2083 = vmatmul.mubr.bf16.gmra.mrb[0].mxu0 %v1935
        %v2084 = vpop.f32.mrb[0].mxu0
        %v2085 = vadd.f32 0.0, %v2084
        %v2086 = vpop.f32.mrb[0].mxu0
        %v2087 = vpop.f32.mrb[0].mxu0
        %v2088 = vadd.f32 0.0, %v2087
        %v2089 = vpop.f32.mrb[0].mxu0
        %2090 = vmatprep.mubr.bf16.mxu0 0
        %2091 = vmatmul.mubr.bf16.gmra.mrb[0].mxu0 %v1938
        %v2092 = vpop.f32.mrb[0].mxu0
        %v2093 = vadd.f32 0.0, %v2092
        %v2094 = vpop.f32.mrb[0].mxu0
        %v2095 = vpop.f32.mrb[0].mxu0
        %v2096 = vadd.f32 0.0, %v2095
        %v2097 = vpop.f32.mrb[0].mxu0
        %2098 = vmatprep.mubr.bf16.mxu0 0
        %2099 = vmatmul.mubr.bf16.gmra.mrb[0].mxu0 %v1941
        %v2100 = vpop.f32.mrb[0].mxu0
        %v2101 = vadd.f32 0.0, %v2100
        %v2102 = vpop.f32.mrb[0].mxu0
        %v2103 = vpop.f32.mrb[0].mxu0
        %v2104 = vadd.f32 0.0, %v2103
        %v2105 = vpop.f32.mrb[0].mxu0
        %2106 = vdwg.mxu0
        %v2107 = vadd.f32 %v1748, %v1981
        %v2108 = vadd.f32 %v1749, %v1984
        %v2109 = vadd.f32 %v1750, %v1989
        %v2110 = vadd.f32 %v1751, %v1992
        %v2111 = vadd.f32 %v1752, %v1997
        %v2112 = vadd.f32 %v1753, %v2000
        %v2113 = vadd.f32 %v1754, %v2005
        %v2114 = vadd.f32 %v1755, %v2008
        %v2115 = vadd.f32 %v1756, %v2013
        %v2116 = vadd.f32 %v1757, %v2016
        %v2117 = vadd.f32 %v1758, %v2021
        %v2118 = vadd.f32 %v1759, %v2024
        %v2119 = vadd.f32 %v1760, %v2029
        %v2120 = vadd.f32 %v1761, %v2032
        %v2121 = vadd.f32 %v1762, %v2037
        %v2122 = vadd.f32 %v1763, %v2040
        %v2123 = vadd.f32 %v1764, %v2045
        %v2124 = vadd.f32 %v1765, %v2048
        %v2125 = vadd.f32 %v1766, %v2053
        %v2126 = vadd.f32 %v1767, %v2056
        %v2127 = vadd.f32 %v1768, %v2061
        %v2128 = vadd.f32 %v1769, %v2064
        %v2129 = vadd.f32 %v1770, %v2069
        %v2130 = vadd.f32 %v1771, %v2072
        %v2131 = vadd.f32 %v1772, %v2077
        %v2132 = vadd.f32 %v1773, %v2080
        %v2133 = vadd.f32 %v1774, %v2085
        %v2134 = vadd.f32 %v1775, %v2088
        %v2135 = vadd.f32 %v1776, %v2093
        %v2136 = vadd.f32 %v1777, %v2096
        %v2137 = vadd.f32 %v1778, %v2101
        %v2138 = vadd.f32 %v1779, %v2104
        %v2139 = vld [vmem:[%s1780] sm:$0xf]
        %v2140 = vld [vmem:[%s1780 + $0x4] sm:$0xf]
        %v2141 = vld [vmem:[%s1780 + $0x8] sm:$0x1]
        %v2142 = vld [vmem:[%s1780 + $0xc] sm:$0xf]
        %v2143 = vld [vmem:[%s1780 + $0x10] sm:$0xf]
        %v2144 = vld [vmem:[%s1780 + $0x14] sm:$0x1]
        %v2145 = vld [vmem:[%s1780 + $0x18] sm:$0xf]
        %v2146 = vld [vmem:[%s1780 + $0x1c] sm:$0xf]
        %v2147 = vld [vmem:[%s1780 + $0x20] sm:$0x1]
        %v2148 = vld [vmem:[%s1780 + $0x24] sm:$0xf]
        %v2149 = vld [vmem:[%s1780 + $0x28] sm:$0xf]
        %v2150 = vld [vmem:[%s1780 + $0x2c] sm:$0x1]
        %v2151 = vld [vmem:[%s1780 + $0x30] sm:$0xf]
        %v2152 = vld [vmem:[%s1780 + $0x34] sm:$0xf]
        %v2153 = vld [vmem:[%s1780 + $0x38] sm:$0x1]
        %v2154 = vld [vmem:[%s1780 + $0x3c] sm:$0xf]
        %v2155 = vld [vmem:[%s1780 + $0x40] sm:$0xf]
        %v2156 = vld [vmem:[%s1780 + $0x44] sm:$0x1]
        %v2157 = vld [vmem:[%s1780 + $0x48] sm:$0xf]
        %v2158 = vld [vmem:[%s1780 + $0x4c] sm:$0xf]
        %v2159 = vld [vmem:[%s1780 + $0x50] sm:$0x1]
        %v2160 = vld [vmem:[%s1780 + $0x54] sm:$0xf]
        %v2161 = vld [vmem:[%s1780 + $0x58] sm:$0xf]
        %v2162 = vld [vmem:[%s1780 + $0x5c] sm:$0x1]
        %v2163 = vld [vmem:[%s1780 + $0x60] sm:$0xf]
        %v2164 = vld [vmem:[%s1780 + $0x64] sm:$0xf]
        %v2165 = vld [vmem:[%s1780 + $0x68] sm:$0x1]
        %v2166 = vld [vmem:[%s1780 + $0x6c] sm:$0xf]
        %v2167 = vld [vmem:[%s1780 + $0x70] sm:$0xf]
        %v2168 = vld [vmem:[%s1780 + $0x74] sm:$0x1]
        %v2169 = vld [vmem:[%s1780 + $0x78] sm:$0xf]
        %v2170 = vld [vmem:[%s1780 + $0x7c] sm:$0xf]
        %v2171 = vld [vmem:[%s1780 + $0x80] sm:$0x1]
        %v2172 = vld [vmem:[%s1780 + $0x84] sm:$0xf]
        %v2173 = vld [vmem:[%s1780 + $0x88] sm:$0xf]
        %v2174 = vld [vmem:[%s1780 + $0x8c] sm:$0x1]
        %v2175 = vld [vmem:[%s1780 + $0x90] sm:$0xf]
        %v2176 = vld [vmem:[%s1780 + $0x94] sm:$0xf]
        %v2177 = vld [vmem:[%s1780 + $0x98] sm:$0x1]
        %v2178 = vld [vmem:[%s1780 + $0x9c] sm:$0xf]
        %v2179 = vld [vmem:[%s1780 + $0xa0] sm:$0xf]
        %v2180 = vld [vmem:[%s1780 + $0xa4] sm:$0x1]
        %v2181 = vld [vmem:[%s1780 + $0xa8] sm:$0xf]
        %v2182 = vld [vmem:[%s1780 + $0xac] sm:$0xf]
        %v2183 = vld [vmem:[%s1780 + $0xb0] sm:$0x1]
        %v2184 = vld [vmem:[%s1780 + $0xb4] sm:$0xf]
        %v2185 = vld [vmem:[%s1780 + $0xb8] sm:$0xf]
        %v2186 = vld [vmem:[%s1780 + $0xbc] sm:$0x1]
        %v2188 = vshrl.u32 %v2139, 16
        %v2190 = vrot.slane %v2188, 4
        %v2191 = vshll.u32 %v2139, 16
        %v2193 = vrot.slane %v2191, 5
        %v2194 = vor.u32 %v2190, %v2193
        %v2195 = vrot.slane %v2194, 4
        %v2197 = vshll.u32 %v2140, 16
        %v2199 = vrot.slane %v2197, 5
        %v2200 = vsel %vm382, %v2195, %v2199
        %v2201 = vshrl.u32 %v2140, 16
        %v2203 = vrot.slane %v2201, 4
        %v2204 = vor.u32 %v2203, %v2199
        %v2205 = vrot.slane %v2204, 4
        %v2207 = vshll.u32 %v2141, 16
        %v2209 = vrot.slane %v2207, 5
        %v2210 = vsel %vm382, %v2205, %v2209
        %v2212 = vshrl.u32 %v2142, 16
        %v2214 = vrot.slane %v2212, 4
        %v2215 = vshll.u32 %v2142, 16
        %v2217 = vrot.slane %v2215, 5
        %v2218 = vor.u32 %v2214, %v2217
        %v2219 = vrot.slane %v2218, 4
        %v2221 = vshll.u32 %v2143, 16
        %v2223 = vrot.slane %v2221, 5
        %v2224 = vsel %vm382, %v2219, %v2223
        %v2225 = vshrl.u32 %v2143, 16
        %v2227 = vrot.slane %v2225, 4
        %v2228 = vor.u32 %v2227, %v2223
        %v2229 = vrot.slane %v2228, 4
        %v2231 = vshll.u32 %v2144, 16
        %v2233 = vrot.slane %v2231, 5
        %v2234 = vsel %vm382, %v2229, %v2233
        %v2236 = vshrl.u32 %v2145, 16
        %v2238 = vrot.slane %v2236, 4
        %v2239 = vshll.u32 %v2145, 16
        %v2241 = vrot.slane %v2239, 5
        %v2242 = vor.u32 %v2238, %v2241
        %v2243 = vrot.slane %v2242, 4
        %v2245 = vshll.u32 %v2146, 16
        %v2247 = vrot.slane %v2245, 5
        %v2248 = vsel %vm382, %v2243, %v2247
        %v2249 = vshrl.u32 %v2146, 16
        %v2251 = vrot.slane %v2249, 4
        %v2252 = vor.u32 %v2251, %v2247
        %v2253 = vrot.slane %v2252, 4
        %v2255 = vshll.u32 %v2147, 16
        %v2257 = vrot.slane %v2255, 5
        %v2258 = vsel %vm382, %v2253, %v2257
        %v2260 = vshrl.u32 %v2148, 16
        %v2262 = vrot.slane %v2260, 4
        %v2263 = vshll.u32 %v2148, 16
        %v2265 = vrot.slane %v2263, 5
        %v2266 = vor.u32 %v2262, %v2265
        %v2267 = vrot.slane %v2266, 4
        %v2269 = vshll.u32 %v2149, 16
        %v2271 = vrot.slane %v2269, 5
        %v2272 = vsel %vm382, %v2267, %v2271
        %v2273 = vshrl.u32 %v2149, 16
        %v2275 = vrot.slane %v2273, 4
        %v2276 = vor.u32 %v2275, %v2271
        %v2277 = vrot.slane %v2276, 4
        %v2279 = vshll.u32 %v2150, 16
        %v2281 = vrot.slane %v2279, 5
        %v2282 = vsel %vm382, %v2277, %v2281
        %v2284 = vshrl.u32 %v2151, 16
        %v2286 = vrot.slane %v2284, 4
        %v2287 = vshll.u32 %v2151, 16
        %v2289 = vrot.slane %v2287, 5
        %v2290 = vor.u32 %v2286, %v2289
        %v2291 = vrot.slane %v2290, 4
        %v2293 = vshll.u32 %v2152, 16
        %v2295 = vrot.slane %v2293, 5
        %v2296 = vsel %vm382, %v2291, %v2295
        %v2297 = vshrl.u32 %v2152, 16
        %v2299 = vrot.slane %v2297, 4
        %v2300 = vor.u32 %v2299, %v2295
        %v2301 = vrot.slane %v2300, 4
        %v2303 = vshll.u32 %v2153, 16
        %v2305 = vrot.slane %v2303, 5
        %v2306 = vsel %vm382, %v2301, %v2305
        %v2308 = vshrl.u32 %v2154, 16
        %v2310 = vrot.slane %v2308, 4
        %v2311 = vshll.u32 %v2154, 16
        %v2313 = vrot.slane %v2311, 5
        %v2314 = vor.u32 %v2310, %v2313
        %v2315 = vrot.slane %v2314, 4
        %v2317 = vshll.u32 %v2155, 16
        %v2319 = vrot.slane %v2317, 5
        %v2320 = vsel %vm382, %v2315, %v2319
        %v2321 = vshrl.u32 %v2155, 16
        %v2323 = vrot.slane %v2321, 4
        %v2324 = vor.u32 %v2323, %v2319
        %v2325 = vrot.slane %v2324, 4
        %v2327 = vshll.u32 %v2156, 16
        %v2329 = vrot.slane %v2327, 5
        %v2330 = vsel %vm382, %v2325, %v2329
        %v2332 = vshrl.u32 %v2157, 16
        %v2334 = vrot.slane %v2332, 4
        %v2335 = vshll.u32 %v2157, 16
        %v2337 = vrot.slane %v2335, 5
        %v2338 = vor.u32 %v2334, %v2337
        %v2339 = vrot.slane %v2338, 4
        %v2341 = vshll.u32 %v2158, 16
        %v2343 = vrot.slane %v2341, 5
        %v2344 = vsel %vm382, %v2339, %v2343
        %v2345 = vshrl.u32 %v2158, 16
        %v2347 = vrot.slane %v2345, 4
        %v2348 = vor.u32 %v2347, %v2343
        %v2349 = vrot.slane %v2348, 4
        %v2351 = vshll.u32 %v2159, 16
        %v2353 = vrot.slane %v2351, 5
        %v2354 = vsel %vm382, %v2349, %v2353
        %v2356 = vshrl.u32 %v2160, 16
        %v2358 = vrot.slane %v2356, 4
        %v2359 = vshll.u32 %v2160, 16
        %v2361 = vrot.slane %v2359, 5
        %v2362 = vor.u32 %v2358, %v2361
        %v2363 = vrot.slane %v2362, 4
        %v2365 = vshll.u32 %v2161, 16
        %v2367 = vrot.slane %v2365, 5
        %v2368 = vsel %vm382, %v2363, %v2367
        %v2369 = vshrl.u32 %v2161, 16
        %v2371 = vrot.slane %v2369, 4
        %v2372 = vor.u32 %v2371, %v2367
        %v2373 = vrot.slane %v2372, 4
        %v2375 = vshll.u32 %v2162, 16
        %v2377 = vrot.slane %v2375, 5
        %v2378 = vsel %vm382, %v2373, %v2377
        %v2380 = vshrl.u32 %v2163, 16
        %v2382 = vrot.slane %v2380, 4
        %v2383 = vshll.u32 %v2163, 16
        %v2385 = vrot.slane %v2383, 5
        %v2386 = vor.u32 %v2382, %v2385
        %v2387 = vrot.slane %v2386, 4
        %v2389 = vshll.u32 %v2164, 16
        %v2391 = vrot.slane %v2389, 5
        %v2392 = vsel %vm382, %v2387, %v2391
        %v2393 = vshrl.u32 %v2164, 16
        %v2395 = vrot.slane %v2393, 4
        %v2396 = vor.u32 %v2395, %v2391
        %v2397 = vrot.slane %v2396, 4
        %v2399 = vshll.u32 %v2165, 16
        %v2401 = vrot.slane %v2399, 5
        %v2402 = vsel %vm382, %v2397, %v2401
        %v2404 = vshrl.u32 %v2166, 16
        %v2406 = vrot.slane %v2404, 4
        %v2407 = vshll.u32 %v2166, 16
        %v2409 = vrot.slane %v2407, 5
        %v2410 = vor.u32 %v2406, %v2409
        %v2411 = vrot.slane %v2410, 4
        %v2413 = vshll.u32 %v2167, 16
        %v2415 = vrot.slane %v2413, 5
        %v2416 = vsel %vm382, %v2411, %v2415
        %v2417 = vshrl.u32 %v2167, 16
        %v2419 = vrot.slane %v2417, 4
        %v2420 = vor.u32 %v2419, %v2415
        %v2421 = vrot.slane %v2420, 4
        %v2423 = vshll.u32 %v2168, 16
        %v2425 = vrot.slane %v2423, 5
        %v2426 = vsel %vm382, %v2421, %v2425
        %v2428 = vshrl.u32 %v2169, 16
        %v2430 = vrot.slane %v2428, 4
        %v2431 = vshll.u32 %v2169, 16
        %v2433 = vrot.slane %v2431, 5
        %v2434 = vor.u32 %v2430, %v2433
        %v2435 = vrot.slane %v2434, 4
        %v2437 = vshll.u32 %v2170, 16
        %v2439 = vrot.slane %v2437, 5
        %v2440 = vsel %vm382, %v2435, %v2439
        %v2441 = vshrl.u32 %v2170, 16
        %v2443 = vrot.slane %v2441, 4
        %v2444 = vor.u32 %v2443, %v2439
        %v2445 = vrot.slane %v2444, 4
        %v2447 = vshll.u32 %v2171, 16
        %v2449 = vrot.slane %v2447, 5
        %v2450 = vsel %vm382, %v2445, %v2449
        %v2452 = vshrl.u32 %v2172, 16
        %v2454 = vrot.slane %v2452, 4
        %v2455 = vshll.u32 %v2172, 16
        %v2457 = vrot.slane %v2455, 5
        %v2458 = vor.u32 %v2454, %v2457
        %v2459 = vrot.slane %v2458, 4
        %v2461 = vshll.u32 %v2173, 16
        %v2463 = vrot.slane %v2461, 5
        %v2464 = vsel %vm382, %v2459, %v2463
        %v2465 = vshrl.u32 %v2173, 16
        %v2467 = vrot.slane %v2465, 4
        %v2468 = vor.u32 %v2467, %v2463
        %v2469 = vrot.slane %v2468, 4
        %v2471 = vshll.u32 %v2174, 16
        %v2473 = vrot.slane %v2471, 5
        %v2474 = vsel %vm382, %v2469, %v2473
        %v2476 = vshrl.u32 %v2175, 16
        %v2478 = vrot.slane %v2476, 4
        %v2479 = vshll.u32 %v2175, 16
        %v2481 = vrot.slane %v2479, 5
        %v2482 = vor.u32 %v2478, %v2481
        %v2483 = vrot.slane %v2482, 4
        %v2485 = vshll.u32 %v2176, 16
        %v2487 = vrot.slane %v2485, 5
        %v2488 = vsel %vm382, %v2483, %v2487
        %v2489 = vshrl.u32 %v2176, 16
        %v2491 = vrot.slane %v2489, 4
        %v2492 = vor.u32 %v2491, %v2487
        %v2493 = vrot.slane %v2492, 4
        %v2495 = vshll.u32 %v2177, 16
        %v2497 = vrot.slane %v2495, 5
        %v2498 = vsel %vm382, %v2493, %v2497
        %v2500 = vshrl.u32 %v2178, 16
        %v2502 = vrot.slane %v2500, 4
        %v2503 = vshll.u32 %v2178, 16
        %v2505 = vrot.slane %v2503, 5
        %v2506 = vor.u32 %v2502, %v2505
        %v2507 = vrot.slane %v2506, 4
        %v2509 = vshll.u32 %v2179, 16
        %v2511 = vrot.slane %v2509, 5
        %v2512 = vsel %vm382, %v2507, %v2511
        %v2513 = vshrl.u32 %v2179, 16
        %v2515 = vrot.slane %v2513, 4
        %v2516 = vor.u32 %v2515, %v2511
        %v2517 = vrot.slane %v2516, 4
        %v2519 = vshll.u32 %v2180, 16
        %v2521 = vrot.slane %v2519, 5
        %v2522 = vsel %vm382, %v2517, %v2521
        %v2524 = vshrl.u32 %v2181, 16
        %v2526 = vrot.slane %v2524, 4
        %v2527 = vshll.u32 %v2181, 16
        %v2529 = vrot.slane %v2527, 5
        %v2530 = vor.u32 %v2526, %v2529
        %v2531 = vrot.slane %v2530, 4
        %v2533 = vshll.u32 %v2182, 16
        %v2535 = vrot.slane %v2533, 5
        %v2536 = vsel %vm382, %v2531, %v2535
        %v2537 = vshrl.u32 %v2182, 16
        %v2539 = vrot.slane %v2537, 4
        %v2540 = vor.u32 %v2539, %v2535
        %v2541 = vrot.slane %v2540, 4
        %v2543 = vshll.u32 %v2183, 16
        %v2545 = vrot.slane %v2543, 5
        %v2546 = vsel %vm382, %v2541, %v2545
        %v2548 = vshrl.u32 %v2184, 16
        %v2550 = vrot.slane %v2548, 4
        %v2551 = vshll.u32 %v2184, 16
        %v2553 = vrot.slane %v2551, 5
        %v2554 = vor.u32 %v2550, %v2553
        %v2555 = vrot.slane %v2554, 4
        %v2557 = vshll.u32 %v2185, 16
        %v2559 = vrot.slane %v2557, 5
        %v2560 = vsel %vm382, %v2555, %v2559
        %v2561 = vshrl.u32 %v2185, 16
        %v2563 = vrot.slane %v2561, 4
        %v2564 = vor.u32 %v2563, %v2559
        %v2565 = vrot.slane %v2564, 4
        %v2567 = vshll.u32 %v2186, 16
        %v2569 = vrot.slane %v2567, 5
        %v2570 = vsel %vm382, %v2565, %v2569
        %s2571 = scalar_lea.vmem %s1, 8
        %v2572 = vld [vmem:[%s2571] sm:$0x3]
        %v2573 = vunpack.c.l.b16 %v2200
        %v2574 = vunpack.c.l.b16 %v2210
        %v2575 = vunpack.c.l.b16 %v2224
        %v2576 = vunpack.c.l.b16 %v2234
        %v2577 = vunpack.c.l.b16 %v2248
        %v2578 = vunpack.c.l.b16 %v2258
        %v2579 = vunpack.c.l.b16 %v2272
        %v2580 = vunpack.c.l.b16 %v2282
        %v2581 = vunpack.c.l.b16 %v2296
        %v2582 = vunpack.c.l.b16 %v2306
        %v2583 = vunpack.c.l.b16 %v2320
        %v2584 = vunpack.c.l.b16 %v2330
        %v2585 = vunpack.c.l.b16 %v2344
        %v2586 = vunpack.c.l.b16 %v2354
        %v2587 = vunpack.c.l.b16 %v2368
        %v2588 = vunpack.c.l.b16 %v2378
        %v2589 = vunpack.c.l.b16 %v2392
        %v2590 = vunpack.c.l.b16 %v2402
        %v2591 = vunpack.c.l.b16 %v2416
        %v2592 = vunpack.c.l.b16 %v2426
        %v2593 = vunpack.c.l.b16 %v2440
        %v2594 = vunpack.c.l.b16 %v2450
        %v2595 = vunpack.c.l.b16 %v2464
        %v2596 = vunpack.c.l.b16 %v2474
        %v2597 = vunpack.c.l.b16 %v2488
        %v2598 = vunpack.c.l.b16 %v2498
        %v2599 = vunpack.c.l.b16 %v2512
        %v2600 = vunpack.c.l.b16 %v2522
        %v2601 = vunpack.c.l.b16 %v2536
        %v2602 = vunpack.c.l.b16 %v2546
        %v2603 = vunpack.c.l.b16 %v2560
        %v2604 = vunpack.c.l.b16 %v2570
        %v2605 = vpack.c.b16 %v2574, %v2573
        %v2606 = vpack.c.b16 %v2576, %v2575
        %v2607 = vpack.c.b16 %v2578, %v2577
        %v2608 = vpack.c.b16 %v2580, %v2579
        %v2609 = vpack.c.b16 %v2582, %v2581
        %v2610 = vpack.c.b16 %v2584, %v2583
        %v2611 = vpack.c.b16 %v2586, %v2585
        %v2612 = vpack.c.b16 %v2588, %v2587
        %v2613 = vpack.c.b16 %v2590, %v2589
        %v2614 = vpack.c.b16 %v2592, %v2591
        %v2615 = vpack.c.b16 %v2594, %v2593
        %v2616 = vpack.c.b16 %v2596, %v2595
        %v2617 = vpack.c.b16 %v2598, %v2597
        %v2618 = vpack.c.b16 %v2600, %v2599
        %v2619 = vpack.c.b16 %v2602, %v2601
        %v2620 = vpack.c.b16 %v2604, %v2603
        %v2622 = vsel %vm817, %v2605, 0
        %v2625 = vsel %vm817, %v2606, 0
        %v2628 = vsel %vm817, %v2607, 0
        %v2631 = vsel %vm817, %v2608, 0
        %v2634 = vsel %vm817, %v2609, 0
        %v2637 = vsel %vm817, %v2610, 0
        %v2640 = vsel %vm817, %v2611, 0
        %v2643 = vsel %vm817, %v2612, 0
        %v2646 = vsel %vm817, %v2613, 0
        %v2649 = vsel %vm817, %v2614, 0
        %v2652 = vsel %vm817, %v2615, 0
        %v2655 = vsel %vm817, %v2616, 0
        %v2658 = vsel %vm817, %v2617, 0
        %v2661 = vsel %vm817, %v2618, 0
        %v2664 = vsel %vm817, %v2619, 0
        %v2667 = vsel %vm817, %v2620, 0
        %v2670 = vsel %vm866, %v2572, 0
        %2672 = vmatprep.subr.bf16.mxu0 0
        %2673 = vmatpush1.bf16.msra.mxu0 %v2670
        %2674 = vmatprep.subr.bf16.mxu0 0
        %2675 = vmatpush1.bf16.msra.mxu0 0
        %2676 = vmatprep.subr.bf16.mxu0 0
        %2677 = vmatpush1.bf16.msra.mxu0 0
        %2678 = vmatprep.subr.bf16.mxu0 0
        %2679 = vmatpush1.bf16.msra.mxu0 0
        %2680 = vmatprep.subr.bf16.mxu0 0
        %2681 = vmatpush1.bf16.msra.mxu0 0
        %2682 = vmatprep.subr.bf16.mxu0 0
        %2683 = vmatpush1.bf16.msra.mxu0 0
        %2684 = vmatprep.subr.bf16.mxu0 0
        %2685 = vmatpush1.bf16.msra.mxu0 0
        %2686 = vmatprep.subr.bf16.mxu0 0
        %2687 = vmatpush1.bf16.msra.mxu0 0
        %2688 = vmatprep.subr.bf16.mxu0 0
        %2689 = vmatpush1.bf16.msra.mxu0 0
        %2690 = vmatprep.subr.bf16.mxu0 0
        %2691 = vmatpush1.bf16.msra.mxu0 0
        %2692 = vmatprep.subr.bf16.mxu0 0
        %2693 = vmatpush1.bf16.msra.mxu0 0
        %2694 = vmatprep.subr.bf16.mxu0 0
        %2695 = vmatpush1.bf16.msra.mxu0 0
        %2696 = vmatprep.subr.bf16.mxu0 0
        %2697 = vmatpush1.bf16.msra.mxu0 0
        %2698 = vmatprep.subr.bf16.mxu0 0
        %2699 = vmatpush1.bf16.msra.mxu0 0
        %2700 = vmatprep.subr.bf16.mxu0 0
        %2701 = vmatpush1.bf16.msra.mxu0 0
        %2702 = vmatprep.subr.bf16.mxu0 0
        %2703 = vmatpush1.bf16.msra.mxu0 0
        %2704 = vmatprep.mubr.bf16.mxu0 0
        %2705 = vmatmul.mubr.bf16.gmra.mrb[0].mxu0 %v2622
        %v2706 = vpop.f32.mrb[0].mxu0
        %v2707 = vadd.f32 0.0, %v2706
        %v2708 = vpop.f32.mrb[0].mxu0
        %v2709 = vpop.f32.mrb[0].mxu0
        %v2710 = vadd.f32 0.0, %v2709
        %v2711 = vpop.f32.mrb[0].mxu0
        %2712 = vmatprep.mubr.bf16.mxu0 0
        %2713 = vmatmul.mubr.bf16.gmra.mrb[0].mxu0 %v2625
        %v2714 = vpop.f32.mrb[0].mxu0
        %v2715 = vadd.f32 0.0, %v2714
        %v2716 = vpop.f32.mrb[0].mxu0
        %v2717 = vpop.f32.mrb[0].mxu0
        %v2718 = vadd.f32 0.0, %v2717
        %v2719 = vpop.f32.mrb[0].mxu0
        %2720 = vmatprep.mubr.bf16.mxu0 0
        %2721 = vmatmul.mubr.bf16.gmra.mrb[0].mxu0 %v2628
        %v2722 = vpop.f32.mrb[0].mxu0
        %v2723 = vadd.f32 0.0, %v2722
        %v2724 = vpop.f32.mrb[0].mxu0
        %v2725 = vpop.f32.mrb[0].mxu0
        %v2726 = vadd.f32 0.0, %v2725
        %v2727 = vpop.f32.mrb[0].mxu0
        %2728 = vmatprep.mubr.bf16.mxu0 0
        %2729 = vmatmul.mubr.bf16.gmra.mrb[0].mxu0 %v2631
        %v2730 = vpop.f32.mrb[0].mxu0
        %v2731 = vadd.f32 0.0, %v2730
        %v2732 = vpop.f32.mrb[0].mxu0
        %v2733 = vpop.f32.mrb[0].mxu0
        %v2734 = vadd.f32 0.0, %v2733
        %v2735 = vpop.f32.mrb[0].mxu0
        %2736 = vmatprep.mubr.bf16.mxu0 0
        %2737 = vmatmul.mubr.bf16.gmra.mrb[0].mxu0 %v2634
        %v2738 = vpop.f32.mrb[0].mxu0
        %v2739 = vadd.f32 0.0, %v2738
        %v2740 = vpop.f32.mrb[0].mxu0
        %v2741 = vpop.f32.mrb[0].mxu0
        %v2742 = vadd.f32 0.0, %v2741
        %v2743 = vpop.f32.mrb[0].mxu0
        %2744 = vmatprep.mubr.bf16.mxu0 0
        %2745 = vmatmul.mubr.bf16.gmra.mrb[0].mxu0 %v2637
        %v2746 = vpop.f32.mrb[0].mxu0
        %v2747 = vadd.f32 0.0, %v2746
        %v2748 = vpop.f32.mrb[0].mxu0
        %v2749 = vpop.f32.mrb[0].mxu0
        %v2750 = vadd.f32 0.0, %v2749
        %v2751 = vpop.f32.mrb[0].mxu0
        %2752 = vmatprep.mubr.bf16.mxu0 0
        %2753 = vmatmul.mubr.bf16.gmra.mrb[0].mxu0 %v2640
        %v2754 = vpop.f32.mrb[0].mxu0
        %v2755 = vadd.f32 0.0, %v2754
        %v2756 = vpop.f32.mrb[0].mxu0
        %v2757 = vpop.f32.mrb[0].mxu0
        %v2758 = vadd.f32 0.0, %v2757
        %v2759 = vpop.f32.mrb[0].mxu0
        %2760 = vmatprep.mubr.bf16.mxu0 0
        %2761 = vmatmul.mubr.bf16.gmra.mrb[0].mxu0 %v2643
        %v2762 = vpop.f32.mrb[0].mxu0
        %v2763 = vadd.f32 0.0, %v2762
        %v2764 = vpop.f32.mrb[0].mxu0
        %v2765 = vpop.f32.mrb[0].mxu0
        %v2766 = vadd.f32 0.0, %v2765
        %v2767 = vpop.f32.mrb[0].mxu0
        %2768 = vmatprep.mubr.bf16.mxu0 0
        %2769 = vmatmul.mubr.bf16.gmra.mrb[0].mxu0 %v2646
        %v2770 = vpop.f32.mrb[0].mxu0
        %v2771 = vadd.f32 0.0, %v2770
        %v2772 = vpop.f32.mrb[0].mxu0
        %v2773 = vpop.f32.mrb[0].mxu0
        %v2774 = vadd.f32 0.0, %v2773
        %v2775 = vpop.f32.mrb[0].mxu0
        %2776 = vmatprep.mubr.bf16.mxu0 0
        %2777 = vmatmul.mubr.bf16.gmra.mrb[0].mxu0 %v2649
        %v2778 = vpop.f32.mrb[0].mxu0
        %v2779 = vadd.f32 0.0, %v2778
        %v2780 = vpop.f32.mrb[0].mxu0
        %v2781 = vpop.f32.mrb[0].mxu0
        %v2782 = vadd.f32 0.0, %v2781
        %v2783 = vpop.f32.mrb[0].mxu0
        %2784 = vmatprep.mubr.bf16.mxu0 0
        %2785 = vmatmul.mubr.bf16.gmra.mrb[0].mxu0 %v2652
        %v2786 = vpop.f32.mrb[0].mxu0
        %v2787 = vadd.f32 0.0, %v2786
        %v2788 = vpop.f32.mrb[0].mxu0
        %v2789 = vpop.f32.mrb[0].mxu0
        %v2790 = vadd.f32 0.0, %v2789
        %v2791 = vpop.f32.mrb[0].mxu0
        %2792 = vmatprep.mubr.bf16.mxu0 0
        %2793 = vmatmul.mubr.bf16.gmra.mrb[0].mxu0 %v2655
        %v2794 = vpop.f32.mrb[0].mxu0
        %v2795 = vadd.f32 0.0, %v2794
        %v2796 = vpop.f32.mrb[0].mxu0
        %v2797 = vpop.f32.mrb[0].mxu0
        %v2798 = vadd.f32 0.0, %v2797
        %v2799 = vpop.f32.mrb[0].mxu0
        %2800 = vmatprep.mubr.bf16.mxu0 0
        %2801 = vmatmul.mubr.bf16.gmra.mrb[0].mxu0 %v2658
        %v2802 = vpop.f32.mrb[0].mxu0
        %v2803 = vadd.f32 0.0, %v2802
        %v2804 = vpop.f32.mrb[0].mxu0
        %v2805 = vpop.f32.mrb[0].mxu0
        %v2806 = vadd.f32 0.0, %v2805
        %v2807 = vpop.f32.mrb[0].mxu0
        %2808 = vmatprep.mubr.bf16.mxu0 0
        %2809 = vmatmul.mubr.bf16.gmra.mrb[0].mxu0 %v2661
        %v2810 = vpop.f32.mrb[0].mxu0
        %v2811 = vadd.f32 0.0, %v2810
        %v2812 = vpop.f32.mrb[0].mxu0
        %v2813 = vpop.f32.mrb[0].mxu0
        %v2814 = vadd.f32 0.0, %v2813
        %v2815 = vpop.f32.mrb[0].mxu0
        %2816 = vmatprep.mubr.bf16.mxu0 0
        %2817 = vmatmul.mubr.bf16.gmra.mrb[0].mxu0 %v2664
        %v2818 = vpop.f32.mrb[0].mxu0
        %v2819 = vadd.f32 0.0, %v2818
        %v2820 = vpop.f32.mrb[0].mxu0
        %v2821 = vpop.f32.mrb[0].mxu0
        %v2822 = vadd.f32 0.0, %v2821
        %v2823 = vpop.f32.mrb[0].mxu0
        %2824 = vmatprep.mubr.bf16.mxu0 0
        %2825 = vmatmul.mubr.bf16.gmra.mrb[0].mxu0 %v2667
        %v2826 = vpop.f32.mrb[0].mxu0
        %v2827 = vadd.f32 0.0, %v2826
        %v2828 = vpop.f32.mrb[0].mxu0
        %v2829 = vpop.f32.mrb[0].mxu0
        %v2830 = vadd.f32 0.0, %v2829
        %v2831 = vpop.f32.mrb[0].mxu0
        %2832 = vdwg.mxu0
        %v2833 = vadd.f32 %v2107, %v2707
        %v2834 = vadd.f32 %v2108, %v2710
        %v2835 = vadd.f32 %v2109, %v2715
        %v2836 = vadd.f32 %v2110, %v2718
        %v2837 = vadd.f32 %v2111, %v2723
        %v2838 = vadd.f32 %v2112, %v2726
        %v2839 = vadd.f32 %v2113, %v2731
        %v2840 = vadd.f32 %v2114, %v2734
        %v2841 = vadd.f32 %v2115, %v2739
        %v2842 = vadd.f32 %v2116, %v2742
        %v2843 = vadd.f32 %v2117, %v2747
        %v2844 = vadd.f32 %v2118, %v2750
        %v2845 = vadd.f32 %v2119, %v2755
        %v2846 = vadd.f32 %v2120, %v2758
        %v2847 = vadd.f32 %v2121, %v2763
        %v2848 = vadd.f32 %v2122, %v2766
        %v2849 = vadd.f32 %v2123, %v2771
        %v2850 = vadd.f32 %v2124, %v2774
        %v2851 = vadd.f32 %v2125, %v2779
        %v2852 = vadd.f32 %v2126, %v2782
        %v2853 = vadd.f32 %v2127, %v2787
        %v2854 = vadd.f32 %v2128, %v2790
        %v2855 = vadd.f32 %v2129, %v2795
        %v2856 = vadd.f32 %v2130, %v2798
        %v2857 = vadd.f32 %v2131, %v2803
        %v2858 = vadd.f32 %v2132, %v2806
        %v2859 = vadd.f32 %v2133, %v2811
        %v2860 = vadd.f32 %v2134, %v2814
        %v2861 = vadd.f32 %v2135, %v2819
        %v2862 = vadd.f32 %v2136, %v2822
        %v2863 = vadd.f32 %v2137, %v2827
        %v2864 = vadd.f32 %v2138, %v2830
        %v2865 = vld [vmem:[%s1780] sm:$0xe]
        %v2866 = vld [vmem:[%s1780 + $0xc] sm:$0xe]
        %v2867 = vld [vmem:[%s1780 + $0x18] sm:$0xe]
        %v2868 = vld [vmem:[%s1780 + $0x24] sm:$0xe]
        %v2869 = vld [vmem:[%s1780 + $0x30] sm:$0xe]
        %v2870 = vld [vmem:[%s1780 + $0x3c] sm:$0xe]
        %v2871 = vld [vmem:[%s1780 + $0x48] sm:$0xe]
        %v2872 = vld [vmem:[%s1780 + $0x54] sm:$0xe]
        %v2873 = vld [vmem:[%s1780 + $0x60] sm:$0xe]
        %v2874 = vld [vmem:[%s1780 + $0x6c] sm:$0xe]
        %v2875 = vld [vmem:[%s1780 + $0x78] sm:$0xe]
        %v2876 = vld [vmem:[%s1780 + $0x84] sm:$0xe]
        %v2877 = vld [vmem:[%s1780 + $0x90] sm:$0xe]
        %v2878 = vld [vmem:[%s1780 + $0x9c] sm:$0xe]
        %v2879 = vld [vmem:[%s1780 + $0xa8] sm:$0xe]
        %v2880 = vld [vmem:[%s1780 + $0xb4] sm:$0xe]
        %v2929 = vrot.slane %v2865, 5
        %v2930 = vrot.slane %v2929, 4
        %v2931 = vrot.slane %v2140, 5
        %v2932 = vsel %vm1373, %v2930, %v2931
        %v2933 = vrot.slane %v2931, 4
        %v2934 = vrot.slane %v2141, 5
        %v2935 = vsel %vm1373, %v2933, %v2934
        %v2936 = vrot.slane %v2866, 5
        %v2937 = vrot.slane %v2936, 4
        %v2938 = vrot.slane %v2143, 5
        %v2939 = vsel %vm1373, %v2937, %v2938
        %v2940 = vrot.slane %v2938, 4
        %v2941 = vrot.slane %v2144, 5
        %v2942 = vsel %vm1373, %v2940, %v2941
        %v2943 = vrot.slane %v2867, 5
        %v2944 = vrot.slane %v2943, 4
        %v2945 = vrot.slane %v2146, 5
        %v2946 = vsel %vm1373, %v2944, %v2945
        %v2947 = vrot.slane %v2945, 4
        %v2948 = vrot.slane %v2147, 5
        %v2949 = vsel %vm1373, %v2947, %v2948
        %v2950 = vrot.slane %v2868, 5
        %v2951 = vrot.slane %v2950, 4
        %v2952 = vrot.slane %v2149, 5
        %v2953 = vsel %vm1373, %v2951, %v2952
        %v2954 = vrot.slane %v2952, 4
        %v2955 = vrot.slane %v2150, 5
        %v2956 = vsel %vm1373, %v2954, %v2955
        %v2957 = vrot.slane %v2869, 5
        %v2958 = vrot.slane %v2957, 4
        %v2959 = vrot.slane %v2152, 5
        %v2960 = vsel %vm1373, %v2958, %v2959
        %v2961 = vrot.slane %v2959, 4
        %v2962 = vrot.slane %v2153, 5
        %v2963 = vsel %vm1373, %v2961, %v2962
        %v2964 = vrot.slane %v2870, 5
        %v2965 = vrot.slane %v2964, 4
        %v2966 = vrot.slane %v2155, 5
        %v2967 = vsel %vm1373, %v2965, %v2966
        %v2968 = vrot.slane %v2966, 4
        %v2969 = vrot.slane %v2156, 5
        %v2970 = vsel %vm1373, %v2968, %v2969
        %v2971 = vrot.slane %v2871, 5
        %v2972 = vrot.slane %v2971, 4
        %v2973 = vrot.slane %v2158, 5
        %v2974 = vsel %vm1373, %v2972, %v2973
        %v2975 = vrot.slane %v2973, 4
        %v2976 = vrot.slane %v2159, 5
        %v2977 = vsel %vm1373, %v2975, %v2976
        %v2978 = vrot.slane %v2872, 5
        %v2979 = vrot.slane %v2978, 4
        %v2980 = vrot.slane %v2161, 5
        %v2981 = vsel %vm1373, %v2979, %v2980
        %v2982 = vrot.slane %v2980, 4
        %v2983 = vrot.slane %v2162, 5
        %v2984 = vsel %vm1373, %v2982, %v2983
        %v2985 = vrot.slane %v2873, 5
        %v2986 = vrot.slane %v2985, 4
        %v2987 = vrot.slane %v2164, 5
        %v2988 = vsel %vm1373, %v2986, %v2987
        %v2989 = vrot.slane %v2987, 4
        %v2990 = vrot.slane %v2165, 5
        %v2991 = vsel %vm1373, %v2989, %v2990
        %v2992 = vrot.slane %v2874, 5
        %v2993 = vrot.slane %v2992, 4
        %v2994 = vrot.slane %v2167, 5
        %v2995 = vsel %vm1373, %v2993, %v2994
        %v2996 = vrot.slane %v2994, 4
        %v2997 = vrot.slane %v2168, 5
        %v2998 = vsel %vm1373, %v2996, %v2997
        %v2999 = vrot.slane %v2875, 5
        %v3000 = vrot.slane %v2999, 4
        %v3001 = vrot.slane %v2170, 5
        %v3002 = vsel %vm1373, %v3000, %v3001
        %v3003 = vrot.slane %v3001, 4
        %v3004 = vrot.slane %v2171, 5
        %v3005 = vsel %vm1373, %v3003, %v3004
        %v3006 = vrot.slane %v2876, 5
        %v3007 = vrot.slane %v3006, 4
        %v3008 = vrot.slane %v2173, 5
        %v3009 = vsel %vm1373, %v3007, %v3008
        %v3010 = vrot.slane %v3008, 4
        %v3011 = vrot.slane %v2174, 5
        %v3012 = vsel %vm1373, %v3010, %v3011
        %v3013 = vrot.slane %v2877, 5
        %v3014 = vrot.slane %v3013, 4
        %v3015 = vrot.slane %v2176, 5
        %v3016 = vsel %vm1373, %v3014, %v3015
        %v3017 = vrot.slane %v3015, 4
        %v3018 = vrot.slane %v2177, 5
        %v3019 = vsel %vm1373, %v3017, %v3018
        %v3020 = vrot.slane %v2878, 5
        %v3021 = vrot.slane %v3020, 4
        %v3022 = vrot.slane %v2179, 5
        %v3023 = vsel %vm1373, %v3021, %v3022
        %v3024 = vrot.slane %v3022, 4
        %v3025 = vrot.slane %v2180, 5
        %v3026 = vsel %vm1373, %v3024, %v3025
        %v3027 = vrot.slane %v2879, 5
        %v3028 = vrot.slane %v3027, 4
        %v3029 = vrot.slane %v2182, 5
        %v3030 = vsel %vm1373, %v3028, %v3029
        %v3031 = vrot.slane %v3029, 4
        %v3032 = vrot.slane %v2183, 5
        %v3033 = vsel %vm1373, %v3031, %v3032
        %v3034 = vrot.slane %v2880, 5
        %v3035 = vrot.slane %v3034, 4
        %v3036 = vrot.slane %v2185, 5
        %v3037 = vsel %vm1373, %v3035, %v3036
        %v3038 = vrot.slane %v3036, 4
        %v3039 = vrot.slane %v2186, 5
        %v3040 = vsel %vm1373, %v3038, %v3039
        %s3041 = scalar_lea.vmem %s1, 10
        %v3042 = vld [vmem:[%s3041] sm:$0x3]
        %v3043 = vunpack.c.l.b16 %v2932
        %v3044 = vunpack.c.l.b16 %v2935
        %v3045 = vunpack.c.l.b16 %v2939
        %v3046 = vunpack.c.l.b16 %v2942
        %v3047 = vunpack.c.l.b16 %v2946
        %v3048 = vunpack.c.l.b16 %v2949
        %v3049 = vunpack.c.l.b16 %v2953
        %v3050 = vunpack.c.l.b16 %v2956
        %v3051 = vunpack.c.l.b16 %v2960
        %v3052 = vunpack.c.l.b16 %v2963
        %v3053 = vunpack.c.l.b16 %v2967
        %v3054 = vunpack.c.l.b16 %v2970
        %v3055 = vunpack.c.l.b16 %v2974
        %v3056 = vunpack.c.l.b16 %v2977
        %v3057 = vunpack.c.l.b16 %v2981
        %v3058 = vunpack.c.l.b16 %v2984
        %v3059 = vunpack.c.l.b16 %v2988
        %v3060 = vunpack.c.l.b16 %v2991
        %v3061 = vunpack.c.l.b16 %v2995
        %v3062 = vunpack.c.l.b16 %v2998
        %v3063 = vunpack.c.l.b16 %v3002
        %v3064 = vunpack.c.l.b16 %v3005
        %v3065 = vunpack.c.l.b16 %v3009
        %v3066 = vunpack.c.l.b16 %v3012
        %v3067 = vunpack.c.l.b16 %v3016
        %v3068 = vunpack.c.l.b16 %v3019
        %v3069 = vunpack.c.l.b16 %v3023
        %v3070 = vunpack.c.l.b16 %v3026
        %v3071 = vunpack.c.l.b16 %v3030
        %v3072 = vunpack.c.l.b16 %v3033
        %v3073 = vunpack.c.l.b16 %v3037
        %v3074 = vunpack.c.l.b16 %v3040
        %v3075 = vpack.c.b16 %v3044, %v3043
        %v3076 = vpack.c.b16 %v3046, %v3045
        %v3077 = vpack.c.b16 %v3048, %v3047
        %v3078 = vpack.c.b16 %v3050, %v3049
        %v3079 = vpack.c.b16 %v3052, %v3051
        %v3080 = vpack.c.b16 %v3054, %v3053
        %v3081 = vpack.c.b16 %v3056, %v3055
        %v3082 = vpack.c.b16 %v3058, %v3057
        %v3083 = vpack.c.b16 %v3060, %v3059
        %v3084 = vpack.c.b16 %v3062, %v3061
        %v3085 = vpack.c.b16 %v3064, %v3063
        %v3086 = vpack.c.b16 %v3066, %v3065
        %v3087 = vpack.c.b16 %v3068, %v3067
        %v3088 = vpack.c.b16 %v3070, %v3069
        %v3089 = vpack.c.b16 %v3072, %v3071
        %v3090 = vpack.c.b16 %v3074, %v3073
        %v3092 = vsel %vm817, %v3075, 0
        %v3095 = vsel %vm817, %v3076, 0
        %v3098 = vsel %vm817, %v3077, 0
        %v3101 = vsel %vm817, %v3078, 0
        %v3104 = vsel %vm817, %v3079, 0
        %v3107 = vsel %vm817, %v3080, 0
        %v3110 = vsel %vm817, %v3081, 0
        %v3113 = vsel %vm817, %v3082, 0
        %v3116 = vsel %vm817, %v3083, 0
        %v3119 = vsel %vm817, %v3084, 0
        %v3122 = vsel %vm817, %v3085, 0
        %v3125 = vsel %vm817, %v3086, 0
        %v3128 = vsel %vm817, %v3087, 0
        %v3131 = vsel %vm817, %v3088, 0
        %v3134 = vsel %vm817, %v3089, 0
        %v3137 = vsel %vm817, %v3090, 0
        %v3140 = vsel %vm866, %v3042, 0
        %3142 = vmatprep.subr.bf16.mxu0 0
        %3143 = vmatpush1.bf16.msra.mxu0 %v3140
        %3144 = vmatprep.subr.bf16.mxu0 0
        %3145 = vmatpush1.bf16.msra.mxu0 0
        %3146 = vmatprep.subr.bf16.mxu0 0
        %3147 = vmatpush1.bf16.msra.mxu0 0
        %3148 = vmatprep.subr.bf16.mxu0 0
        %3149 = vmatpush1.bf16.msra.mxu0 0
        %3150 = vmatprep.subr.bf16.mxu0 0
        %3151 = vmatpush1.bf16.msra.mxu0 0
        %3152 = vmatprep.subr.bf16.mxu0 0
        %3153 = vmatpush1.bf16.msra.mxu0 0
        %3154 = vmatprep.subr.bf16.mxu0 0
        %3155 = vmatpush1.bf16.msra.mxu0 0
        %3156 = vmatprep.subr.bf16.mxu0 0
        %3157 = vmatpush1.bf16.msra.mxu0 0
        %3158 = vmatprep.subr.bf16.mxu0 0
        %3159 = vmatpush1.bf16.msra.mxu0 0
        %3160 = vmatprep.subr.bf16.mxu0 0
        %3161 = vmatpush1.bf16.msra.mxu0 0
        %3162 = vmatprep.subr.bf16.mxu0 0
        %3163 = vmatpush1.bf16.msra.mxu0 0
        %3164 = vmatprep.subr.bf16.mxu0 0
        %3165 = vmatpush1.bf16.msra.mxu0 0
        %3166 = vmatprep.subr.bf16.mxu0 0
        %3167 = vmatpush1.bf16.msra.mxu0 0
        %3168 = vmatprep.subr.bf16.mxu0 0
        %3169 = vmatpush1.bf16.msra.mxu0 0
        %3170 = vmatprep.subr.bf16.mxu0 0
        %3171 = vmatpush1.bf16.msra.mxu0 0
        %3172 = vmatprep.subr.bf16.mxu0 0
        %3173 = vmatpush1.bf16.msra.mxu0 0
        %3174 = vmatprep.mubr.bf16.mxu0 0
        %3175 = vmatmul.mubr.bf16.gmra.mrb[0].mxu0 %v3092
        %v3176 = vpop.f32.mrb[0].mxu0
        %v3177 = vadd.f32 0.0, %v3176
        %v3178 = vpop.f32.mrb[0].mxu0
        %v3179 = vpop.f32.mrb[0].mxu0
        %v3180 = vadd.f32 0.0, %v3179
        %v3181 = vpop.f32.mrb[0].mxu0
        %3182 = vmatprep.mubr.bf16.mxu0 0
        %3183 = vmatmul.mubr.bf16.gmra.mrb[0].mxu0 %v3095
        %v3184 = vpop.f32.mrb[0].mxu0
        %v3185 = vadd.f32 0.0, %v3184
        %v3186 = vpop.f32.mrb[0].mxu0
        %v3187 = vpop.f32.mrb[0].mxu0
        %v3188 = vadd.f32 0.0, %v3187
        %v3189 = vpop.f32.mrb[0].mxu0
        %3190 = vmatprep.mubr.bf16.mxu0 0
        %3191 = vmatmul.mubr.bf16.gmra.mrb[0].mxu0 %v3098
        %v3192 = vpop.f32.mrb[0].mxu0
        %v3193 = vadd.f32 0.0, %v3192
        %v3194 = vpop.f32.mrb[0].mxu0
        %v3195 = vpop.f32.mrb[0].mxu0
        %v3196 = vadd.f32 0.0, %v3195
        %v3197 = vpop.f32.mrb[0].mxu0
        %3198 = vmatprep.mubr.bf16.mxu0 0
        %3199 = vmatmul.mubr.bf16.gmra.mrb[0].mxu0 %v3101
        %v3200 = vpop.f32.mrb[0].mxu0
        %v3201 = vadd.f32 0.0, %v3200
        %v3202 = vpop.f32.mrb[0].mxu0
        %v3203 = vpop.f32.mrb[0].mxu0
        %v3204 = vadd.f32 0.0, %v3203
        %v3205 = vpop.f32.mrb[0].mxu0
        %3206 = vmatprep.mubr.bf16.mxu0 0
        %3207 = vmatmul.mubr.bf16.gmra.mrb[0].mxu0 %v3104
        %v3208 = vpop.f32.mrb[0].mxu0
        %v3209 = vadd.f32 0.0, %v3208
        %v3210 = vpop.f32.mrb[0].mxu0
        %v3211 = vpop.f32.mrb[0].mxu0
        %v3212 = vadd.f32 0.0, %v3211
        %v3213 = vpop.f32.mrb[0].mxu0
        %3214 = vmatprep.mubr.bf16.mxu0 0
        %3215 = vmatmul.mubr.bf16.gmra.mrb[0].mxu0 %v3107
        %v3216 = vpop.f32.mrb[0].mxu0
        %v3217 = vadd.f32 0.0, %v3216
        %v3218 = vpop.f32.mrb[0].mxu0
        %v3219 = vpop.f32.mrb[0].mxu0
        %v3220 = vadd.f32 0.0, %v3219
        %v3221 = vpop.f32.mrb[0].mxu0
        %3222 = vmatprep.mubr.bf16.mxu0 0
        %3223 = vmatmul.mubr.bf16.gmra.mrb[0].mxu0 %v3110
        %v3224 = vpop.f32.mrb[0].mxu0
        %v3225 = vadd.f32 0.0, %v3224
        %v3226 = vpop.f32.mrb[0].mxu0
        %v3227 = vpop.f32.mrb[0].mxu0
        %v3228 = vadd.f32 0.0, %v3227
        %v3229 = vpop.f32.mrb[0].mxu0
        %3230 = vmatprep.mubr.bf16.mxu0 0
        %3231 = vmatmul.mubr.bf16.gmra.mrb[0].mxu0 %v3113
        %v3232 = vpop.f32.mrb[0].mxu0
        %v3233 = vadd.f32 0.0, %v3232
        %v3234 = vpop.f32.mrb[0].mxu0
        %v3235 = vpop.f32.mrb[0].mxu0
        %v3236 = vadd.f32 0.0, %v3235
        %v3237 = vpop.f32.mrb[0].mxu0
        %3238 = vmatprep.mubr.bf16.mxu0 0
        %3239 = vmatmul.mubr.bf16.gmra.mrb[0].mxu0 %v3116
        %v3240 = vpop.f32.mrb[0].mxu0
        %v3241 = vadd.f32 0.0, %v3240
        %v3242 = vpop.f32.mrb[0].mxu0
        %v3243 = vpop.f32.mrb[0].mxu0
        %v3244 = vadd.f32 0.0, %v3243
        %v3245 = vpop.f32.mrb[0].mxu0
        %3246 = vmatprep.mubr.bf16.mxu0 0
        %3247 = vmatmul.mubr.bf16.gmra.mrb[0].mxu0 %v3119
        %v3248 = vpop.f32.mrb[0].mxu0
        %v3249 = vadd.f32 0.0, %v3248
        %v3250 = vpop.f32.mrb[0].mxu0
        %v3251 = vpop.f32.mrb[0].mxu0
        %v3252 = vadd.f32 0.0, %v3251
        %v3253 = vpop.f32.mrb[0].mxu0
        %3254 = vmatprep.mubr.bf16.mxu0 0
        %3255 = vmatmul.mubr.bf16.gmra.mrb[0].mxu0 %v3122
        %v3256 = vpop.f32.mrb[0].mxu0
        %v3257 = vadd.f32 0.0, %v3256
        %v3258 = vpop.f32.mrb[0].mxu0
        %v3259 = vpop.f32.mrb[0].mxu0
        %v3260 = vadd.f32 0.0, %v3259
        %v3261 = vpop.f32.mrb[0].mxu0
        %3262 = vmatprep.mubr.bf16.mxu0 0
        %3263 = vmatmul.mubr.bf16.gmra.mrb[0].mxu0 %v3125
        %v3264 = vpop.f32.mrb[0].mxu0
        %v3265 = vadd.f32 0.0, %v3264
        %v3266 = vpop.f32.mrb[0].mxu0
        %v3267 = vpop.f32.mrb[0].mxu0
        %v3268 = vadd.f32 0.0, %v3267
        %v3269 = vpop.f32.mrb[0].mxu0
        %3270 = vmatprep.mubr.bf16.mxu0 0
        %3271 = vmatmul.mubr.bf16.gmra.mrb[0].mxu0 %v3128
        %v3272 = vpop.f32.mrb[0].mxu0
        %v3273 = vadd.f32 0.0, %v3272
        %v3274 = vpop.f32.mrb[0].mxu0
        %v3275 = vpop.f32.mrb[0].mxu0
        %v3276 = vadd.f32 0.0, %v3275
        %v3277 = vpop.f32.mrb[0].mxu0
        %3278 = vmatprep.mubr.bf16.mxu0 0
        %3279 = vmatmul.mubr.bf16.gmra.mrb[0].mxu0 %v3131
        %v3280 = vpop.f32.mrb[0].mxu0
        %v3281 = vadd.f32 0.0, %v3280
        %v3282 = vpop.f32.mrb[0].mxu0
        %v3283 = vpop.f32.mrb[0].mxu0
        %v3284 = vadd.f32 0.0, %v3283
        %v3285 = vpop.f32.mrb[0].mxu0
        %3286 = vmatprep.mubr.bf16.mxu0 0
        %3287 = vmatmul.mubr.bf16.gmra.mrb[0].mxu0 %v3134
        %v3288 = vpop.f32.mrb[0].mxu0
        %v3289 = vadd.f32 0.0, %v3288
        %v3290 = vpop.f32.mrb[0].mxu0
        %v3291 = vpop.f32.mrb[0].mxu0
        %v3292 = vadd.f32 0.0, %v3291
        %v3293 = vpop.f32.mrb[0].mxu0
        %3294 = vmatprep.mubr.bf16.mxu0 0
        %3295 = vmatmul.mubr.bf16.gmra.mrb[0].mxu0 %v3137
        %v3296 = vpop.f32.mrb[0].mxu0
        %v3297 = vadd.f32 0.0, %v3296
        %v3298 = vpop.f32.mrb[0].mxu0
        %v3299 = vpop.f32.mrb[0].mxu0
        %v3300 = vadd.f32 0.0, %v3299
        %v3301 = vpop.f32.mrb[0].mxu0
        %3302 = vdwg.mxu0
        %v3303 = vadd.f32 %v2833, %v3177
        %v3304 = vadd.f32 %v2834, %v3180
        %v3305 = vadd.f32 %v2835, %v3185
        %v3306 = vadd.f32 %v2836, %v3188
        %v3307 = vadd.f32 %v2837, %v3193
        %v3308 = vadd.f32 %v2838, %v3196
        %v3309 = vadd.f32 %v2839, %v3201
        %v3310 = vadd.f32 %v2840, %v3204
        %v3311 = vadd.f32 %v2841, %v3209
        %v3312 = vadd.f32 %v2842, %v3212
        %v3313 = vadd.f32 %v2843, %v3217
        %v3314 = vadd.f32 %v2844, %v3220
        %v3315 = vadd.f32 %v2845, %v3225
        %v3316 = vadd.f32 %v2846, %v3228
        %v3317 = vadd.f32 %v2847, %v3233
        %v3318 = vadd.f32 %v2848, %v3236
        %v3319 = vadd.f32 %v2849, %v3241
        %v3320 = vadd.f32 %v2850, %v3244
        %v3321 = vadd.f32 %v2851, %v3249
        %v3322 = vadd.f32 %v2852, %v3252
        %v3323 = vadd.f32 %v2853, %v3257
        %v3324 = vadd.f32 %v2854, %v3260
        %v3325 = vadd.f32 %v2855, %v3265
        %v3326 = vadd.f32 %v2856, %v3268
        %v3327 = vadd.f32 %v2857, %v3273
        %v3328 = vadd.f32 %v2858, %v3276
        %v3329 = vadd.f32 %v2859, %v3281
        %v3330 = vadd.f32 %v2860, %v3284
        %v3331 = vadd.f32 %v2861, %v3289
        %v3332 = vadd.f32 %v2862, %v3292
        %v3333 = vadd.f32 %v2863, %v3297
        %v3334 = vadd.f32 %v2864, %v3300
        %s3335 = scalar_lea.vmem %s329, 24
        %v3336 = vld [vmem:[%s3335] sm:$0xf]
        %v3337 = vld [vmem:[%s3335 + $0x4] sm:$0xf]
        %v3338 = vld [vmem:[%s3335 + $0xc] sm:$0xf]
        %v3339 = vld [vmem:[%s3335 + $0x10] sm:$0xf]
        %v3340 = vld [vmem:[%s3335 + $0x18] sm:$0xf]
        %v3341 = vld [vmem:[%s3335 + $0x1c] sm:$0xf]
        %v3342 = vld [vmem:[%s3335 + $0x24] sm:$0xf]
        %v3343 = vld [vmem:[%s3335 + $0x28] sm:$0xf]
        %v3344 = vld [vmem:[%s3335 + $0x30] sm:$0xf]
        %v3345 = vld [vmem:[%s3335 + $0x34] sm:$0xf]
        %v3346 = vld [vmem:[%s3335 + $0x3c] sm:$0xf]
        %v3347 = vld [vmem:[%s3335 + $0x40] sm:$0xf]
        %v3348 = vld [vmem:[%s3335 + $0x48] sm:$0xf]
        %v3349 = vld [vmem:[%s3335 + $0x4c] sm:$0xf]
        %v3350 = vld [vmem:[%s3335 + $0x54] sm:$0xf]
        %v3351 = vld [vmem:[%s3335 + $0x58] sm:$0xf]
        %v3352 = vld [vmem:[%s3335 + $0x60] sm:$0xf]
        %v3353 = vld [vmem:[%s3335 + $0x64] sm:$0xf]
        %v3354 = vld [vmem:[%s3335 + $0x6c] sm:$0xf]
        %v3355 = vld [vmem:[%s3335 + $0x70] sm:$0xf]
        %v3356 = vld [vmem:[%s3335 + $0x78] sm:$0xf]
        %v3357 = vld [vmem:[%s3335 + $0x7c] sm:$0xf]
        %v3358 = vld [vmem:[%s3335 + $0x84] sm:$0xf]
        %v3359 = vld [vmem:[%s3335 + $0x88] sm:$0xf]
        %v3360 = vld [vmem:[%s3335 + $0x90] sm:$0xf]
        %v3361 = vld [vmem:[%s3335 + $0x94] sm:$0xf]
        %v3362 = vld [vmem:[%s3335 + $0x9c] sm:$0xf]
        %v3363 = vld [vmem:[%s3335 + $0xa0] sm:$0xf]
        %v3364 = vld [vmem:[%s3335 + $0xa8] sm:$0xf]
        %v3365 = vld [vmem:[%s3335 + $0xac] sm:$0xf]
        %v3366 = vld [vmem:[%s3335 + $0xb4] sm:$0xf]
        %v3367 = vld [vmem:[%s3335 + $0xb8] sm:$0xf]
        %s3368 = scalar_lea.vmem %s1, 12
        %v3369 = vld [vmem:[%s3368] sm:$0x3]
        %v3402 = vunpack.c.l.b16 %v3336
        %v3403 = vunpack.c.l.b16 %v3337
        %v3404 = vunpack.c.l.b16 %v3338
        %v3405 = vunpack.c.l.b16 %v3339
        %v3406 = vunpack.c.l.b16 %v3340
        %v3407 = vunpack.c.l.b16 %v3341
        %v3408 = vunpack.c.l.b16 %v3342
        %v3409 = vunpack.c.l.b16 %v3343
        %v3410 = vunpack.c.l.b16 %v3344
        %v3411 = vunpack.c.l.b16 %v3345
        %v3412 = vunpack.c.l.b16 %v3346
        %v3413 = vunpack.c.l.b16 %v3347
        %v3414 = vunpack.c.l.b16 %v3348
        %v3415 = vunpack.c.l.b16 %v3349
        %v3416 = vunpack.c.l.b16 %v3350
        %v3417 = vunpack.c.l.b16 %v3351
        %v3418 = vunpack.c.l.b16 %v3352
        %v3419 = vunpack.c.l.b16 %v3353
        %v3420 = vunpack.c.l.b16 %v3354
        %v3421 = vunpack.c.l.b16 %v3355
        %v3422 = vunpack.c.l.b16 %v3356
        %v3423 = vunpack.c.l.b16 %v3357
        %v3424 = vunpack.c.l.b16 %v3358
        %v3425 = vunpack.c.l.b16 %v3359
        %v3426 = vunpack.c.l.b16 %v3360
        %v3427 = vunpack.c.l.b16 %v3361
        %v3428 = vunpack.c.l.b16 %v3362
        %v3429 = vunpack.c.l.b16 %v3363
        %v3430 = vunpack.c.l.b16 %v3364
        %v3431 = vunpack.c.l.b16 %v3365
        %v3432 = vunpack.c.l.b16 %v3366
        %v3433 = vunpack.c.l.b16 %v3367
        %v3434 = vpack.c.b16 %v3403, %v3402
        %v3435 = vpack.c.b16 %v3405, %v3404
        %v3436 = vpack.c.b16 %v3407, %v3406
        %v3437 = vpack.c.b16 %v3409, %v3408
        %v3438 = vpack.c.b16 %v3411, %v3410
        %v3439 = vpack.c.b16 %v3413, %v3412
        %v3440 = vpack.c.b16 %v3415, %v3414
        %v3441 = vpack.c.b16 %v3417, %v3416
        %v3442 = vpack.c.b16 %v3419, %v3418
        %v3443 = vpack.c.b16 %v3421, %v3420
        %v3444 = vpack.c.b16 %v3423, %v3422
        %v3445 = vpack.c.b16 %v3425, %v3424
        %v3446 = vpack.c.b16 %v3427, %v3426
        %v3447 = vpack.c.b16 %v3429, %v3428
        %v3448 = vpack.c.b16 %v3431, %v3430
        %v3449 = vpack.c.b16 %v3433, %v3432
        %v3451 = vsel %vm817, %v3434, 0
        %v3454 = vsel %vm817, %v3435, 0
        %v3457 = vsel %vm817, %v3436, 0
        %v3460 = vsel %vm817, %v3437, 0
        %v3463 = vsel %vm817, %v3438, 0
        %v3466 = vsel %vm817, %v3439, 0
        %v3469 = vsel %vm817, %v3440, 0
        %v3472 = vsel %vm817, %v3441, 0
        %v3475 = vsel %vm817, %v3442, 0
        %v3478 = vsel %vm817, %v3443, 0
        %v3481 = vsel %vm817, %v3444, 0
        %v3484 = vsel %vm817, %v3445, 0
        %v3487 = vsel %vm817, %v3446, 0
        %v3490 = vsel %vm817, %v3447, 0
        %v3493 = vsel %vm817, %v3448, 0
        %v3496 = vsel %vm817, %v3449, 0
        %v3499 = vsel %vm866, %v3369, 0
        %3501 = vmatprep.subr.bf16.mxu0 0
        %3502 = vmatpush1.bf16.msra.mxu0 %v3499
        %3503 = vmatprep.subr.bf16.mxu0 0
        %3504 = vmatpush1.bf16.msra.mxu0 0
        %3505 = vmatprep.subr.bf16.mxu0 0
        %3506 = vmatpush1.bf16.msra.mxu0 0
        %3507 = vmatprep.subr.bf16.mxu0 0
        %3508 = vmatpush1.bf16.msra.mxu0 0
        %3509 = vmatprep.subr.bf16.mxu0 0
        %3510 = vmatpush1.bf16.msra.mxu0 0
        %3511 = vmatprep.subr.bf16.mxu0 0
        %3512 = vmatpush1.bf16.msra.mxu0 0
        %3513 = vmatprep.subr.bf16.mxu0 0
        %3514 = vmatpush1.bf16.msra.mxu0 0
        %3515 = vmatprep.subr.bf16.mxu0 0
        %3516 = vmatpush1.bf16.msra.mxu0 0
        %3517 = vmatprep.subr.bf16.mxu0 0
        %3518 = vmatpush1.bf16.msra.mxu0 0
        %3519 = vmatprep.subr.bf16.mxu0 0
        %3520 = vmatpush1.bf16.msra.mxu0 0
        %3521 = vmatprep.subr.bf16.mxu0 0
        %3522 = vmatpush1.bf16.msra.mxu0 0
        %3523 = vmatprep.subr.bf16.mxu0 0
        %3524 = vmatpush1.bf16.msra.mxu0 0
        %3525 = vmatprep.subr.bf16.mxu0 0
        %3526 = vmatpush1.bf16.msra.mxu0 0
        %3527 = vmatprep.subr.bf16.mxu0 0
        %3528 = vmatpush1.bf16.msra.mxu0 0
        %3529 = vmatprep.subr.bf16.mxu0 0
        %3530 = vmatpush1.bf16.msra.mxu0 0
        %3531 = vmatprep.subr.bf16.mxu0 0
        %3532 = vmatpush1.bf16.msra.mxu0 0
        %3533 = vmatprep.mubr.bf16.mxu0 0
        %3534 = vmatmul.mubr.bf16.gmra.mrb[0].mxu0 %v3451
        %v3535 = vpop.f32.mrb[0].mxu0
        %v3536 = vadd.f32 0.0, %v3535
        %v3537 = vpop.f32.mrb[0].mxu0
        %v3538 = vpop.f32.mrb[0].mxu0
        %v3539 = vadd.f32 0.0, %v3538
        %v3540 = vpop.f32.mrb[0].mxu0
        %3541 = vmatprep.mubr.bf16.mxu0 0
        %3542 = vmatmul.mubr.bf16.gmra.mrb[0].mxu0 %v3454
        %v3543 = vpop.f32.mrb[0].mxu0
        %v3544 = vadd.f32 0.0, %v3543
        %v3545 = vpop.f32.mrb[0].mxu0
        %v3546 = vpop.f32.mrb[0].mxu0
        %v3547 = vadd.f32 0.0, %v3546
        %v3548 = vpop.f32.mrb[0].mxu0
        %3549 = vmatprep.mubr.bf16.mxu0 0
        %3550 = vmatmul.mubr.bf16.gmra.mrb[0].mxu0 %v3457
        %v3551 = vpop.f32.mrb[0].mxu0
        %v3552 = vadd.f32 0.0, %v3551
        %v3553 = vpop.f32.mrb[0].mxu0
        %v3554 = vpop.f32.mrb[0].mxu0
        %v3555 = vadd.f32 0.0, %v3554
        %v3556 = vpop.f32.mrb[0].mxu0
        %3557 = vmatprep.mubr.bf16.mxu0 0
        %3558 = vmatmul.mubr.bf16.gmra.mrb[0].mxu0 %v3460
        %v3559 = vpop.f32.mrb[0].mxu0
        %v3560 = vadd.f32 0.0, %v3559
        %v3561 = vpop.f32.mrb[0].mxu0
        %v3562 = vpop.f32.mrb[0].mxu0
        %v3563 = vadd.f32 0.0, %v3562
        %v3564 = vpop.f32.mrb[0].mxu0
        %3565 = vmatprep.mubr.bf16.mxu0 0
        %3566 = vmatmul.mubr.bf16.gmra.mrb[0].mxu0 %v3463
        %v3567 = vpop.f32.mrb[0].mxu0
        %v3568 = vadd.f32 0.0, %v3567
        %v3569 = vpop.f32.mrb[0].mxu0
        %v3570 = vpop.f32.mrb[0].mxu0
        %v3571 = vadd.f32 0.0, %v3570
        %v3572 = vpop.f32.mrb[0].mxu0
        %3573 = vmatprep.mubr.bf16.mxu0 0
        %3574 = vmatmul.mubr.bf16.gmra.mrb[0].mxu0 %v3466
        %v3575 = vpop.f32.mrb[0].mxu0
        %v3576 = vadd.f32 0.0, %v3575
        %v3577 = vpop.f32.mrb[0].mxu0
        %v3578 = vpop.f32.mrb[0].mxu0
        %v3579 = vadd.f32 0.0, %v3578
        %v3580 = vpop.f32.mrb[0].mxu0
        %3581 = vmatprep.mubr.bf16.mxu0 0
        %3582 = vmatmul.mubr.bf16.gmra.mrb[0].mxu0 %v3469
        %v3583 = vpop.f32.mrb[0].mxu0
        %v3584 = vadd.f32 0.0, %v3583
        %v3585 = vpop.f32.mrb[0].mxu0
        %v3586 = vpop.f32.mrb[0].mxu0
        %v3587 = vadd.f32 0.0, %v3586
        %v3588 = vpop.f32.mrb[0].mxu0
        %3589 = vmatprep.mubr.bf16.mxu0 0
        %3590 = vmatmul.mubr.bf16.gmra.mrb[0].mxu0 %v3472
        %v3591 = vpop.f32.mrb[0].mxu0
        %v3592 = vadd.f32 0.0, %v3591
        %v3593 = vpop.f32.mrb[0].mxu0
        %v3594 = vpop.f32.mrb[0].mxu0
        %v3595 = vadd.f32 0.0, %v3594
        %v3596 = vpop.f32.mrb[0].mxu0
        %3597 = vmatprep.mubr.bf16.mxu0 0
        %3598 = vmatmul.mubr.bf16.gmra.mrb[0].mxu0 %v3475
        %v3599 = vpop.f32.mrb[0].mxu0
        %v3600 = vadd.f32 0.0, %v3599
        %v3601 = vpop.f32.mrb[0].mxu0
        %v3602 = vpop.f32.mrb[0].mxu0
        %v3603 = vadd.f32 0.0, %v3602
        %v3604 = vpop.f32.mrb[0].mxu0
        %3605 = vmatprep.mubr.bf16.mxu0 0
        %3606 = vmatmul.mubr.bf16.gmra.mrb[0].mxu0 %v3478
        %v3607 = vpop.f32.mrb[0].mxu0
        %v3608 = vadd.f32 0.0, %v3607
        %v3609 = vpop.f32.mrb[0].mxu0
        %v3610 = vpop.f32.mrb[0].mxu0
        %v3611 = vadd.f32 0.0, %v3610
        %v3612 = vpop.f32.mrb[0].mxu0
        %3613 = vmatprep.mubr.bf16.mxu0 0
        %3614 = vmatmul.mubr.bf16.gmra.mrb[0].mxu0 %v3481
        %v3615 = vpop.f32.mrb[0].mxu0
        %v3616 = vadd.f32 0.0, %v3615
        %v3617 = vpop.f32.mrb[0].mxu0
        %v3618 = vpop.f32.mrb[0].mxu0
        %v3619 = vadd.f32 0.0, %v3618
        %v3620 = vpop.f32.mrb[0].mxu0
        %3621 = vmatprep.mubr.bf16.mxu0 0
        %3622 = vmatmul.mubr.bf16.gmra.mrb[0].mxu0 %v3484
        %v3623 = vpop.f32.mrb[0].mxu0
        %v3624 = vadd.f32 0.0, %v3623
        %v3625 = vpop.f32.mrb[0].mxu0
        %v3626 = vpop.f32.mrb[0].mxu0
        %v3627 = vadd.f32 0.0, %v3626
        %v3628 = vpop.f32.mrb[0].mxu0
        %3629 = vmatprep.mubr.bf16.mxu0 0
        %3630 = vmatmul.mubr.bf16.gmra.mrb[0].mxu0 %v3487
        %v3631 = vpop.f32.mrb[0].mxu0
        %v3632 = vadd.f32 0.0, %v3631
        %v3633 = vpop.f32.mrb[0].mxu0
        %v3634 = vpop.f32.mrb[0].mxu0
        %v3635 = vadd.f32 0.0, %v3634
        %v3636 = vpop.f32.mrb[0].mxu0
        %3637 = vmatprep.mubr.bf16.mxu0 0
        %3638 = vmatmul.mubr.bf16.gmra.mrb[0].mxu0 %v3490
        %v3639 = vpop.f32.mrb[0].mxu0
        %v3640 = vadd.f32 0.0, %v3639
        %v3641 = vpop.f32.mrb[0].mxu0
        %v3642 = vpop.f32.mrb[0].mxu0
        %v3643 = vadd.f32 0.0, %v3642
        %v3644 = vpop.f32.mrb[0].mxu0
        %3645 = vmatprep.mubr.bf16.mxu0 0
        %3646 = vmatmul.mubr.bf16.gmra.mrb[0].mxu0 %v3493
        %v3647 = vpop.f32.mrb[0].mxu0
        %v3648 = vadd.f32 0.0, %v3647
        %v3649 = vpop.f32.mrb[0].mxu0
        %v3650 = vpop.f32.mrb[0].mxu0
        %v3651 = vadd.f32 0.0, %v3650
        %v3652 = vpop.f32.mrb[0].mxu0
        %3653 = vmatprep.mubr.bf16.mxu0 0
        %3654 = vmatmul.mubr.bf16.gmra.mrb[0].mxu0 %v3496
        %v3655 = vpop.f32.mrb[0].mxu0
        %v3656 = vadd.f32 0.0, %v3655
        %v3657 = vpop.f32.mrb[0].mxu0
        %v3658 = vpop.f32.mrb[0].mxu0
        %v3659 = vadd.f32 0.0, %v3658
        %v3660 = vpop.f32.mrb[0].mxu0
        %3661 = vdwg.mxu0
        %v3662 = vadd.f32 %v3303, %v3536
        %v3663 = vadd.f32 %v3304, %v3539
        %v3664 = vadd.f32 %v3305, %v3544
        %v3665 = vadd.f32 %v3306, %v3547
        %v3666 = vadd.f32 %v3307, %v3552
        %v3667 = vadd.f32 %v3308, %v3555
        %v3668 = vadd.f32 %v3309, %v3560
        %v3669 = vadd.f32 %v3310, %v3563
        %v3670 = vadd.f32 %v3311, %v3568
        %v3671 = vadd.f32 %v3312, %v3571
        %v3672 = vadd.f32 %v3313, %v3576
        %v3673 = vadd.f32 %v3314, %v3579
        %v3674 = vadd.f32 %v3315, %v3584
        %v3675 = vadd.f32 %v3316, %v3587
        %v3676 = vadd.f32 %v3317, %v3592
        %v3677 = vadd.f32 %v3318, %v3595
        %v3678 = vadd.f32 %v3319, %v3600
        %v3679 = vadd.f32 %v3320, %v3603
        %v3680 = vadd.f32 %v3321, %v3608
        %v3681 = vadd.f32 %v3322, %v3611
        %v3682 = vadd.f32 %v3323, %v3616
        %v3683 = vadd.f32 %v3324, %v3619
        %v3684 = vadd.f32 %v3325, %v3624
        %v3685 = vadd.f32 %v3326, %v3627
        %v3686 = vadd.f32 %v3327, %v3632
        %v3687 = vadd.f32 %v3328, %v3635
        %v3688 = vadd.f32 %v3329, %v3640
        %v3689 = vadd.f32 %v3330, %v3643
        %v3690 = vadd.f32 %v3331, %v3648
        %v3691 = vadd.f32 %v3332, %v3651
        %v3692 = vadd.f32 %v3333, %v3656
        %v3693 = vadd.f32 %v3334, %v3659
        %v3694 = vld [vmem:[%s3335] sm:$0xf]
        %v3695 = vld [vmem:[%s3335 + $0x4] sm:$0xf]
        %v3696 = vld [vmem:[%s3335 + $0x8] sm:$0x1]
        %v3697 = vld [vmem:[%s3335 + $0xc] sm:$0xf]
        %v3698 = vld [vmem:[%s3335 + $0x10] sm:$0xf]
        %v3699 = vld [vmem:[%s3335 + $0x14] sm:$0x1]
        %v3700 = vld [vmem:[%s3335 + $0x18] sm:$0xf]
        %v3701 = vld [vmem:[%s3335 + $0x1c] sm:$0xf]
        %v3702 = vld [vmem:[%s3335 + $0x20] sm:$0x1]
        %v3703 = vld [vmem:[%s3335 + $0x24] sm:$0xf]
        %v3704 = vld [vmem:[%s3335 + $0x28] sm:$0xf]
        %v3705 = vld [vmem:[%s3335 + $0x2c] sm:$0x1]
        %v3706 = vld [vmem:[%s3335 + $0x30] sm:$0xf]
        %v3707 = vld [vmem:[%s3335 + $0x34] sm:$0xf]
        %v3708 = vld [vmem:[%s3335 + $0x38] sm:$0x1]
        %v3709 = vld [vmem:[%s3335 + $0x3c] sm:$0xf]
        %v3710 = vld [vmem:[%s3335 + $0x40] sm:$0xf]
        %v3711 = vld [vmem:[%s3335 + $0x44] sm:$0x1]
        %v3712 = vld [vmem:[%s3335 + $0x48] sm:$0xf]
        %v3713 = vld [vmem:[%s3335 + $0x4c] sm:$0xf]
        %v3714 = vld [vmem:[%s3335 + $0x50] sm:$0x1]
        %v3715 = vld [vmem:[%s3335 + $0x54] sm:$0xf]
        %v3716 = vld [vmem:[%s3335 + $0x58] sm:$0xf]
        %v3717 = vld [vmem:[%s3335 + $0x5c] sm:$0x1]
        %v3718 = vld [vmem:[%s3335 + $0x60] sm:$0xf]
        %v3719 = vld [vmem:[%s3335 + $0x64] sm:$0xf]
        %v3720 = vld [vmem:[%s3335 + $0x68] sm:$0x1]
        %v3721 = vld [vmem:[%s3335 + $0x6c] sm:$0xf]
        %v3722 = vld [vmem:[%s3335 + $0x70] sm:$0xf]
        %v3723 = vld [vmem:[%s3335 + $0x74] sm:$0x1]
        %v3724 = vld [vmem:[%s3335 + $0x78] sm:$0xf]
        %v3725 = vld [vmem:[%s3335 + $0x7c] sm:$0xf]
        %v3726 = vld [vmem:[%s3335 + $0x80] sm:$0x1]
        %v3727 = vld [vmem:[%s3335 + $0x84] sm:$0xf]
        %v3728 = vld [vmem:[%s3335 + $0x88] sm:$0xf]
        %v3729 = vld [vmem:[%s3335 + $0x8c] sm:$0x1]
        %v3730 = vld [vmem:[%s3335 + $0x90] sm:$0xf]
        %v3731 = vld [vmem:[%s3335 + $0x94] sm:$0xf]
        %v3732 = vld [vmem:[%s3335 + $0x98] sm:$0x1]
        %v3733 = vld [vmem:[%s3335 + $0x9c] sm:$0xf]
        %v3734 = vld [vmem:[%s3335 + $0xa0] sm:$0xf]
        %v3735 = vld [vmem:[%s3335 + $0xa4] sm:$0x1]
        %v3736 = vld [vmem:[%s3335 + $0xa8] sm:$0xf]
        %v3737 = vld [vmem:[%s3335 + $0xac] sm:$0xf]
        %v3738 = vld [vmem:[%s3335 + $0xb0] sm:$0x1]
        %v3739 = vld [vmem:[%s3335 + $0xb4] sm:$0xf]
        %v3740 = vld [vmem:[%s3335 + $0xb8] sm:$0xf]
        %v3741 = vld [vmem:[%s3335 + $0xbc] sm:$0x1]
        %v3743 = vshrl.u32 %v3694, 16
        %v3745 = vrot.slane %v3743, 4
        %v3746 = vshll.u32 %v3694, 16
        %v3748 = vrot.slane %v3746, 5
        %v3749 = vor.u32 %v3745, %v3748
        %v3750 = vrot.slane %v3749, 4
        %v3752 = vshll.u32 %v3695, 16
        %v3754 = vrot.slane %v3752, 5
        %v3755 = vsel %vm382, %v3750, %v3754
        %v3756 = vshrl.u32 %v3695, 16
        %v3758 = vrot.slane %v3756, 4
        %v3759 = vor.u32 %v3758, %v3754
        %v3760 = vrot.slane %v3759, 4
        %v3762 = vshll.u32 %v3696, 16
        %v3764 = vrot.slane %v3762, 5
        %v3765 = vsel %vm382, %v3760, %v3764
        %v3767 = vshrl.u32 %v3697, 16
        %v3769 = vrot.slane %v3767, 4
        %v3770 = vshll.u32 %v3697, 16
        %v3772 = vrot.slane %v3770, 5
        %v3773 = vor.u32 %v3769, %v3772
        %v3774 = vrot.slane %v3773, 4
        %v3776 = vshll.u32 %v3698, 16
        %v3778 = vrot.slane %v3776, 5
        %v3779 = vsel %vm382, %v3774, %v3778
        %v3780 = vshrl.u32 %v3698, 16
        %v3782 = vrot.slane %v3780, 4
        %v3783 = vor.u32 %v3782, %v3778
        %v3784 = vrot.slane %v3783, 4
        %v3786 = vshll.u32 %v3699, 16
        %v3788 = vrot.slane %v3786, 5
        %v3789 = vsel %vm382, %v3784, %v3788
        %v3791 = vshrl.u32 %v3700, 16
        %v3793 = vrot.slane %v3791, 4
        %v3794 = vshll.u32 %v3700, 16
        %v3796 = vrot.slane %v3794, 5
        %v3797 = vor.u32 %v3793, %v3796
        %v3798 = vrot.slane %v3797, 4
        %v3800 = vshll.u32 %v3701, 16
        %v3802 = vrot.slane %v3800, 5
        %v3803 = vsel %vm382, %v3798, %v3802
        %v3804 = vshrl.u32 %v3701, 16
        %v3806 = vrot.slane %v3804, 4
        %v3807 = vor.u32 %v3806, %v3802
        %v3808 = vrot.slane %v3807, 4
        %v3810 = vshll.u32 %v3702, 16
        %v3812 = vrot.slane %v3810, 5
        %v3813 = vsel %vm382, %v3808, %v3812
        %v3815 = vshrl.u32 %v3703, 16
        %v3817 = vrot.slane %v3815, 4
        %v3818 = vshll.u32 %v3703, 16
        %v3820 = vrot.slane %v3818, 5
        %v3821 = vor.u32 %v3817, %v3820
        %v3822 = vrot.slane %v3821, 4
        %v3824 = vshll.u32 %v3704, 16
        %v3826 = vrot.slane %v3824, 5
        %v3827 = vsel %vm382, %v3822, %v3826
        %v3828 = vshrl.u32 %v3704, 16
        %v3830 = vrot.slane %v3828, 4
        %v3831 = vor.u32 %v3830, %v3826
        %v3832 = vrot.slane %v3831, 4
        %v3834 = vshll.u32 %v3705, 16
        %v3836 = vrot.slane %v3834, 5
        %v3837 = vsel %vm382, %v3832, %v3836
        %v3839 = vshrl.u32 %v3706, 16
        %v3841 = vrot.slane %v3839, 4
        %v3842 = vshll.u32 %v3706, 16
        %v3844 = vrot.slane %v3842, 5
        %v3845 = vor.u32 %v3841, %v3844
        %v3846 = vrot.slane %v3845, 4
        %v3848 = vshll.u32 %v3707, 16
        %v3850 = vrot.slane %v3848, 5
        %v3851 = vsel %vm382, %v3846, %v3850
        %v3852 = vshrl.u32 %v3707, 16
        %v3854 = vrot.slane %v3852, 4
        %v3855 = vor.u32 %v3854, %v3850
        %v3856 = vrot.slane %v3855, 4
        %v3858 = vshll.u32 %v3708, 16
        %v3860 = vrot.slane %v3858, 5
        %v3861 = vsel %vm382, %v3856, %v3860
        %v3863 = vshrl.u32 %v3709, 16
        %v3865 = vrot.slane %v3863, 4
        %v3866 = vshll.u32 %v3709, 16
        %v3868 = vrot.slane %v3866, 5
        %v3869 = vor.u32 %v3865, %v3868
        %v3870 = vrot.slane %v3869, 4
        %v3872 = vshll.u32 %v3710, 16
        %v3874 = vrot.slane %v3872, 5
        %v3875 = vsel %vm382, %v3870, %v3874
        %v3876 = vshrl.u32 %v3710, 16
        %v3878 = vrot.slane %v3876, 4
        %v3879 = vor.u32 %v3878, %v3874
        %v3880 = vrot.slane %v3879, 4
        %v3882 = vshll.u32 %v3711, 16
        %v3884 = vrot.slane %v3882, 5
        %v3885 = vsel %vm382, %v3880, %v3884
        %v3887 = vshrl.u32 %v3712, 16
        %v3889 = vrot.slane %v3887, 4
        %v3890 = vshll.u32 %v3712, 16
        %v3892 = vrot.slane %v3890, 5
        %v3893 = vor.u32 %v3889, %v3892
        %v3894 = vrot.slane %v3893, 4
        %v3896 = vshll.u32 %v3713, 16
        %v3898 = vrot.slane %v3896, 5
        %v3899 = vsel %vm382, %v3894, %v3898
        %v3900 = vshrl.u32 %v3713, 16
        %v3902 = vrot.slane %v3900, 4
        %v3903 = vor.u32 %v3902, %v3898
        %v3904 = vrot.slane %v3903, 4
        %v3906 = vshll.u32 %v3714, 16
        %v3908 = vrot.slane %v3906, 5
        %v3909 = vsel %vm382, %v3904, %v3908
        %v3911 = vshrl.u32 %v3715, 16
        %v3913 = vrot.slane %v3911, 4
        %v3914 = vshll.u32 %v3715, 16
        %v3916 = vrot.slane %v3914, 5
        %v3917 = vor.u32 %v3913, %v3916
        %v3918 = vrot.slane %v3917, 4
        %v3920 = vshll.u32 %v3716, 16
        %v3922 = vrot.slane %v3920, 5
        %v3923 = vsel %vm382, %v3918, %v3922
        %v3924 = vshrl.u32 %v3716, 16
        %v3926 = vrot.slane %v3924, 4
        %v3927 = vor.u32 %v3926, %v3922
        %v3928 = vrot.slane %v3927, 4
        %v3930 = vshll.u32 %v3717, 16
        %v3932 = vrot.slane %v3930, 5
        %v3933 = vsel %vm382, %v3928, %v3932
        %v3935 = vshrl.u32 %v3718, 16
        %v3937 = vrot.slane %v3935, 4
        %v3938 = vshll.u32 %v3718, 16
        %v3940 = vrot.slane %v3938, 5
        %v3941 = vor.u32 %v3937, %v3940
        %v3942 = vrot.slane %v3941, 4
        %v3944 = vshll.u32 %v3719, 16
        %v3946 = vrot.slane %v3944, 5
        %v3947 = vsel %vm382, %v3942, %v3946
        %v3948 = vshrl.u32 %v3719, 16
        %v3950 = vrot.slane %v3948, 4
        %v3951 = vor.u32 %v3950, %v3946
        %v3952 = vrot.slane %v3951, 4
        %v3954 = vshll.u32 %v3720, 16
        %v3956 = vrot.slane %v3954, 5
        %v3957 = vsel %vm382, %v3952, %v3956
        %v3959 = vshrl.u32 %v3721, 16
        %v3961 = vrot.slane %v3959, 4
        %v3962 = vshll.u32 %v3721, 16
        %v3964 = vrot.slane %v3962, 5
        %v3965 = vor.u32 %v3961, %v3964
        %v3966 = vrot.slane %v3965, 4
        %v3968 = vshll.u32 %v3722, 16
        %v3970 = vrot.slane %v3968, 5
        %v3971 = vsel %vm382, %v3966, %v3970
        %v3972 = vshrl.u32 %v3722, 16
        %v3974 = vrot.slane %v3972, 4
        %v3975 = vor.u32 %v3974, %v3970
        %v3976 = vrot.slane %v3975, 4
        %v3978 = vshll.u32 %v3723, 16
        %v3980 = vrot.slane %v3978, 5
        %v3981 = vsel %vm382, %v3976, %v3980
        %v3983 = vshrl.u32 %v3724, 16
        %v3985 = vrot.slane %v3983, 4
        %v3986 = vshll.u32 %v3724, 16
        %v3988 = vrot.slane %v3986, 5
        %v3989 = vor.u32 %v3985, %v3988
        %v3990 = vrot.slane %v3989, 4
        %v3992 = vshll.u32 %v3725, 16
        %v3994 = vrot.slane %v3992, 5
        %v3995 = vsel %vm382, %v3990, %v3994
        %v3996 = vshrl.u32 %v3725, 16
        %v3998 = vrot.slane %v3996, 4
        %v3999 = vor.u32 %v3998, %v3994
        %v4000 = vrot.slane %v3999, 4
        %v4002 = vshll.u32 %v3726, 16
        %v4004 = vrot.slane %v4002, 5
        %v4005 = vsel %vm382, %v4000, %v4004
        %v4007 = vshrl.u32 %v3727, 16
        %v4009 = vrot.slane %v4007, 4
        %v4010 = vshll.u32 %v3727, 16
        %v4012 = vrot.slane %v4010, 5
        %v4013 = vor.u32 %v4009, %v4012
        %v4014 = vrot.slane %v4013, 4
        %v4016 = vshll.u32 %v3728, 16
        %v4018 = vrot.slane %v4016, 5
        %v4019 = vsel %vm382, %v4014, %v4018
        %v4020 = vshrl.u32 %v3728, 16
        %v4022 = vrot.slane %v4020, 4
        %v4023 = vor.u32 %v4022, %v4018
        %v4024 = vrot.slane %v4023, 4
        %v4026 = vshll.u32 %v3729, 16
        %v4028 = vrot.slane %v4026, 5
        %v4029 = vsel %vm382, %v4024, %v4028
        %v4031 = vshrl.u32 %v3730, 16
        %v4033 = vrot.slane %v4031, 4
        %v4034 = vshll.u32 %v3730, 16
        %v4036 = vrot.slane %v4034, 5
        %v4037 = vor.u32 %v4033, %v4036
        %v4038 = vrot.slane %v4037, 4
        %v4040 = vshll.u32 %v3731, 16
        %v4042 = vrot.slane %v4040, 5
        %v4043 = vsel %vm382, %v4038, %v4042
        %v4044 = vshrl.u32 %v3731, 16
        %v4046 = vrot.slane %v4044, 4
        %v4047 = vor.u32 %v4046, %v4042
        %v4048 = vrot.slane %v4047, 4
        %v4050 = vshll.u32 %v3732, 16
        %v4052 = vrot.slane %v4050, 5
        %v4053 = vsel %vm382, %v4048, %v4052
        %v4055 = vshrl.u32 %v3733, 16
        %v4057 = vrot.slane %v4055, 4
        %v4058 = vshll.u32 %v3733, 16
        %v4060 = vrot.slane %v4058, 5
        %v4061 = vor.u32 %v4057, %v4060
        %v4062 = vrot.slane %v4061, 4
        %v4064 = vshll.u32 %v3734, 16
        %v4066 = vrot.slane %v4064, 5
        %v4067 = vsel %vm382, %v4062, %v4066
        %v4068 = vshrl.u32 %v3734, 16
        %v4070 = vrot.slane %v4068, 4
        %v4071 = vor.u32 %v4070, %v4066
        %v4072 = vrot.slane %v4071, 4
        %v4074 = vshll.u32 %v3735, 16
        %v4076 = vrot.slane %v4074, 5
        %v4077 = vsel %vm382, %v4072, %v4076
        %v4079 = vshrl.u32 %v3736, 16
        %v4081 = vrot.slane %v4079, 4
        %v4082 = vshll.u32 %v3736, 16
        %v4084 = vrot.slane %v4082, 5
        %v4085 = vor.u32 %v4081, %v4084
        %v4086 = vrot.slane %v4085, 4
        %v4088 = vshll.u32 %v3737, 16
        %v4090 = vrot.slane %v4088, 5
        %v4091 = vsel %vm382, %v4086, %v4090
        %v4092 = vshrl.u32 %v3737, 16
        %v4094 = vrot.slane %v4092, 4
        %v4095 = vor.u32 %v4094, %v4090
        %v4096 = vrot.slane %v4095, 4
        %v4098 = vshll.u32 %v3738, 16
        %v4100 = vrot.slane %v4098, 5
        %v4101 = vsel %vm382, %v4096, %v4100
        %v4103 = vshrl.u32 %v3739, 16
        %v4105 = vrot.slane %v4103, 4
        %v4106 = vshll.u32 %v3739, 16
        %v4108 = vrot.slane %v4106, 5
        %v4109 = vor.u32 %v4105, %v4108
        %v4110 = vrot.slane %v4109, 4
        %v4112 = vshll.u32 %v3740, 16
        %v4114 = vrot.slane %v4112, 5
        %v4115 = vsel %vm382, %v4110, %v4114
        %v4116 = vshrl.u32 %v3740, 16
        %v4118 = vrot.slane %v4116, 4
        %v4119 = vor.u32 %v4118, %v4114
        %v4120 = vrot.slane %v4119, 4
        %v4122 = vshll.u32 %v3741, 16
        %v4124 = vrot.slane %v4122, 5
        %v4125 = vsel %vm382, %v4120, %v4124
        %s4126 = scalar_lea.vmem %s1, 14
        %v4127 = vld [vmem:[%s4126] sm:$0x3]
        %v4128 = vunpack.c.l.b16 %v3755
        %v4129 = vunpack.c.l.b16 %v3765
        %v4130 = vunpack.c.l.b16 %v3779
        %v4131 = vunpack.c.l.b16 %v3789
        %v4132 = vunpack.c.l.b16 %v3803
        %v4133 = vunpack.c.l.b16 %v3813
        %v4134 = vunpack.c.l.b16 %v3827
        %v4135 = vunpack.c.l.b16 %v3837
        %v4136 = vunpack.c.l.b16 %v3851
        %v4137 = vunpack.c.l.b16 %v3861
        %v4138 = vunpack.c.l.b16 %v3875
        %v4139 = vunpack.c.l.b16 %v3885
        %v4140 = vunpack.c.l.b16 %v3899
        %v4141 = vunpack.c.l.b16 %v3909
        %v4142 = vunpack.c.l.b16 %v3923
        %v4143 = vunpack.c.l.b16 %v3933
        %v4144 = vunpack.c.l.b16 %v3947
        %v4145 = vunpack.c.l.b16 %v3957
        %v4146 = vunpack.c.l.b16 %v3971
        %v4147 = vunpack.c.l.b16 %v3981
        %v4148 = vunpack.c.l.b16 %v3995
        %v4149 = vunpack.c.l.b16 %v4005
        %v4150 = vunpack.c.l.b16 %v4019
        %v4151 = vunpack.c.l.b16 %v4029
        %v4152 = vunpack.c.l.b16 %v4043
        %v4153 = vunpack.c.l.b16 %v4053
        %v4154 = vunpack.c.l.b16 %v4067
        %v4155 = vunpack.c.l.b16 %v4077
        %v4156 = vunpack.c.l.b16 %v4091
        %v4157 = vunpack.c.l.b16 %v4101
        %v4158 = vunpack.c.l.b16 %v4115
        %v4159 = vunpack.c.l.b16 %v4125
        %v4160 = vpack.c.b16 %v4129, %v4128
        %v4161 = vpack.c.b16 %v4131, %v4130
        %v4162 = vpack.c.b16 %v4133, %v4132
        %v4163 = vpack.c.b16 %v4135, %v4134
        %v4164 = vpack.c.b16 %v4137, %v4136
        %v4165 = vpack.c.b16 %v4139, %v4138
        %v4166 = vpack.c.b16 %v4141, %v4140
        %v4167 = vpack.c.b16 %v4143, %v4142
        %v4168 = vpack.c.b16 %v4145, %v4144
        %v4169 = vpack.c.b16 %v4147, %v4146
        %v4170 = vpack.c.b16 %v4149, %v4148
        %v4171 = vpack.c.b16 %v4151, %v4150
        %v4172 = vpack.c.b16 %v4153, %v4152
        %v4173 = vpack.c.b16 %v4155, %v4154
        %v4174 = vpack.c.b16 %v4157, %v4156
        %v4175 = vpack.c.b16 %v4159, %v4158
        %v4177 = vsel %vm817, %v4160, 0
        %v4180 = vsel %vm817, %v4161, 0
        %v4183 = vsel %vm817, %v4162, 0
        %v4186 = vsel %vm817, %v4163, 0
        %v4189 = vsel %vm817, %v4164, 0
        %v4192 = vsel %vm817, %v4165, 0
        %v4195 = vsel %vm817, %v4166, 0
        %v4198 = vsel %vm817, %v4167, 0
        %v4201 = vsel %vm817, %v4168, 0
        %v4204 = vsel %vm817, %v4169, 0
        %v4207 = vsel %vm817, %v4170, 0
        %v4210 = vsel %vm817, %v4171, 0
        %v4213 = vsel %vm817, %v4172, 0
        %v4216 = vsel %vm817, %v4173, 0
        %v4219 = vsel %vm817, %v4174, 0
        %v4222 = vsel %vm817, %v4175, 0
        %v4225 = vsel %vm866, %v4127, 0
        %4227 = vmatprep.subr.bf16.mxu0 0
        %4228 = vmatpush1.bf16.msra.mxu0 %v4225
        %4229 = vmatprep.subr.bf16.mxu0 0
        %4230 = vmatpush1.bf16.msra.mxu0 0
        %4231 = vmatprep.subr.bf16.mxu0 0
        %4232 = vmatpush1.bf16.msra.mxu0 0
        %4233 = vmatprep.subr.bf16.mxu0 0
        %4234 = vmatpush1.bf16.msra.mxu0 0
        %4235 = vmatprep.subr.bf16.mxu0 0
        %4236 = vmatpush1.bf16.msra.mxu0 0
        %4237 = vmatprep.subr.bf16.mxu0 0
        %4238 = vmatpush1.bf16.msra.mxu0 0
        %4239 = vmatprep.subr.bf16.mxu0 0
        %4240 = vmatpush1.bf16.msra.mxu0 0
        %4241 = vmatprep.subr.bf16.mxu0 0
        %4242 = vmatpush1.bf16.msra.mxu0 0
        %4243 = vmatprep.subr.bf16.mxu0 0
        %4244 = vmatpush1.bf16.msra.mxu0 0
        %4245 = vmatprep.subr.bf16.mxu0 0
        %4246 = vmatpush1.bf16.msra.mxu0 0
        %4247 = vmatprep.subr.bf16.mxu0 0
        %4248 = vmatpush1.bf16.msra.mxu0 0
        %4249 = vmatprep.subr.bf16.mxu0 0
        %4250 = vmatpush1.bf16.msra.mxu0 0
        %4251 = vmatprep.subr.bf16.mxu0 0
        %4252 = vmatpush1.bf16.msra.mxu0 0
        %4253 = vmatprep.subr.bf16.mxu0 0
        %4254 = vmatpush1.bf16.msra.mxu0 0
        %4255 = vmatprep.subr.bf16.mxu0 0
        %4256 = vmatpush1.bf16.msra.mxu0 0
        %4257 = vmatprep.subr.bf16.mxu0 0
        %4258 = vmatpush1.bf16.msra.mxu0 0
        %4259 = vmatprep.mubr.bf16.mxu0 0
        %4260 = vmatmul.mubr.bf16.gmra.mrb[0].mxu0 %v4177
        %v4261 = vpop.f32.mrb[0].mxu0
        %v4262 = vadd.f32 0.0, %v4261
        %v4263 = vpop.f32.mrb[0].mxu0
        %v4264 = vpop.f32.mrb[0].mxu0
        %v4265 = vadd.f32 0.0, %v4264
        %v4266 = vpop.f32.mrb[0].mxu0
        %4267 = vmatprep.mubr.bf16.mxu0 0
        %4268 = vmatmul.mubr.bf16.gmra.mrb[0].mxu0 %v4180
        %v4269 = vpop.f32.mrb[0].mxu0
        %v4270 = vadd.f32 0.0, %v4269
        %v4271 = vpop.f32.mrb[0].mxu0
        %v4272 = vpop.f32.mrb[0].mxu0
        %v4273 = vadd.f32 0.0, %v4272
        %v4274 = vpop.f32.mrb[0].mxu0
        %4275 = vmatprep.mubr.bf16.mxu0 0
        %4276 = vmatmul.mubr.bf16.gmra.mrb[0].mxu0 %v4183
        %v4277 = vpop.f32.mrb[0].mxu0
        %v4278 = vadd.f32 0.0, %v4277
        %v4279 = vpop.f32.mrb[0].mxu0
        %v4280 = vpop.f32.mrb[0].mxu0
        %v4281 = vadd.f32 0.0, %v4280
        %v4282 = vpop.f32.mrb[0].mxu0
        %4283 = vmatprep.mubr.bf16.mxu0 0
        %4284 = vmatmul.mubr.bf16.gmra.mrb[0].mxu0 %v4186
        %v4285 = vpop.f32.mrb[0].mxu0
        %v4286 = vadd.f32 0.0, %v4285
        %v4287 = vpop.f32.mrb[0].mxu0
        %v4288 = vpop.f32.mrb[0].mxu0
        %v4289 = vadd.f32 0.0, %v4288
        %v4290 = vpop.f32.mrb[0].mxu0
        %4291 = vmatprep.mubr.bf16.mxu0 0
        %4292 = vmatmul.mubr.bf16.gmra.mrb[0].mxu0 %v4189
        %v4293 = vpop.f32.mrb[0].mxu0
        %v4294 = vadd.f32 0.0, %v4293
        %v4295 = vpop.f32.mrb[0].mxu0
        %v4296 = vpop.f32.mrb[0].mxu0
        %v4297 = vadd.f32 0.0, %v4296
        %v4298 = vpop.f32.mrb[0].mxu0
        %4299 = vmatprep.mubr.bf16.mxu0 0
        %4300 = vmatmul.mubr.bf16.gmra.mrb[0].mxu0 %v4192
        %v4301 = vpop.f32.mrb[0].mxu0
        %v4302 = vadd.f32 0.0, %v4301
        %v4303 = vpop.f32.mrb[0].mxu0
        %v4304 = vpop.f32.mrb[0].mxu0
        %v4305 = vadd.f32 0.0, %v4304
        %v4306 = vpop.f32.mrb[0].mxu0
        %4307 = vmatprep.mubr.bf16.mxu0 0
        %4308 = vmatmul.mubr.bf16.gmra.mrb[0].mxu0 %v4195
        %v4309 = vpop.f32.mrb[0].mxu0
        %v4310 = vadd.f32 0.0, %v4309
        %v4311 = vpop.f32.mrb[0].mxu0
        %v4312 = vpop.f32.mrb[0].mxu0
        %v4313 = vadd.f32 0.0, %v4312
        %v4314 = vpop.f32.mrb[0].mxu0
        %4315 = vmatprep.mubr.bf16.mxu0 0
        %4316 = vmatmul.mubr.bf16.gmra.mrb[0].mxu0 %v4198
        %v4317 = vpop.f32.mrb[0].mxu0
        %v4318 = vadd.f32 0.0, %v4317
        %v4319 = vpop.f32.mrb[0].mxu0
        %v4320 = vpop.f32.mrb[0].mxu0
        %v4321 = vadd.f32 0.0, %v4320
        %v4322 = vpop.f32.mrb[0].mxu0
        %4323 = vmatprep.mubr.bf16.mxu0 0
        %4324 = vmatmul.mubr.bf16.gmra.mrb[0].mxu0 %v4201
        %v4325 = vpop.f32.mrb[0].mxu0
        %v4326 = vadd.f32 0.0, %v4325
        %v4327 = vpop.f32.mrb[0].mxu0
        %v4328 = vpop.f32.mrb[0].mxu0
        %v4329 = vadd.f32 0.0, %v4328
        %v4330 = vpop.f32.mrb[0].mxu0
        %4331 = vmatprep.mubr.bf16.mxu0 0
        %4332 = vmatmul.mubr.bf16.gmra.mrb[0].mxu0 %v4204
        %v4333 = vpop.f32.mrb[0].mxu0
        %v4334 = vadd.f32 0.0, %v4333
        %v4335 = vpop.f32.mrb[0].mxu0
        %v4336 = vpop.f32.mrb[0].mxu0
        %v4337 = vadd.f32 0.0, %v4336
        %v4338 = vpop.f32.mrb[0].mxu0
        %4339 = vmatprep.mubr.bf16.mxu0 0
        %4340 = vmatmul.mubr.bf16.gmra.mrb[0].mxu0 %v4207
        %v4341 = vpop.f32.mrb[0].mxu0
        %v4342 = vadd.f32 0.0, %v4341
        %v4343 = vpop.f32.mrb[0].mxu0
        %v4344 = vpop.f32.mrb[0].mxu0
        %v4345 = vadd.f32 0.0, %v4344
        %v4346 = vpop.f32.mrb[0].mxu0
        %4347 = vmatprep.mubr.bf16.mxu0 0
        %4348 = vmatmul.mubr.bf16.gmra.mrb[0].mxu0 %v4210
        %v4349 = vpop.f32.mrb[0].mxu0
        %v4350 = vadd.f32 0.0, %v4349
        %v4351 = vpop.f32.mrb[0].mxu0
        %v4352 = vpop.f32.mrb[0].mxu0
        %v4353 = vadd.f32 0.0, %v4352
        %v4354 = vpop.f32.mrb[0].mxu0
        %4355 = vmatprep.mubr.bf16.mxu0 0
        %4356 = vmatmul.mubr.bf16.gmra.mrb[0].mxu0 %v4213
        %v4357 = vpop.f32.mrb[0].mxu0
        %v4358 = vadd.f32 0.0, %v4357
        %v4359 = vpop.f32.mrb[0].mxu0
        %v4360 = vpop.f32.mrb[0].mxu0
        %v4361 = vadd.f32 0.0, %v4360
        %v4362 = vpop.f32.mrb[0].mxu0
        %4363 = vmatprep.mubr.bf16.mxu0 0
        %4364 = vmatmul.mubr.bf16.gmra.mrb[0].mxu0 %v4216
        %v4365 = vpop.f32.mrb[0].mxu0
        %v4366 = vadd.f32 0.0, %v4365
        %v4367 = vpop.f32.mrb[0].mxu0
        %v4368 = vpop.f32.mrb[0].mxu0
        %v4369 = vadd.f32 0.0, %v4368
        %v4370 = vpop.f32.mrb[0].mxu0
        %4371 = vmatprep.mubr.bf16.mxu0 0
        %4372 = vmatmul.mubr.bf16.gmra.mrb[0].mxu0 %v4219
        %v4373 = vpop.f32.mrb[0].mxu0
        %v4374 = vadd.f32 0.0, %v4373
        %v4375 = vpop.f32.mrb[0].mxu0
        %v4376 = vpop.f32.mrb[0].mxu0
        %v4377 = vadd.f32 0.0, %v4376
        %v4378 = vpop.f32.mrb[0].mxu0
        %4379 = vmatprep.mubr.bf16.mxu0 0
        %4380 = vmatmul.mubr.bf16.gmra.mrb[0].mxu0 %v4222
        %v4381 = vpop.f32.mrb[0].mxu0
        %v4382 = vadd.f32 0.0, %v4381
        %v4383 = vpop.f32.mrb[0].mxu0
        %v4384 = vpop.f32.mrb[0].mxu0
        %v4385 = vadd.f32 0.0, %v4384
        %v4386 = vpop.f32.mrb[0].mxu0
        %4387 = vdwg.mxu0
        %v4388 = vadd.f32 %v3662, %v4262
        %v4389 = vadd.f32 %v3663, %v4265
        %v4390 = vadd.f32 %v3664, %v4270
        %v4391 = vadd.f32 %v3665, %v4273
        %v4392 = vadd.f32 %v3666, %v4278
        %v4393 = vadd.f32 %v3667, %v4281
        %v4394 = vadd.f32 %v3668, %v4286
        %v4395 = vadd.f32 %v3669, %v4289
        %v4396 = vadd.f32 %v3670, %v4294
        %v4397 = vadd.f32 %v3671, %v4297
        %v4398 = vadd.f32 %v3672, %v4302
        %v4399 = vadd.f32 %v3673, %v4305
        %v4400 = vadd.f32 %v3674, %v4310
        %v4401 = vadd.f32 %v3675, %v4313
        %v4402 = vadd.f32 %v3676, %v4318
        %v4403 = vadd.f32 %v3677, %v4321
        %v4404 = vadd.f32 %v3678, %v4326
        %v4405 = vadd.f32 %v3679, %v4329
        %v4406 = vadd.f32 %v3680, %v4334
        %v4407 = vadd.f32 %v3681, %v4337
        %v4408 = vadd.f32 %v3682, %v4342
        %v4409 = vadd.f32 %v3683, %v4345
        %v4410 = vadd.f32 %v3684, %v4350
        %v4411 = vadd.f32 %v3685, %v4353
        %v4412 = vadd.f32 %v3686, %v4358
        %v4413 = vadd.f32 %v3687, %v4361
        %v4414 = vadd.f32 %v3688, %v4366
        %v4415 = vadd.f32 %v3689, %v4369
        %v4416 = vadd.f32 %v3690, %v4374
        %v4417 = vadd.f32 %v3691, %v4377
        %v4418 = vadd.f32 %v3692, %v4382
        %v4419 = vadd.f32 %v3693, %v4385
        %v4420 = vld [vmem:[%s3335] sm:$0xe]
        %v4421 = vld [vmem:[%s3335 + $0xc] sm:$0xe]
        %v4422 = vld [vmem:[%s3335 + $0x18] sm:$0xe]
        %v4423 = vld [vmem:[%s3335 + $0x24] sm:$0xe]
        %v4424 = vld [vmem:[%s3335 + $0x30] sm:$0xe]
        %v4425 = vld [vmem:[%s3335 + $0x3c] sm:$0xe]
        %v4426 = vld [vmem:[%s3335 + $0x48] sm:$0xe]
        %v4427 = vld [vmem:[%s3335 + $0x54] sm:$0xe]
        %v4428 = vld [vmem:[%s3335 + $0x60] sm:$0xe]
        %v4429 = vld [vmem:[%s3335 + $0x6c] sm:$0xe]
        %v4430 = vld [vmem:[%s3335 + $0x78] sm:$0xe]
        %v4431 = vld [vmem:[%s3335 + $0x84] sm:$0xe]
        %v4432 = vld [vmem:[%s3335 + $0x90] sm:$0xe]
        %v4433 = vld [vmem:[%s3335 + $0x9c] sm:$0xe]
        %v4434 = vld [vmem:[%s3335 + $0xa8] sm:$0xe]
        %v4435 = vld [vmem:[%s3335 + $0xb4] sm:$0xe]
        %v4484 = vrot.slane %v4420, 5
        %v4485 = vrot.slane %v4484, 4
        %v4486 = vrot.slane %v3695, 5
        %v4487 = vsel %vm1373, %v4485, %v4486
        %v4488 = vrot.slane %v4486, 4
        %v4489 = vrot.slane %v3696, 5
        %v4490 = vsel %vm1373, %v4488, %v4489
        %v4491 = vrot.slane %v4421, 5
        %v4492 = vrot.slane %v4491, 4
        %v4493 = vrot.slane %v3698, 5
        %v4494 = vsel %vm1373, %v4492, %v4493
        %v4495 = vrot.slane %v4493, 4
        %v4496 = vrot.slane %v3699, 5
        %v4497 = vsel %vm1373, %v4495, %v4496
        %v4498 = vrot.slane %v4422, 5
        %v4499 = vrot.slane %v4498, 4
        %v4500 = vrot.slane %v3701, 5
        %v4501 = vsel %vm1373, %v4499, %v4500
        %v4502 = vrot.slane %v4500, 4
        %v4503 = vrot.slane %v3702, 5
        %v4504 = vsel %vm1373, %v4502, %v4503
        %v4505 = vrot.slane %v4423, 5
        %v4506 = vrot.slane %v4505, 4
        %v4507 = vrot.slane %v3704, 5
        %v4508 = vsel %vm1373, %v4506, %v4507
        %v4509 = vrot.slane %v4507, 4
        %v4510 = vrot.slane %v3705, 5
        %v4511 = vsel %vm1373, %v4509, %v4510
        %v4512 = vrot.slane %v4424, 5
        %v4513 = vrot.slane %v4512, 4
        %v4514 = vrot.slane %v3707, 5
        %v4515 = vsel %vm1373, %v4513, %v4514
        %v4516 = vrot.slane %v4514, 4
        %v4517 = vrot.slane %v3708, 5
        %v4518 = vsel %vm1373, %v4516, %v4517
        %v4519 = vrot.slane %v4425, 5
        %v4520 = vrot.slane %v4519, 4
        %v4521 = vrot.slane %v3710, 5
        %v4522 = vsel %vm1373, %v4520, %v4521
        %v4523 = vrot.slane %v4521, 4
        %v4524 = vrot.slane %v3711, 5
        %v4525 = vsel %vm1373, %v4523, %v4524
        %v4526 = vrot.slane %v4426, 5
        %v4527 = vrot.slane %v4526, 4
        %v4528 = vrot.slane %v3713, 5
        %v4529 = vsel %vm1373, %v4527, %v4528
        %v4530 = vrot.slane %v4528, 4
        %v4531 = vrot.slane %v3714, 5
        %v4532 = vsel %vm1373, %v4530, %v4531
        %v4533 = vrot.slane %v4427, 5
        %v4534 = vrot.slane %v4533, 4
        %v4535 = vrot.slane %v3716, 5
        %v4536 = vsel %vm1373, %v4534, %v4535
        %v4537 = vrot.slane %v4535, 4
        %v4538 = vrot.slane %v3717, 5
        %v4539 = vsel %vm1373, %v4537, %v4538
        %v4540 = vrot.slane %v4428, 5
        %v4541 = vrot.slane %v4540, 4
        %v4542 = vrot.slane %v3719, 5
        %v4543 = vsel %vm1373, %v4541, %v4542
        %v4544 = vrot.slane %v4542, 4
        %v4545 = vrot.slane %v3720, 5
        %v4546 = vsel %vm1373, %v4544, %v4545
        %v4547 = vrot.slane %v4429, 5
        %v4548 = vrot.slane %v4547, 4
        %v4549 = vrot.slane %v3722, 5
        %v4550 = vsel %vm1373, %v4548, %v4549
        %v4551 = vrot.slane %v4549, 4
        %v4552 = vrot.slane %v3723, 5
        %v4553 = vsel %vm1373, %v4551, %v4552
        %v4554 = vrot.slane %v4430, 5
        %v4555 = vrot.slane %v4554, 4
        %v4556 = vrot.slane %v3725, 5
        %v4557 = vsel %vm1373, %v4555, %v4556
        %v4558 = vrot.slane %v4556, 4
        %v4559 = vrot.slane %v3726, 5
        %v4560 = vsel %vm1373, %v4558, %v4559
        %v4561 = vrot.slane %v4431, 5
        %v4562 = vrot.slane %v4561, 4
        %v4563 = vrot.slane %v3728, 5
        %v4564 = vsel %vm1373, %v4562, %v4563
        %v4565 = vrot.slane %v4563, 4
        %v4566 = vrot.slane %v3729, 5
        %v4567 = vsel %vm1373, %v4565, %v4566
        %v4568 = vrot.slane %v4432, 5
        %v4569 = vrot.slane %v4568, 4
        %v4570 = vrot.slane %v3731, 5
        %v4571 = vsel %vm1373, %v4569, %v4570
        %v4572 = vrot.slane %v4570, 4
        %v4573 = vrot.slane %v3732, 5
        %v4574 = vsel %vm1373, %v4572, %v4573
        %v4575 = vrot.slane %v4433, 5
        %v4576 = vrot.slane %v4575, 4
        %v4577 = vrot.slane %v3734, 5
        %v4578 = vsel %vm1373, %v4576, %v4577
        %v4579 = vrot.slane %v4577, 4
        %v4580 = vrot.slane %v3735, 5
        %v4581 = vsel %vm1373, %v4579, %v4580
        %v4582 = vrot.slane %v4434, 5
        %v4583 = vrot.slane %v4582, 4
        %v4584 = vrot.slane %v3737, 5
        %v4585 = vsel %vm1373, %v4583, %v4584
        %v4586 = vrot.slane %v4584, 4
        %v4587 = vrot.slane %v3738, 5
        %v4588 = vsel %vm1373, %v4586, %v4587
        %v4589 = vrot.slane %v4435, 5
        %v4590 = vrot.slane %v4589, 4
        %v4591 = vrot.slane %v3740, 5
        %v4592 = vsel %vm1373, %v4590, %v4591
        %v4593 = vrot.slane %v4591, 4
        %v4594 = vrot.slane %v3741, 5
        %v4595 = vsel %vm1373, %v4593, %v4594
        %s4596 = scalar_lea.vmem %s1, 16
        %v4597 = vld [vmem:[%s4596] sm:$0x3]
        %v4598 = vunpack.c.l.b16 %v4487
        %v4599 = vunpack.c.l.b16 %v4490
        %v4600 = vunpack.c.l.b16 %v4494
        %v4601 = vunpack.c.l.b16 %v4497
        %v4602 = vunpack.c.l.b16 %v4501
        %v4603 = vunpack.c.l.b16 %v4504
        %v4604 = vunpack.c.l.b16 %v4508
        %v4605 = vunpack.c.l.b16 %v4511
        %v4606 = vunpack.c.l.b16 %v4515
        %v4607 = vunpack.c.l.b16 %v4518
        %v4608 = vunpack.c.l.b16 %v4522
        %v4609 = vunpack.c.l.b16 %v4525
        %v4610 = vunpack.c.l.b16 %v4529
        %v4611 = vunpack.c.l.b16 %v4532
        %v4612 = vunpack.c.l.b16 %v4536
        %v4613 = vunpack.c.l.b16 %v4539
        %v4614 = vunpack.c.l.b16 %v4543
        %v4615 = vunpack.c.l.b16 %v4546
        %v4616 = vunpack.c.l.b16 %v4550
        %v4617 = vunpack.c.l.b16 %v4553
        %v4618 = vunpack.c.l.b16 %v4557
        %v4619 = vunpack.c.l.b16 %v4560
        %v4620 = vunpack.c.l.b16 %v4564
        %v4621 = vunpack.c.l.b16 %v4567
        %v4622 = vunpack.c.l.b16 %v4571
        %v4623 = vunpack.c.l.b16 %v4574
        %v4624 = vunpack.c.l.b16 %v4578
        %v4625 = vunpack.c.l.b16 %v4581
        %v4626 = vunpack.c.l.b16 %v4585
        %v4627 = vunpack.c.l.b16 %v4588
        %v4628 = vunpack.c.l.b16 %v4592
        %v4629 = vunpack.c.l.b16 %v4595
        %v4630 = vpack.c.b16 %v4599, %v4598
        %v4631 = vpack.c.b16 %v4601, %v4600
        %v4632 = vpack.c.b16 %v4603, %v4602
        %v4633 = vpack.c.b16 %v4605, %v4604
        %v4634 = vpack.c.b16 %v4607, %v4606
        %v4635 = vpack.c.b16 %v4609, %v4608
        %v4636 = vpack.c.b16 %v4611, %v4610
        %v4637 = vpack.c.b16 %v4613, %v4612
        %v4638 = vpack.c.b16 %v4615, %v4614
        %v4639 = vpack.c.b16 %v4617, %v4616
        %v4640 = vpack.c.b16 %v4619, %v4618
        %v4641 = vpack.c.b16 %v4621, %v4620
        %v4642 = vpack.c.b16 %v4623, %v4622
        %v4643 = vpack.c.b16 %v4625, %v4624
        %v4644 = vpack.c.b16 %v4627, %v4626
        %v4645 = vpack.c.b16 %v4629, %v4628
        %v4647 = vsel %vm817, %v4630, 0
        %v4650 = vsel %vm817, %v4631, 0
        %v4653 = vsel %vm817, %v4632, 0
        %v4656 = vsel %vm817, %v4633, 0
        %v4659 = vsel %vm817, %v4634, 0
        %v4662 = vsel %vm817, %v4635, 0
        %v4665 = vsel %vm817, %v4636, 0
        %v4668 = vsel %vm817, %v4637, 0
        %v4671 = vsel %vm817, %v4638, 0
        %v4674 = vsel %vm817, %v4639, 0
        %v4677 = vsel %vm817, %v4640, 0
        %v4680 = vsel %vm817, %v4641, 0
        %v4683 = vsel %vm817, %v4642, 0
        %v4686 = vsel %vm817, %v4643, 0
        %v4689 = vsel %vm817, %v4644, 0
        %v4692 = vsel %vm817, %v4645, 0
        %v4695 = vsel %vm866, %v4597, 0
        %4697 = vmatprep.subr.bf16.mxu0 0
        %4698 = vmatpush1.bf16.msra.mxu0 %v4695
        %4699 = vmatprep.subr.bf16.mxu0 0
        %4700 = vmatpush1.bf16.msra.mxu0 0
        %4701 = vmatprep.subr.bf16.mxu0 0
        %4702 = vmatpush1.bf16.msra.mxu0 0
        %4703 = vmatprep.subr.bf16.mxu0 0
        %4704 = vmatpush1.bf16.msra.mxu0 0
        %4705 = vmatprep.subr.bf16.mxu0 0
        %4706 = vmatpush1.bf16.msra.mxu0 0
        %4707 = vmatprep.subr.bf16.mxu0 0
        %4708 = vmatpush1.bf16.msra.mxu0 0
        %4709 = vmatprep.subr.bf16.mxu0 0
        %4710 = vmatpush1.bf16.msra.mxu0 0
        %4711 = vmatprep.subr.bf16.mxu0 0
        %4712 = vmatpush1.bf16.msra.mxu0 0
        %4713 = vmatprep.subr.bf16.mxu0 0
        %4714 = vmatpush1.bf16.msra.mxu0 0
        %4715 = vmatprep.subr.bf16.mxu0 0
        %4716 = vmatpush1.bf16.msra.mxu0 0
        %4717 = vmatprep.subr.bf16.mxu0 0
        %4718 = vmatpush1.bf16.msra.mxu0 0
        %4719 = vmatprep.subr.bf16.mxu0 0
        %4720 = vmatpush1.bf16.msra.mxu0 0
        %4721 = vmatprep.subr.bf16.mxu0 0
        %4722 = vmatpush1.bf16.msra.mxu0 0
        %4723 = vmatprep.subr.bf16.mxu0 0
        %4724 = vmatpush1.bf16.msra.mxu0 0
        %4725 = vmatprep.subr.bf16.mxu0 0
        %4726 = vmatpush1.bf16.msra.mxu0 0
        %4727 = vmatprep.subr.bf16.mxu0 0
        %4728 = vmatpush1.bf16.msra.mxu0 0
        %4729 = vmatprep.mubr.bf16.mxu0 0
        %4730 = vmatmul.mubr.bf16.gmra.mrb[0].mxu0 %v4647
        %v4731 = vpop.f32.mrb[0].mxu0
        %v4732 = vadd.f32 0.0, %v4731
        %v4733 = vpop.f32.mrb[0].mxu0
        %v4734 = vpop.f32.mrb[0].mxu0
        %v4735 = vadd.f32 0.0, %v4734
        %v4736 = vpop.f32.mrb[0].mxu0
        %4737 = vmatprep.mubr.bf16.mxu0 0
        %4738 = vmatmul.mubr.bf16.gmra.mrb[0].mxu0 %v4650
        %v4739 = vpop.f32.mrb[0].mxu0
        %v4740 = vadd.f32 0.0, %v4739
        %v4741 = vpop.f32.mrb[0].mxu0
        %v4742 = vpop.f32.mrb[0].mxu0
        %v4743 = vadd.f32 0.0, %v4742
        %v4744 = vpop.f32.mrb[0].mxu0
        %4745 = vmatprep.mubr.bf16.mxu0 0
        %4746 = vmatmul.mubr.bf16.gmra.mrb[0].mxu0 %v4653
        %v4747 = vpop.f32.mrb[0].mxu0
        %v4748 = vadd.f32 0.0, %v4747
        %v4749 = vpop.f32.mrb[0].mxu0
        %v4750 = vpop.f32.mrb[0].mxu0
        %v4751 = vadd.f32 0.0, %v4750
        %v4752 = vpop.f32.mrb[0].mxu0
        %4753 = vmatprep.mubr.bf16.mxu0 0
        %4754 = vmatmul.mubr.bf16.gmra.mrb[0].mxu0 %v4656
        %v4755 = vpop.f32.mrb[0].mxu0
        %v4756 = vadd.f32 0.0, %v4755
        %v4757 = vpop.f32.mrb[0].mxu0
        %v4758 = vpop.f32.mrb[0].mxu0
        %v4759 = vadd.f32 0.0, %v4758
        %v4760 = vpop.f32.mrb[0].mxu0
        %4761 = vmatprep.mubr.bf16.mxu0 0
        %4762 = vmatmul.mubr.bf16.gmra.mrb[0].mxu0 %v4659
        %v4763 = vpop.f32.mrb[0].mxu0
        %v4764 = vadd.f32 0.0, %v4763
        %v4765 = vpop.f32.mrb[0].mxu0
        %v4766 = vpop.f32.mrb[0].mxu0
        %v4767 = vadd.f32 0.0, %v4766
        %v4768 = vpop.f32.mrb[0].mxu0
        %4769 = vmatprep.mubr.bf16.mxu0 0
        %4770 = vmatmul.mubr.bf16.gmra.mrb[0].mxu0 %v4662
        %v4771 = vpop.f32.mrb[0].mxu0
        %v4772 = vadd.f32 0.0, %v4771
        %v4773 = vpop.f32.mrb[0].mxu0
        %v4774 = vpop.f32.mrb[0].mxu0
        %v4775 = vadd.f32 0.0, %v4774
        %v4776 = vpop.f32.mrb[0].mxu0
        %4777 = vmatprep.mubr.bf16.mxu0 0
        %4778 = vmatmul.mubr.bf16.gmra.mrb[0].mxu0 %v4665
        %v4779 = vpop.f32.mrb[0].mxu0
        %v4780 = vadd.f32 0.0, %v4779
        %v4781 = vpop.f32.mrb[0].mxu0
        %v4782 = vpop.f32.mrb[0].mxu0
        %v4783 = vadd.f32 0.0, %v4782
        %v4784 = vpop.f32.mrb[0].mxu0
        %4785 = vmatprep.mubr.bf16.mxu0 0
        %4786 = vmatmul.mubr.bf16.gmra.mrb[0].mxu0 %v4668
        %v4787 = vpop.f32.mrb[0].mxu0
        %v4788 = vadd.f32 0.0, %v4787
        %v4789 = vpop.f32.mrb[0].mxu0
        %v4790 = vpop.f32.mrb[0].mxu0
        %v4791 = vadd.f32 0.0, %v4790
        %v4792 = vpop.f32.mrb[0].mxu0
        %4793 = vmatprep.mubr.bf16.mxu0 0
        %4794 = vmatmul.mubr.bf16.gmra.mrb[0].mxu0 %v4671
        %v4795 = vpop.f32.mrb[0].mxu0
        %v4796 = vadd.f32 0.0, %v4795
        %v4797 = vpop.f32.mrb[0].mxu0
        %v4798 = vpop.f32.mrb[0].mxu0
        %v4799 = vadd.f32 0.0, %v4798
        %v4800 = vpop.f32.mrb[0].mxu0
        %4801 = vmatprep.mubr.bf16.mxu0 0
        %4802 = vmatmul.mubr.bf16.gmra.mrb[0].mxu0 %v4674
        %v4803 = vpop.f32.mrb[0].mxu0
        %v4804 = vadd.f32 0.0, %v4803
        %v4805 = vpop.f32.mrb[0].mxu0
        %v4806 = vpop.f32.mrb[0].mxu0
        %v4807 = vadd.f32 0.0, %v4806
        %v4808 = vpop.f32.mrb[0].mxu0
        %4809 = vmatprep.mubr.bf16.mxu0 0
        %4810 = vmatmul.mubr.bf16.gmra.mrb[0].mxu0 %v4677
        %v4811 = vpop.f32.mrb[0].mxu0
        %v4812 = vadd.f32 0.0, %v4811
        %v4813 = vpop.f32.mrb[0].mxu0
        %v4814 = vpop.f32.mrb[0].mxu0
        %v4815 = vadd.f32 0.0, %v4814
        %v4816 = vpop.f32.mrb[0].mxu0
        %4817 = vmatprep.mubr.bf16.mxu0 0
        %4818 = vmatmul.mubr.bf16.gmra.mrb[0].mxu0 %v4680
        %v4819 = vpop.f32.mrb[0].mxu0
        %v4820 = vadd.f32 0.0, %v4819
        %v4821 = vpop.f32.mrb[0].mxu0
        %v4822 = vpop.f32.mrb[0].mxu0
        %v4823 = vadd.f32 0.0, %v4822
        %v4824 = vpop.f32.mrb[0].mxu0
        %4825 = vmatprep.mubr.bf16.mxu0 0
        %4826 = vmatmul.mubr.bf16.gmra.mrb[0].mxu0 %v4683
        %v4827 = vpop.f32.mrb[0].mxu0
        %v4828 = vadd.f32 0.0, %v4827
        %v4829 = vpop.f32.mrb[0].mxu0
        %v4830 = vpop.f32.mrb[0].mxu0
        %v4831 = vadd.f32 0.0, %v4830
        %v4832 = vpop.f32.mrb[0].mxu0
        %4833 = vmatprep.mubr.bf16.mxu0 0
        %4834 = vmatmul.mubr.bf16.gmra.mrb[0].mxu0 %v4686
        %v4835 = vpop.f32.mrb[0].mxu0
        %v4836 = vadd.f32 0.0, %v4835
        %v4837 = vpop.f32.mrb[0].mxu0
        %v4838 = vpop.f32.mrb[0].mxu0
        %v4839 = vadd.f32 0.0, %v4838
        %v4840 = vpop.f32.mrb[0].mxu0
        %4841 = vmatprep.mubr.bf16.mxu0 0
        %4842 = vmatmul.mubr.bf16.gmra.mrb[0].mxu0 %v4689
        %v4843 = vpop.f32.mrb[0].mxu0
        %v4844 = vadd.f32 0.0, %v4843
        %v4845 = vpop.f32.mrb[0].mxu0
        %v4846 = vpop.f32.mrb[0].mxu0
        %v4847 = vadd.f32 0.0, %v4846
        %v4848 = vpop.f32.mrb[0].mxu0
        %4849 = vmatprep.mubr.bf16.mxu0 0
        %4850 = vmatmul.mubr.bf16.gmra.mrb[0].mxu0 %v4692
        %v4851 = vpop.f32.mrb[0].mxu0
        %v4852 = vadd.f32 0.0, %v4851
        %v4853 = vpop.f32.mrb[0].mxu0
        %v4854 = vpop.f32.mrb[0].mxu0
        %v4855 = vadd.f32 0.0, %v4854
        %v4856 = vpop.f32.mrb[0].mxu0
        %4857 = vdwg.mxu0
        %v4858 = vadd.f32 %v4388, %v4732
        %v4859 = vadd.f32 %v4389, %v4735
        %v4860 = vadd.f32 %v4390, %v4740
        %v4861 = vadd.f32 %v4391, %v4743
        %v4862 = vadd.f32 %v4392, %v4748
        %v4863 = vadd.f32 %v4393, %v4751
        %v4864 = vadd.f32 %v4394, %v4756
        %v4865 = vadd.f32 %v4395, %v4759
        %v4866 = vadd.f32 %v4396, %v4764
        %v4867 = vadd.f32 %v4397, %v4767
        %v4868 = vadd.f32 %v4398, %v4772
        %v4869 = vadd.f32 %v4399, %v4775
        %v4870 = vadd.f32 %v4400, %v4780
        %v4871 = vadd.f32 %v4401, %v4783
        %v4872 = vadd.f32 %v4402, %v4788
        %v4873 = vadd.f32 %v4403, %v4791
        %v4874 = vadd.f32 %v4404, %v4796
        %v4875 = vadd.f32 %v4405, %v4799
        %v4876 = vadd.f32 %v4406, %v4804
        %v4877 = vadd.f32 %v4407, %v4807
        %v4878 = vadd.f32 %v4408, %v4812
        %v4879 = vadd.f32 %v4409, %v4815
        %v4880 = vadd.f32 %v4410, %v4820
        %v4881 = vadd.f32 %v4411, %v4823
        %v4882 = vadd.f32 %v4412, %v4828
        %v4883 = vadd.f32 %v4413, %v4831
        %v4884 = vadd.f32 %v4414, %v4836
        %v4885 = vadd.f32 %v4415, %v4839
        %v4886 = vadd.f32 %v4416, %v4844
        %v4887 = vadd.f32 %v4417, %v4847
        %v4888 = vadd.f32 %v4418, %v4852
        %v4889 = vadd.f32 %v4419, %v4855
        %v4890 = vld [vmem:[%s2] sm:$0x1]
        %v4892 = vlaneseq
        %v4893 = vshrl.u32 %v4892, 7
        %v4894 = vsub.s32 0, %v4893
        %v4895 = vrot.slane %v4890, %v4894
        %v4897 = vadd.f32 %v4858, %v4895
        %v4898 = vadd.f32 %v4859, %v4895
        %v4899 = vadd.f32 %v4860, %v4895
        %v4900 = vadd.f32 %v4861, %v4895
        %v4901 = vadd.f32 %v4862, %v4895
        %v4902 = vadd.f32 %v4863, %v4895
        %v4903 = vadd.f32 %v4864, %v4895
        %v4904 = vadd.f32 %v4865, %v4895
        %v4905 = vadd.f32 %v4866, %v4895
        %v4906 = vadd.f32 %v4867, %v4895
        %v4907 = vadd.f32 %v4868, %v4895
        %v4908 = vadd.f32 %v4869, %v4895
        %v4909 = vadd.f32 %v4870, %v4895
        %v4910 = vadd.f32 %v4871, %v4895
        %v4911 = vadd.f32 %v4872, %v4895
        %v4912 = vadd.f32 %v4873, %v4895
        %v4913 = vadd.f32 %v4874, %v4895
        %v4914 = vadd.f32 %v4875, %v4895
        %v4915 = vadd.f32 %v4876, %v4895
        %v4916 = vadd.f32 %v4877, %v4895
        %v4917 = vadd.f32 %v4878, %v4895
        %v4918 = vadd.f32 %v4879, %v4895
        %v4919 = vadd.f32 %v4880, %v4895
        %v4920 = vadd.f32 %v4881, %v4895
        %v4921 = vadd.f32 %v4882, %v4895
        %v4922 = vadd.f32 %v4883, %v4895
        %v4923 = vadd.f32 %v4884, %v4895
        %v4924 = vadd.f32 %v4885, %v4895
        %v4925 = vadd.f32 %v4886, %v4895
        %v4926 = vadd.f32 %v4887, %v4895
        %v4927 = vadd.f32 %v4888, %v4895
        %v4928 = vadd.f32 %v4889, %v4895
        %v4929 = vmax.f32 %v4897, 0.0
        %v4930 = vmax.f32 %v4898, 0.0
        %v4931 = vmax.f32 %v4899, 0.0
        %v4932 = vmax.f32 %v4900, 0.0
        %v4933 = vmax.f32 %v4901, 0.0
        %v4934 = vmax.f32 %v4902, 0.0
        %v4935 = vmax.f32 %v4903, 0.0
        %v4936 = vmax.f32 %v4904, 0.0
        %v4937 = vmax.f32 %v4905, 0.0
        %v4938 = vmax.f32 %v4906, 0.0
        %v4939 = vmax.f32 %v4907, 0.0
        %v4940 = vmax.f32 %v4908, 0.0
        %v4941 = vmax.f32 %v4909, 0.0
        %v4942 = vmax.f32 %v4910, 0.0
        %v4943 = vmax.f32 %v4911, 0.0
        %v4944 = vmax.f32 %v4912, 0.0
        %v4945 = vmax.f32 %v4913, 0.0
        %v4946 = vmax.f32 %v4914, 0.0
        %v4947 = vmax.f32 %v4915, 0.0
        %v4948 = vmax.f32 %v4916, 0.0
        %v4949 = vmax.f32 %v4917, 0.0
        %v4950 = vmax.f32 %v4918, 0.0
        %v4951 = vmax.f32 %v4919, 0.0
        %v4952 = vmax.f32 %v4920, 0.0
        %v4953 = vmax.f32 %v4921, 0.0
        %v4954 = vmax.f32 %v4922, 0.0
        %v4955 = vmax.f32 %v4923, 0.0
        %v4956 = vmax.f32 %v4924, 0.0
        %v4957 = vmax.f32 %v4925, 0.0
        %v4958 = vmax.f32 %v4926, 0.0
        %v4959 = vmax.f32 %v4927, 0.0
        %v4960 = vmax.f32 %v4928, 0.0
        %vm4961 = vcmask 261120
        %v4962 = vsel %vm4961, %v4929, 0.0
        %v4963 = vsel %vm4961, %v4930, 0.0
        %v4964 = vadd.f32 %v4962, %v4963
        %v4965 = vsel %vm4961, %v4931, 0.0
        %v4966 = vadd.f32 %v4964, %v4965
        %v4967 = vsel %vm4961, %v4932, 0.0
        %v4968 = vadd.f32 %v4966, %v4967
        %v4969 = vsel %vm4961, %v4933, 0.0
        %v4970 = vadd.f32 %v4968, %v4969
        %v4971 = vsel %vm4961, %v4934, 0.0
        %v4972 = vadd.f32 %v4970, %v4971
        %v4973 = vsel %vm4961, %v4935, 0.0
        %v4974 = vadd.f32 %v4972, %v4973
        %v4975 = vsel %vm4961, %v4936, 0.0
        %v4976 = vadd.f32 %v4974, %v4975
        %v4977 = vsel %vm4961, %v4937, 0.0
        %v4978 = vadd.f32 %v4976, %v4977
        %v4979 = vsel %vm4961, %v4938, 0.0
        %v4980 = vadd.f32 %v4978, %v4979
        %v4981 = vsel %vm4961, %v4939, 0.0
        %v4982 = vadd.f32 %v4980, %v4981
        %v4983 = vsel %vm4961, %v4940, 0.0
        %v4984 = vadd.f32 %v4982, %v4983
        %v4985 = vsel %vm4961, %v4941, 0.0
        %v4986 = vadd.f32 %v4984, %v4985
        %v4987 = vsel %vm4961, %v4942, 0.0
        %v4988 = vadd.f32 %v4986, %v4987
        %v4989 = vsel %vm4961, %v4943, 0.0
        %v4990 = vadd.f32 %v4988, %v4989
        %v4991 = vsel %vm4961, %v4944, 0.0
        %v4992 = vadd.f32 %v4990, %v4991
        %v4993 = vsel %vm4961, %v4945, 0.0
        %v4994 = vadd.f32 %v4992, %v4993
        %v4995 = vsel %vm4961, %v4946, 0.0
        %v4996 = vadd.f32 %v4994, %v4995
        %v4997 = vsel %vm4961, %v4947, 0.0
        %v4998 = vadd.f32 %v4996, %v4997
        %v4999 = vsel %vm4961, %v4948, 0.0
        %v5000 = vadd.f32 %v4998, %v4999
        %v5001 = vsel %vm4961, %v4949, 0.0
        %v5002 = vadd.f32 %v5000, %v5001
        %v5003 = vsel %vm4961, %v4950, 0.0
        %v5004 = vadd.f32 %v5002, %v5003
        %v5005 = vsel %vm4961, %v4951, 0.0
        %v5006 = vadd.f32 %v5004, %v5005
        %v5007 = vsel %vm4961, %v4952, 0.0
        %v5008 = vadd.f32 %v5006, %v5007
        %v5009 = vsel %vm4961, %v4953, 0.0
        %v5010 = vadd.f32 %v5008, %v5009
        %v5011 = vsel %vm4961, %v4954, 0.0
        %v5012 = vadd.f32 %v5010, %v5011
        %v5013 = vsel %vm4961, %v4955, 0.0
        %v5014 = vadd.f32 %v5012, %v5013
        %v5015 = vsel %vm4961, %v4956, 0.0
        %v5016 = vadd.f32 %v5014, %v5015
        %v5017 = vsel %vm4961, %v4957, 0.0
        %v5018 = vadd.f32 %v5016, %v5017
        %v5019 = vsel %vm4961, %v4958, 0.0
        %v5020 = vadd.f32 %v5018, %v5019
        %v5021 = vsel %vm4961, %v4959, 0.0
        %v5022 = vadd.f32 %v5020, %v5021
        %v5023 = vsel %vm4961, %v4960, 0.0
        %v5024 = vadd.f32 %v5022, %v5023
        %v5025 = vrot.slane %v5024, 4
        %v5026 = vadd.f32 %v5024, %v5025
        %v5027 = vrot.slane %v5026, 2
        %v5028 = vadd.f32 %v5026, %v5027
        %v5029 = vrot.slane %v5028, 1
        %v5030 = vadd.f32 %v5028, %v5029
        %v5031 = vmul.f32 %v5030, 0.00390625
        %v5032 = vsel %vm4961, %v5031, 0.0
        %5033 = vadd.xlane.f32.xlu0 %v5032
        %v5034 = vpop.xlane.xlu0 %5033
        %v5035 = vrcp.pop 32.0
        %v5036 = vmul.f32 %v5034, %v5035
        %v5037 = vsub.f32 %v5031, %v5036
        %v5038 = vmul.f32 %v5037, %v5037
        %v5039 = vsel %vm4961, %v5038, 0.0
        %5040 = vadd.xlane.f32.xlu0 %v5039
        %v5041 = vpop.xlane.xlu0 %5040
        %v5042 = vmul.f32 %v5041, %v5035
        %v5043 = vadd.f32 %v5042, 1e-05
        %v5044 = vrsqrt.pop %v5043
        %v5045 = vmul.f32 %v5037, %v5044
        %v5046 = vld [vmem:[%s3] sm:$0x1]
        %v5047 = vmul.f32 %v5045, %v5046
        %v5048 = vld [vmem:[%s4] sm:$0x1]
        %v5049 = vadd.f32 %v5047, %v5048
        %v5050 = vld [vmem:[%s5] sm:$0xff]
        %v5051 = vld [vmem:[%s5 + $0x8] sm:$0xff]
        %v5052 = vld [vmem:[%s5 + $0x10] sm:$0xff]
        %v5053 = vld [vmem:[%s5 + $0x18] sm:$0xff]
        %v5054 = vld [vmem:[%s6] sm:$0x1]
        %v5056 = vsel %vm4961, %v5049, 0
        %5058 = vmatprep.subr.mxu0 0.0
        %5059 = vmatpush1.msra.mxu0 %v5050
        %5060 = vmatprep.subr.mxu0 0.0
        %5061 = vmatpush1.msra.mxu0 %v5051
        %5062 = vmatprep.subr.mxu0 0.0
        %5063 = vmatpush1.msra.mxu0 %v5052
        %5064 = vmatprep.subr.mxu0 0.0
        %5065 = vmatpush1.msra.mxu0 %v5053
        %5066 = vmatprep.subr.mxu0 0.0
        %5067 = vmatpush1.msra.mxu0 0.0
        %5068 = vmatprep.subr.mxu0 0.0
        %5069 = vmatpush1.msra.mxu0 0.0
        %5070 = vmatprep.subr.mxu0 0.0
        %5071 = vmatpush1.msra.mxu0 0.0
        %5072 = vmatprep.subr.mxu0 0.0
        %5073 = vmatpush1.msra.mxu0 0.0
        %5074 = vmatprep.subr.mxu0 0.0
        %5075 = vmatpush1.msra.mxu0 0.0
        %5076 = vmatprep.subr.mxu0 0.0
        %5077 = vmatpush1.msra.mxu0 0.0
        %5078 = vmatprep.subr.mxu0 0.0
        %5079 = vmatpush1.msra.mxu0 0.0
        %5080 = vmatprep.subr.mxu0 0.0
        %5081 = vmatpush1.msra.mxu0 0.0
        %5082 = vmatprep.subr.mxu0 0.0
        %5083 = vmatpush1.msra.mxu0 0.0
        %5084 = vmatprep.subr.mxu0 0.0
        %5085 = vmatpush1.msra.mxu0 0.0
        %5086 = vmatprep.subr.mxu0 0.0
        %5087 = vmatpush1.msra.mxu0 0.0
        %5088 = vmatprep.subr.mxu0 0.0
        %5089 = vmatpush1.msra.mxu0 0.0
        %5090 = vmatprep.subr.mxu0 0.0
        %5091 = vmatpush1.msra.mxu0 0.0
        %5092 = vmatprep.subr.mxu0 0.0
        %5093 = vmatpush1.msra.mxu0 0.0
        %5094 = vmatprep.subr.mxu0 0.0
        %5095 = vmatpush1.msra.mxu0 0.0
        %5096 = vmatprep.subr.mxu0 0.0
        %5097 = vmatpush1.msra.mxu0 0.0
        %5098 = vmatprep.subr.mxu0 0.0
        %5099 = vmatpush1.msra.mxu0 0.0
        %5100 = vmatprep.subr.mxu0 0.0
        %5101 = vmatpush1.msra.mxu0 0.0
        %5102 = vmatprep.subr.mxu0 0.0
        %5103 = vmatpush1.msra.mxu0 0.0
        %5104 = vmatprep.subr.mxu0 0.0
        %5105 = vmatpush1.msra.mxu0 0.0
        %5106 = vmatprep.subr.mxu0 0.0
        %5107 = vmatpush1.msra.mxu0 0.0
        %5108 = vmatprep.subr.mxu0 0.0
        %5109 = vmatpush1.msra.mxu0 0.0
        %5110 = vmatprep.subr.mxu0 0.0
        %5111 = vmatpush1.msra.mxu0 0.0
        %5112 = vmatprep.subr.mxu0 0.0
        %5113 = vmatpush1.msra.mxu0 0.0
        %5114 = vmatprep.subr.mxu0 0.0
        %5115 = vmatpush1.msra.mxu0 0.0
        %5116 = vmatprep.subr.mxu0 0.0
        %5117 = vmatpush1.msra.mxu0 0.0
        %5118 = vmatprep.subr.mxu0 0.0
        %5119 = vmatpush1.msra.mxu0 0.0
        %5120 = vmatprep.subr.mxu0 0.0
        %5121 = vmatpush1.msra.mxu0 0.0
        %5122 = vmatprep.mubr.f32.mxu0 0.0
        %5123 = vmatmul.mubr.f32.gmra.mrb[0].mxu0 %v5056
        %v5124 = vpop.f32.mrb[0].mxu0
        %v5125 = vadd.f32 %v5054, %v5124
        %v5126 = vpop.f32.mrb[0].mxu0
        %5127 = vdwg.mxu0
        %v5128 = vmax.f32 %v5125, 0.0
        %v5129 = vld [vmem:[%s7] sm:$0xff]
        %v5130 = vld [vmem:[%s7 + $0x8] sm:$0xff]
        %v5131 = vld [vmem:[%s7 + $0x10] sm:$0xff]
        %v5132 = vld [vmem:[%s7 + $0x18] sm:$0xff]
        %v5133 = vld [vmem:[%s7 + $0x20] sm:$0xff]
        %v5134 = vld [vmem:[%s7 + $0x28] sm:$0xff]
        %v5135 = vld [vmem:[%s7 + $0x30] sm:$0xff]
        %v5136 = vld [vmem:[%s7 + $0x38] sm:$0xff]
        %v5137 = vld [vmem:[%s8] sm:$0x1]
        %vm5138 = vcmask 523264
        %v5140 = vsel %vm5138, %v5128, 0
        %5142 = vmatprep.subr.mxu0 0.0
        %5143 = vmatpush1.msra.mxu0 %v5129
        %5144 = vmatprep.subr.mxu0 0.0
        %5145 = vmatpush1.msra.mxu0 %v5130
        %5146 = vmatprep.subr.mxu0 0.0
        %5147 = vmatpush1.msra.mxu0 %v5131
        %5148 = vmatprep.subr.mxu0 0.0
        %5149 = vmatpush1.msra.mxu0 %v5132
        %5150 = vmatprep.subr.mxu0 0.0
        %5151 = vmatpush1.msra.mxu0 %v5133
        %5152 = vmatprep.subr.mxu0 0.0
        %5153 = vmatpush1.msra.mxu0 %v5134
        %5154 = vmatprep.subr.mxu0 0.0
        %5155 = vmatpush1.msra.mxu0 %v5135
        %5156 = vmatprep.subr.mxu0 0.0
        %5157 = vmatpush1.msra.mxu0 %v5136
        %5158 = vmatprep.subr.mxu0 0.0
        %5159 = vmatpush1.msra.mxu0 0.0
        %5160 = vmatprep.subr.mxu0 0.0
        %5161 = vmatpush1.msra.mxu0 0.0
        %5162 = vmatprep.subr.mxu0 0.0
        %5163 = vmatpush1.msra.mxu0 0.0
        %5164 = vmatprep.subr.mxu0 0.0
        %5165 = vmatpush1.msra.mxu0 0.0
        %5166 = vmatprep.subr.mxu0 0.0
        %5167 = vmatpush1.msra.mxu0 0.0
        %5168 = vmatprep.subr.mxu0 0.0
        %5169 = vmatpush1.msra.mxu0 0.0
        %5170 = vmatprep.subr.mxu0 0.0
        %5171 = vmatpush1.msra.mxu0 0.0
        %5172 = vmatprep.subr.mxu0 0.0
        %5173 = vmatpush1.msra.mxu0 0.0
        %5174 = vmatprep.subr.mxu0 0.0
        %5175 = vmatpush1.msra.mxu0 0.0
        %5176 = vmatprep.subr.mxu0 0.0
        %5177 = vmatpush1.msra.mxu0 0.0
        %5178 = vmatprep.subr.mxu0 0.0
        %5179 = vmatpush1.msra.mxu0 0.0
        %5180 = vmatprep.subr.mxu0 0.0
        %5181 = vmatpush1.msra.mxu0 0.0
        %5182 = vmatprep.subr.mxu0 0.0
        %5183 = vmatpush1.msra.mxu0 0.0
        %5184 = vmatprep.subr.mxu0 0.0
        %5185 = vmatpush1.msra.mxu0 0.0
        %5186 = vmatprep.subr.mxu0 0.0
        %5187 = vmatpush1.msra.mxu0 0.0
        %5188 = vmatprep.subr.mxu0 0.0
        %5189 = vmatpush1.msra.mxu0 0.0
        %5190 = vmatprep.subr.mxu0 0.0
        %5191 = vmatpush1.msra.mxu0 0.0
        %5192 = vmatprep.subr.mxu0 0.0
        %5193 = vmatpush1.msra.mxu0 0.0
        %5194 = vmatprep.subr.mxu0 0.0
        %5195 = vmatpush1.msra.mxu0 0.0
        %5196 = vmatprep.subr.mxu0 0.0
        %5197 = vmatpush1.msra.mxu0 0.0
        %5198 = vmatprep.subr.mxu0 0.0
        %5199 = vmatpush1.msra.mxu0 0.0
        %5200 = vmatprep.subr.mxu0 0.0
        %5201 = vmatpush1.msra.mxu0 0.0
        %5202 = vmatprep.subr.mxu0 0.0
        %5203 = vmatpush1.msra.mxu0 0.0
        %5204 = vmatprep.subr.mxu0 0.0
        %5205 = vmatpush1.msra.mxu0 0.0
        %5206 = vmatprep.mubr.f32.mxu0 0.0
        %5207 = vmatmul.mubr.f32.gmra.mrb[0].mxu0 %v5140
        %v5208 = vpop.f32.mrb[0].mxu0
        %v5209 = vadd.f32 %v5137, %v5208
        %v5210 = vpop.f32.mrb[0].mxu0
        %5211 = vdwg.mxu0
        %vm5212 = vcmask 73728
        %5213 = vst.msk [vmem:[%s324] sm:$0x1] %vm5212, %v5209
        %s5214 = sand.u32 %s225, 1
        %s5215 = scalar_lea.sflag [#allocation3], %s5214
        %s5216 = sand.u32 %s225, 1
        %s5217 = scalar_lea.vmem [#allocation2], %s5216
        // Predicated region
        $region57: #{image_classifier_forward.1} parent=55 // pred_check
          %p5218 = pneg %p235
        $region58: #{image_classifier_forward.1} parent=55 // pred_check_branch
          %5220 = sbr.rel (%p5218) target = $region60
        $region59: #{image_classifier_forward.1} parent=55 // pred_region
          %s5222 = ssub.s32 16, 16
          %5223 = vsyncadd %s5215, %s5222
          %s5224 = smul.addr %s23, 16
          %s5225 = scalar_lea.hbm %s9, %s5224
          %s5227 = sshll.u32 %s5217, 4
          %s5228 = int_to_ptr.vmem [resolvable:$true] %s5227
          %5230 = dma.vmem_to_hbm [thread:$0]  %s5228, 16, %s5225, %s5215
        $region60: #{image_classifier_forward.1} parent=55 // pred_fallthru
          _
      $region56: #{image_classifier_forward.1} parent=5 // pred_fallthru
        _
      %p5231 = scmp.le.s32.totalorder 2, %s18
      // Predicated region
      $region61: #{image_classifier_forward.1} parent=5 // pred_check
        %p5232 = pneg %p5231
      $region62: #{image_classifier_forward.1} parent=5 // pred_check_branch
        %5234 = sbr.rel (%p5232) target = $region64
      $region63: #{image_classifier_forward.1} parent=5 // pred_region
        %s5235 = ssub.s32 %s18, 2
        // Predicated region
        $region65: #{image_classifier_forward.1} parent=63 // pred_check
          %p5236 = pneg %p241
        $region66: #{image_classifier_forward.1} parent=63 // pred_check_branch
          %5238 = sbr.rel (%p5236) target = $region68
        $region67: #{image_classifier_forward.1} parent=63 // pred_region
          %s5239 = sand.u32 %s226, 1
          %s5240 = scalar_lea.sflag [#allocation3], %s5239
          %s5241 = sand.u32 %s226, 1
          %s5242 = scalar_lea.vmem [#allocation2], %s5241
          %5243 = dma.done %s5240, 16
        $region68: #{image_classifier_forward.1} parent=63 // pred_fallthru
          _
      $region64: #{image_classifier_forward.1} parent=5 // pred_fallthru
        _
    $region6: #{image_classifier_forward.1} parent=1 // loop_footer
      %s22 = sadd.s32 1, %s18
    $region7: #{image_classifier_forward.1} parent=1 // loop_footer_branch
      %17 = sbr.rel target = $region3
    $region8: #{image_classifier_forward.1} parent=1 // loop_exit
      _
    %5244 = vsyncpa [#allocation3], 1
    %s5245 = scalar_lea.sflag [#allocation3], 1
    %5246 = vsyncpa %s5245, 1

</llo_original>
